<compile_context>
chip_gen: v5e
topology: v5e:2x2
jax: 0.10.0
libtpu: 0.0.40
codegen_flags: <defaults>
</compile_context>

<pallas_src>
import math
import functools

import jax
import jax.numpy as jnp
from jax import lax
from jax.experimental import pallas as pl
from jax.experimental.pallas import tpu as pltpu

# ---- LIF / encoding constants (forward semantics) ---------------------------
LIF_DECAY = 0.9
LIF_THRESH = 1.0
RATE_SLOPE = 10.0


def spiking_attn_kernel(x_ref, wqkv_ref, bqkv_ref, wo_ref, bo_ref,
                        out_ref, cur_ref, *, num_heads, time_window):
    """One batch-block per grid step (whole batch by default)."""
    Bt, S, E = x_ref.shape
    H = num_heads
    D = E // H
    T = time_window
    R = Bt * S                                    # rows per timestep

    # ---- rate_encode for all (t, b, s) rows ---------------------------------
    # spikes[t] = sigmoid(10 * (clip(x) * T - t)).  Slope*window is hoisted and
    # the per-timestep shift 10*t is a compile-time constant: no iota, no int
    # divide, no int->float convert on the slab path.  Chunks are cast to bf16
    # before the concat (half the copy traffic, MXU-ready operands).
    x2 = x_ref[...].reshape(R, E)                                  # [R, E] f32
    a = jnp.clip(x2, 0.0, 1.0) * (RATE_SLOPE * float(T))           # [R, E]
    spk_bf16 = jnp.concatenate(
        [jax.nn.sigmoid(a - (RATE_SLOPE * float(t))).astype(jnp.bfloat16)
         for t in range(T)],
        axis=0)                                                    # [T*R, E]

    # ---- one fused MXU matmul for all timesteps, batch elems and Q/K/V ------
    cur = jnp.dot(spk_bf16, wqkv_ref[...],
                  preferred_element_type=jnp.float32) + bqkv_ref[...]
    # Park currents in bf16 scratch (halves the VMEM round trip vs f32).
    cur_ref[...] = cur.reshape(T, R, 3 * E).astype(jnp.bfloat16)

    # ---- sequential LIF membrane recurrence (pure VPU, f32 state) -----------
    def lif_step(t, carry):
        v, acc = carry
        v = LIF_DECAY * v + cur_ref[t].astype(jnp.float32)         # [R, 3E]
        fired = v >= LIF_THRESH
        spk_t = fired.astype(jnp.float32)
        v = jnp.where(fired, 0.0, v)                               # hard reset
        return v, acc + spk_t

    zeros = jnp.zeros((R, 3 * E), jnp.float32)
    _, acc = lax.fori_loop(0, T, lif_step, (zeros, zeros), unroll=True)

    # ---- head-major views: [R, E] -> [H*Bt, S, D] ----------------------------
    def to_heads(a2d):
        ah = jnp.transpose(a2d.reshape(R, H, D), (1, 0, 2))        # [H, R, D]
        return ah.reshape(H * Bt, S, D).astype(jnp.bfloat16)

    qh = to_heads(acc[:, :E])            # spike-count accumulators (<= T, exact in bf16)
    kh = to_heads(acc[:, E:2 * E])
    vh = to_heads(acc[:, 2 * E:])

    # ---- batched multi-head attention (batch dim = h*Bt + b) -----------------
    scores = jnp.einsum('bqd,bkd->bqk', qh, kh,
                        preferred_element_type=jnp.float32)
    scores = scores * (1.0 / math.sqrt(D))                         # [H*Bt, S, S]
    m = jnp.max(scores, axis=-1, keepdims=True)
    e = jnp.exp(scores - m)
    denom = jnp.sum(e, axis=-1, keepdims=True)
    attn = e * pl.reciprocal(denom, approx=True)                   # EUP, not VPU divide

    out_h = jnp.einsum('bqk,bkd->bqd', attn.astype(jnp.bfloat16), vh,
                       preferred_element_type=jnp.float32)         # [H*Bt, S, D]

    # ---- fused head-concat + out_proj ----------------------------------------
    # concat_h(out_h) @ W_out == sum_h out_h[h] @ W_out[h*D:(h+1)*D, :]
    # -> per-head bf16 batched matmul + tiny VPU sum over H; no [H,S,D]->[S,E]
    # relayout of the attention output.
    out_hb = out_h.reshape(H, R, D).astype(jnp.bfloat16)           # [H, R, D]
    wo_r = wo_ref[...].reshape(H, D, E)                            # [H, D, E] bf16
    io = jnp.einsum('hrd,hde->hre', out_hb, wo_r,
                    preferred_element_type=jnp.float32)            # [H, R, E]
    io = jnp.sum(io, axis=0) + bo_ref[...]                         # [R, E] f32

    # ---- out_proj LIF (fresh state: v = decay*0 + i = i) ---------------------
    out_ref[...] = (io >= LIF_THRESH).astype(jnp.float32).reshape(Bt, S, E)


def spiking_self_attention(x, params, *, num_heads, time_window, batch_block=None):
    """x: [B, S, E] float32 -> [B, S, E] float32 (binary spikes)."""
    B, S, E = x.shape
    assert time_window >= 1
    wq, bq, wk, bk, wv, bv, wo, bo = params

    # Fuse the three projection weights/biases once, outside the kernel.
    wqkv = jnp.concatenate([wq, wk, wv], axis=1).astype(jnp.bfloat16)   # [E, 3E]
    bqkv = jnp.concatenate([bq, bk, bv], axis=1)                        # [1, 3E] f32
    wo_bf = wo.astype(jnp.bfloat16)                                     # [E, E]

    if batch_block is None:
        batch_block = B          # fold the whole batch into one grid step
        # On v7x, pass batch_block = B // 2 so each TensorCore gets one block
        # (grid axis stays "parallel").
    assert B % batch_block == 0
    Bt = batch_block

    kernel = functools.partial(
        spiking_attn_kernel, num_heads=num_heads, time_window=time_window)

    # VMEM scaling guard: cur scratch is T * Bt*S * 3E * 2 bytes (bf16).  For
    # large S/E/T tile the sequence with an extra grid axis before scaling on
    # v7x (64 MiB per-TC VMEM).
    return pl.pallas_call(
        kernel,
        out_shape=jax.ShapeDtypeStruct((B, S, E), jnp.float32),
        grid_spec=pltpu.PrefetchScalarGridSpec(
            num_scalar_prefetch=0,
            grid=(B // Bt,),
            in_specs=[
                pl.BlockSpec((Bt, S, E), lambda b: (b, 0, 0)),    # x
                pl.BlockSpec((E, 3 * E), lambda b: (0, 0)),       # W_qkv (bf16)
                pl.BlockSpec((1, 3 * E), lambda b: (0, 0)),       # b_qkv (f32)
                pl.BlockSpec((E, E), lambda b: (0, 0)),           # W_out (bf16)
                pl.BlockSpec((1, E), lambda b: (0, 0)),           # b_out (f32)
            ],
            out_specs=pl.BlockSpec((Bt, S, E), lambda b: (b, 0, 0)),
            scratch_shapes=[
                pltpu.VMEM((time_window, Bt * S, 3 * E), jnp.bfloat16),  # currents
            ],
        ),
        compiler_params=pltpu.CompilerParams(
            dimension_semantics=("parallel",)),   # default VMEM limit is plenty
    )(x, wqkv, bqkv, wo_bf, bo)


def init_params(key, embed_dim):
    """Deterministic Linear-style init: U(-1/sqrt(E), 1/sqrt(E))."""
    bound = 1.0 / math.sqrt(embed_dim)
    keys = jax.random.split(key, 8)

    def w(k):
        return jax.random.uniform(k, (embed_dim, embed_dim), jnp.float32,
                                  minval=-bound, maxval=bound)

    def b(k):
        return jax.random.uniform(k, (1, embed_dim), jnp.float32,
                                  minval=-bound, maxval=bound)

    return (w(keys[0]), b(keys[1]),   # q
            w(keys[2]), b(keys[3]),   # k
            w(keys[4]), b(keys[5]),   # v
            w(keys[6]), b(keys[7]))   # out


if __name__ == "__main__":
    B, S, E = 2, 16, 128          # E >= 128 -> lane-dense output stores
    NUM_HEADS = 2                 # head_dim = 64
    TIME_WINDOW = 10

    key = jax.random.PRNGKey(0)
    kx, kp = jax.random.split(key)
    # inputs in [0, 1] (rate_encode assumes normalized input)
    x = jax.random.uniform(kx, (B, S, E), jnp.float32)
    params = init_params(kp, E)

    out = spiking_self_attention(x, params,
                                 num_heads=NUM_HEADS,
                                 time_window=TIME_WINDOW)
    out = jax.block_until_ready(out)
    assert out.shape == (B, S, E)
    print("KERNEL_OK")
</pallas_src>

<mosaic_0001>
module attributes {stable_mosaic.version = 11 : i64} {
  func.func @spiking_attn_kernel(%arg0: i32, %arg1: memref<2x16x128xf32, #tpu.memory_space<vmem>>, %arg2: memref<128x384xbf16, #tpu.memory_space<vmem>>, %arg3: memref<1x384xf32, #tpu.memory_space<vmem>>, %arg4: memref<128x128xbf16, #tpu.memory_space<vmem>>, %arg5: memref<1x128xf32, #tpu.memory_space<vmem>>, %arg6: memref<2x16x128xf32, #tpu.memory_space<vmem>>, %arg7: memref<10x32x384xbf16, #tpu.memory_space<vmem>>) attributes {dimension_semantics = [#tpu.dimension_semantics<parallel>], iteration_bounds = array<i64: 1>, scalar_prefetch = 0 : i64, scratch_operands = 1 : i64, tpu.core_type = #tpu.core_type<tc>, window_params = [{transform_indices = @transform_0, window_bounds = array<i64: 2, 16, 128>}, {pipeline_mode = #tpu.pipeline_mode<synchronous>, transform_indices = @transform_1, window_bounds = array<i64: 128, 384>}, {pipeline_mode = #tpu.pipeline_mode<synchronous>, transform_indices = @transform_2, window_bounds = array<i64: 1, 384>}, {pipeline_mode = #tpu.pipeline_mode<synchronous>, transform_indices = @transform_3, window_bounds = array<i64: 128, 128>}, {pipeline_mode = #tpu.pipeline_mode<synchronous>, transform_indices = @transform_4, window_bounds = array<i64: 1, 128>}, {transform_indices = @transform_5, window_bounds = array<i64: 2, 16, 128>}]} {
    %c0 = arith.constant 0 : index
    %c0_0 = arith.constant 0 : index
    %c0_1 = arith.constant 0 : index
    %0 = vector.load %arg1[%c0, %c0_0, %c0_1] : memref<2x16x128xf32, #tpu.memory_space<vmem>>, vector<2x16x128xf32>
    %1 = vector.shape_cast %0 : vector<2x16x128xf32> to vector<32x128xf32>
    %cst = arith.constant 0.000000e+00 : f32
    %cst_2 = arith.constant 1.000000e+00 : f32
    %2 = vector.broadcast %cst : f32 to vector<32x128xf32>
    %3 = arith.maximumf %2, %1 : vector<32x128xf32>
    %4 = vector.broadcast %cst_2 : f32 to vector<32x128xf32>
    %5 = arith.minimumf %4, %3 : vector<32x128xf32>
    %cst_3 = arith.constant 1.000000e+02 : f32
    %6 = vector.broadcast %cst_3 : f32 to vector<32x128xf32>
    %7 = arith.mulf %5, %6 : vector<32x128xf32>
    %cst_4 = arith.constant 0.000000e+00 : f32
    %8 = vector.broadcast %cst_4 : f32 to vector<32x128xf32>
    %9 = arith.subf %7, %8 : vector<32x128xf32>
    %10 = arith.negf %9 : vector<32x128xf32>
    %11 = math.exp %10 : vector<32x128xf32>
    %cst_5 = arith.constant 1.000000e+00 : f32
    %12 = vector.broadcast %cst_5 : f32 to vector<32x128xf32>
    %13 = arith.addf %12, %11 : vector<32x128xf32>
    %14 = arith.divf %12, %13 : vector<32x128xf32>
    %15 = arith.truncf %14 : vector<32x128xf32> to vector<32x128xbf16>
    %cst_6 = arith.constant 1.000000e+01 : f32
    %16 = vector.broadcast %cst_6 : f32 to vector<32x128xf32>
    %17 = arith.subf %7, %16 : vector<32x128xf32>
    %18 = arith.negf %17 : vector<32x128xf32>
    %19 = math.exp %18 : vector<32x128xf32>
    %cst_7 = arith.constant 1.000000e+00 : f32
    %20 = vector.broadcast %cst_7 : f32 to vector<32x128xf32>
    %21 = arith.addf %20, %19 : vector<32x128xf32>
    %22 = arith.divf %20, %21 : vector<32x128xf32>
    %23 = arith.truncf %22 : vector<32x128xf32> to vector<32x128xbf16>
    %cst_8 = arith.constant 2.000000e+01 : f32
    %24 = vector.broadcast %cst_8 : f32 to vector<32x128xf32>
    %25 = arith.subf %7, %24 : vector<32x128xf32>
    %26 = arith.negf %25 : vector<32x128xf32>
    %27 = math.exp %26 : vector<32x128xf32>
    %cst_9 = arith.constant 1.000000e+00 : f32
    %28 = vector.broadcast %cst_9 : f32 to vector<32x128xf32>
    %29 = arith.addf %28, %27 : vector<32x128xf32>
    %30 = arith.divf %28, %29 : vector<32x128xf32>
    %31 = arith.truncf %30 : vector<32x128xf32> to vector<32x128xbf16>
    %cst_10 = arith.constant 3.000000e+01 : f32
    %32 = vector.broadcast %cst_10 : f32 to vector<32x128xf32>
    %33 = arith.subf %7, %32 : vector<32x128xf32>
    %34 = arith.negf %33 : vector<32x128xf32>
    %35 = math.exp %34 : vector<32x128xf32>
    %cst_11 = arith.constant 1.000000e+00 : f32
    %36 = vector.broadcast %cst_11 : f32 to vector<32x128xf32>
    %37 = arith.addf %36, %35 : vector<32x128xf32>
    %38 = arith.divf %36, %37 : vector<32x128xf32>
    %39 = arith.truncf %38 : vector<32x128xf32> to vector<32x128xbf16>
    %cst_12 = arith.constant 4.000000e+01 : f32
    %40 = vector.broadcast %cst_12 : f32 to vector<32x128xf32>
    %41 = arith.subf %7, %40 : vector<32x128xf32>
    %42 = arith.negf %41 : vector<32x128xf32>
    %43 = math.exp %42 : vector<32x128xf32>
    %cst_13 = arith.constant 1.000000e+00 : f32
    %44 = vector.broadcast %cst_13 : f32 to vector<32x128xf32>
    %45 = arith.addf %44, %43 : vector<32x128xf32>
    %46 = arith.divf %44, %45 : vector<32x128xf32>
    %47 = arith.truncf %46 : vector<32x128xf32> to vector<32x128xbf16>
    %cst_14 = arith.constant 5.000000e+01 : f32
    %48 = vector.broadcast %cst_14 : f32 to vector<32x128xf32>
    %49 = arith.subf %7, %48 : vector<32x128xf32>
    %50 = arith.negf %49 : vector<32x128xf32>
    %51 = math.exp %50 : vector<32x128xf32>
    %cst_15 = arith.constant 1.000000e+00 : f32
    %52 = vector.broadcast %cst_15 : f32 to vector<32x128xf32>
    %53 = arith.addf %52, %51 : vector<32x128xf32>
    %54 = arith.divf %52, %53 : vector<32x128xf32>
    %55 = arith.truncf %54 : vector<32x128xf32> to vector<32x128xbf16>
    %cst_16 = arith.constant 6.000000e+01 : f32
    %56 = vector.broadcast %cst_16 : f32 to vector<32x128xf32>
    %57 = arith.subf %7, %56 : vector<32x128xf32>
    %58 = arith.negf %57 : vector<32x128xf32>
    %59 = math.exp %58 : vector<32x128xf32>
    %cst_17 = arith.constant 1.000000e+00 : f32
    %60 = vector.broadcast %cst_17 : f32 to vector<32x128xf32>
    %61 = arith.addf %60, %59 : vector<32x128xf32>
    %62 = arith.divf %60, %61 : vector<32x128xf32>
    %63 = arith.truncf %62 : vector<32x128xf32> to vector<32x128xbf16>
    %cst_18 = arith.constant 7.000000e+01 : f32
    %64 = vector.broadcast %cst_18 : f32 to vector<32x128xf32>
    %65 = arith.subf %7, %64 : vector<32x128xf32>
    %66 = arith.negf %65 : vector<32x128xf32>
    %67 = math.exp %66 : vector<32x128xf32>
    %cst_19 = arith.constant 1.000000e+00 : f32
    %68 = vector.broadcast %cst_19 : f32 to vector<32x128xf32>
    %69 = arith.addf %68, %67 : vector<32x128xf32>
    %70 = arith.divf %68, %69 : vector<32x128xf32>
    %71 = arith.truncf %70 : vector<32x128xf32> to vector<32x128xbf16>
    %cst_20 = arith.constant 8.000000e+01 : f32
    %72 = vector.broadcast %cst_20 : f32 to vector<32x128xf32>
    %73 = arith.subf %7, %72 : vector<32x128xf32>
    %74 = arith.negf %73 : vector<32x128xf32>
    %75 = math.exp %74 : vector<32x128xf32>
    %cst_21 = arith.constant 1.000000e+00 : f32
    %76 = vector.broadcast %cst_21 : f32 to vector<32x128xf32>
    %77 = arith.addf %76, %75 : vector<32x128xf32>
    %78 = arith.divf %76, %77 : vector<32x128xf32>
    %79 = arith.truncf %78 : vector<32x128xf32> to vector<32x128xbf16>
    %cst_22 = arith.constant 9.000000e+01 : f32
    %80 = vector.broadcast %cst_22 : f32 to vector<32x128xf32>
    %81 = arith.subf %7, %80 : vector<32x128xf32>
    %82 = arith.negf %81 : vector<32x128xf32>
    %83 = math.exp %82 : vector<32x128xf32>
    %cst_23 = arith.constant 1.000000e+00 : f32
    %84 = vector.broadcast %cst_23 : f32 to vector<32x128xf32>
    %85 = arith.addf %84, %83 : vector<32x128xf32>
    %86 = arith.divf %84, %85 : vector<32x128xf32>
    %87 = arith.truncf %86 : vector<32x128xf32> to vector<32x128xbf16>
    %88 = tpu.concatenate %15, %23, %31, %39, %47, %55, %63, %71, %79, %87 in 0 : vector<32x128xbf16>, vector<32x128xbf16>, vector<32x128xbf16>, vector<32x128xbf16>, vector<32x128xbf16>, vector<32x128xbf16>, vector<32x128xbf16>, vector<32x128xbf16>, vector<32x128xbf16>, vector<32x128xbf16> -> vector<320x128xbf16>
    %c0_24 = arith.constant 0 : index
    %c0_25 = arith.constant 0 : index
    %89 = vector.load %arg2[%c0_24, %c0_25] : memref<128x384xbf16, #tpu.memory_space<vmem>>, vector<128x384xbf16>
    %cst_26 = arith.constant dense<0.000000e+00> : vector<320x384xf32>
    %90 = tpu.matmul %88, %89, %cst_26 {dimension_numbers = #tpu.dot_dimension_numbers<[1], [0], [0], [1], [0, 0, 1, 1], [], []>} : vector<320x128xbf16>, vector<128x384xbf16>, vector<320x384xf32> -> vector<320x384xf32>
    %c0_27 = arith.constant 0 : index
    %c0_28 = arith.constant 0 : index
    %91 = vector.load %arg3[%c0_27, %c0_28] : memref<1x384xf32, #tpu.memory_space<vmem>>, vector<1x384xf32>
    %92 = vector.broadcast %91 : vector<1x384xf32> to vector<320x384xf32>
    %93 = arith.addf %90, %92 : vector<320x384xf32>
    %94 = vector.shape_cast %93 : vector<320x384xf32> to vector<10x32x384xf32>
    %95 = arith.truncf %94 : vector<10x32x384xf32> to vector<10x32x384xbf16>
    %c0_29 = arith.constant 0 : index
    %c0_30 = arith.constant 0 : index
    %c0_31 = arith.constant 0 : index
    %96 = vector.load %arg7[%c0_29, %c0_30, %c0_31] : memref<10x32x384xbf16, #tpu.memory_space<vmem>>, vector<10x32x384xbf16>
    tpu.vector_store %arg7[%c0_29, %c0_30, %c0_31], %95 {strides = array<i32>} : memref<10x32x384xbf16, #tpu.memory_space<vmem>>, vector<10x32x384xbf16>,
    %cst_32 = arith.constant 0.000000e+00 : f32
    %97 = vector.broadcast %cst_32 : f32 to vector<32x384xf32>
    %c0_i32 = arith.constant 0 : i32
    %cst_33 = arith.constant 0.899999976 : f32
    %98 = vector.broadcast %cst_33 : f32 to vector<32x384xf32>
    %99 = arith.mulf %98, %97 : vector<32x384xf32>
    %100 = arith.index_cast %c0_i32 : i32 to index
    %c0_34 = arith.constant 0 : index
    %c0_35 = arith.constant 0 : index
    %101 = vector.load %arg7[%100, %c0_34, %c0_35] : memref<10x32x384xbf16, #tpu.memory_space<vmem>>, vector<1x32x384xbf16>
    %102 = vector.shape_cast %101 : vector<1x32x384xbf16> to vector<32x384xbf16>
    %103 = arith.extf %102 : vector<32x384xbf16> to vector<32x384xf32>
    %104 = arith.addf %99, %103 : vector<32x384xf32>
    %cst_36 = arith.constant 1.000000e+00 : f32
    %105 = vector.broadcast %cst_36 : f32 to vector<32x384xf32>
    %106 = arith.cmpf oge, %104, %105 : vector<32x384xf32>
    %107 = arith.extui %106 : vector<32x384xi1> to vector<32x384xi32>
    %108 = arith.sitofp %107 : vector<32x384xi32> to vector<32x384xf32>
    %cst_37 = arith.constant 0.000000e+00 : f32
    %109 = vector.broadcast %cst_37 : f32 to vector<32x384xf32>
    %110 = arith.select %106, %109, %104 : vector<32x384xi1>, vector<32x384xf32>
    %111 = arith.addf %97, %108 : vector<32x384xf32>
    %c1_i32 = arith.constant 1 : i32
    %cst_38 = arith.constant 0.899999976 : f32
    %112 = vector.broadcast %cst_38 : f32 to vector<32x384xf32>
    %113 = arith.mulf %112, %110 : vector<32x384xf32>
    %114 = arith.index_cast %c1_i32 : i32 to index
    %c0_39 = arith.constant 0 : index
    %c0_40 = arith.constant 0 : index
    %115 = vector.load %arg7[%114, %c0_39, %c0_40] : memref<10x32x384xbf16, #tpu.memory_space<vmem>>, vector<1x32x384xbf16>
    %116 = vector.shape_cast %115 : vector<1x32x384xbf16> to vector<32x384xbf16>
    %117 = arith.extf %116 : vector<32x384xbf16> to vector<32x384xf32>
    %118 = arith.addf %113, %117 : vector<32x384xf32>
    %cst_41 = arith.constant 1.000000e+00 : f32
    %119 = vector.broadcast %cst_41 : f32 to vector<32x384xf32>
    %120 = arith.cmpf oge, %118, %119 : vector<32x384xf32>
    %121 = arith.extui %120 : vector<32x384xi1> to vector<32x384xi32>
    %122 = arith.sitofp %121 : vector<32x384xi32> to vector<32x384xf32>
    %cst_42 = arith.constant 0.000000e+00 : f32
    %123 = vector.broadcast %cst_42 : f32 to vector<32x384xf32>
    %124 = arith.select %120, %123, %118 : vector<32x384xi1>, vector<32x384xf32>
    %125 = arith.addf %111, %122 : vector<32x384xf32>
    %c2_i32 = arith.constant 2 : i32
    %cst_43 = arith.constant 0.899999976 : f32
    %126 = vector.broadcast %cst_43 : f32 to vector<32x384xf32>
    %127 = arith.mulf %126, %124 : vector<32x384xf32>
    %128 = arith.index_cast %c2_i32 : i32 to index
    %c0_44 = arith.constant 0 : index
    %c0_45 = arith.constant 0 : index
    %129 = vector.load %arg7[%128, %c0_44, %c0_45] : memref<10x32x384xbf16, #tpu.memory_space<vmem>>, vector<1x32x384xbf16>
    %130 = vector.shape_cast %129 : vector<1x32x384xbf16> to vector<32x384xbf16>
    %131 = arith.extf %130 : vector<32x384xbf16> to vector<32x384xf32>
    %132 = arith.addf %127, %131 : vector<32x384xf32>
    %cst_46 = arith.constant 1.000000e+00 : f32
    %133 = vector.broadcast %cst_46 : f32 to vector<32x384xf32>
    %134 = arith.cmpf oge, %132, %133 : vector<32x384xf32>
    %135 = arith.extui %134 : vector<32x384xi1> to vector<32x384xi32>
    %136 = arith.sitofp %135 : vector<32x384xi32> to vector<32x384xf32>
    %cst_47 = arith.constant 0.000000e+00 : f32
    %137 = vector.broadcast %cst_47 : f32 to vector<32x384xf32>
    %138 = arith.select %134, %137, %132 : vector<32x384xi1>, vector<32x384xf32>
    %139 = arith.addf %125, %136 : vector<32x384xf32>
    %c3_i32 = arith.constant 3 : i32
    %cst_48 = arith.constant 0.899999976 : f32
    %140 = vector.broadcast %cst_48 : f32 to vector<32x384xf32>
    %141 = arith.mulf %140, %138 : vector<32x384xf32>
    %142 = arith.index_cast %c3_i32 : i32 to index
    %c0_49 = arith.constant 0 : index
    %c0_50 = arith.constant 0 : index
    %143 = vector.load %arg7[%142, %c0_49, %c0_50] : memref<10x32x384xbf16, #tpu.memory_space<vmem>>, vector<1x32x384xbf16>
    %144 = vector.shape_cast %143 : vector<1x32x384xbf16> to vector<32x384xbf16>
    %145 = arith.extf %144 : vector<32x384xbf16> to vector<32x384xf32>
    %146 = arith.addf %141, %145 : vector<32x384xf32>
    %cst_51 = arith.constant 1.000000e+00 : f32
    %147 = vector.broadcast %cst_51 : f32 to vector<32x384xf32>
    %148 = arith.cmpf oge, %146, %147 : vector<32x384xf32>
    %149 = arith.extui %148 : vector<32x384xi1> to vector<32x384xi32>
    %150 = arith.sitofp %149 : vector<32x384xi32> to vector<32x384xf32>
    %cst_52 = arith.constant 0.000000e+00 : f32
    %151 = vector.broadcast %cst_52 : f32 to vector<32x384xf32>
    %152 = arith.select %148, %151, %146 : vector<32x384xi1>, vector<32x384xf32>
    %153 = arith.addf %139, %150 : vector<32x384xf32>
    %c4_i32 = arith.constant 4 : i32
    %cst_53 = arith.constant 0.899999976 : f32
    %154 = vector.broadcast %cst_53 : f32 to vector<32x384xf32>
    %155 = arith.mulf %154, %152 : vector<32x384xf32>
    %156 = arith.index_cast %c4_i32 : i32 to index
    %c0_54 = arith.constant 0 : index
    %c0_55 = arith.constant 0 : index
    %157 = vector.load %arg7[%156, %c0_54, %c0_55] : memref<10x32x384xbf16, #tpu.memory_space<vmem>>, vector<1x32x384xbf16>
    %158 = vector.shape_cast %157 : vector<1x32x384xbf16> to vector<32x384xbf16>
    %159 = arith.extf %158 : vector<32x384xbf16> to vector<32x384xf32>
    %160 = arith.addf %155, %159 : vector<32x384xf32>
    %cst_56 = arith.constant 1.000000e+00 : f32
    %161 = vector.broadcast %cst_56 : f32 to vector<32x384xf32>
    %162 = arith.cmpf oge, %160, %161 : vector<32x384xf32>
    %163 = arith.extui %162 : vector<32x384xi1> to vector<32x384xi32>
    %164 = arith.sitofp %163 : vector<32x384xi32> to vector<32x384xf32>
    %cst_57 = arith.constant 0.000000e+00 : f32
    %165 = vector.broadcast %cst_57 : f32 to vector<32x384xf32>
    %166 = arith.select %162, %165, %160 : vector<32x384xi1>, vector<32x384xf32>
    %167 = arith.addf %153, %164 : vector<32x384xf32>
    %c5_i32 = arith.constant 5 : i32
    %cst_58 = arith.constant 0.899999976 : f32
    %168 = vector.broadcast %cst_58 : f32 to vector<32x384xf32>
    %169 = arith.mulf %168, %166 : vector<32x384xf32>
    %170 = arith.index_cast %c5_i32 : i32 to index
    %c0_59 = arith.constant 0 : index
    %c0_60 = arith.constant 0 : index
    %171 = vector.load %arg7[%170, %c0_59, %c0_60] : memref<10x32x384xbf16, #tpu.memory_space<vmem>>, vector<1x32x384xbf16>
    %172 = vector.shape_cast %171 : vector<1x32x384xbf16> to vector<32x384xbf16>
    %173 = arith.extf %172 : vector<32x384xbf16> to vector<32x384xf32>
    %174 = arith.addf %169, %173 : vector<32x384xf32>
    %cst_61 = arith.constant 1.000000e+00 : f32
    %175 = vector.broadcast %cst_61 : f32 to vector<32x384xf32>
    %176 = arith.cmpf oge, %174, %175 : vector<32x384xf32>
    %177 = arith.extui %176 : vector<32x384xi1> to vector<32x384xi32>
    %178 = arith.sitofp %177 : vector<32x384xi32> to vector<32x384xf32>
    %cst_62 = arith.constant 0.000000e+00 : f32
    %179 = vector.broadcast %cst_62 : f32 to vector<32x384xf32>
    %180 = arith.select %176, %179, %174 : vector<32x384xi1>, vector<32x384xf32>
    %181 = arith.addf %167, %178 : vector<32x384xf32>
    %c6_i32 = arith.constant 6 : i32
    %cst_63 = arith.constant 0.899999976 : f32
    %182 = vector.broadcast %cst_63 : f32 to vector<32x384xf32>
    %183 = arith.mulf %182, %180 : vector<32x384xf32>
    %184 = arith.index_cast %c6_i32 : i32 to index
    %c0_64 = arith.constant 0 : index
    %c0_65 = arith.constant 0 : index
    %185 = vector.load %arg7[%184, %c0_64, %c0_65] : memref<10x32x384xbf16, #tpu.memory_space<vmem>>, vector<1x32x384xbf16>
    %186 = vector.shape_cast %185 : vector<1x32x384xbf16> to vector<32x384xbf16>
    %187 = arith.extf %186 : vector<32x384xbf16> to vector<32x384xf32>
    %188 = arith.addf %183, %187 : vector<32x384xf32>
    %cst_66 = arith.constant 1.000000e+00 : f32
    %189 = vector.broadcast %cst_66 : f32 to vector<32x384xf32>
    %190 = arith.cmpf oge, %188, %189 : vector<32x384xf32>
    %191 = arith.extui %190 : vector<32x384xi1> to vector<32x384xi32>
    %192 = arith.sitofp %191 : vector<32x384xi32> to vector<32x384xf32>
    %cst_67 = arith.constant 0.000000e+00 : f32
    %193 = vector.broadcast %cst_67 : f32 to vector<32x384xf32>
    %194 = arith.select %190, %193, %188 : vector<32x384xi1>, vector<32x384xf32>
    %195 = arith.addf %181, %192 : vector<32x384xf32>
    %c7_i32 = arith.constant 7 : i32
    %cst_68 = arith.constant 0.899999976 : f32
    %196 = vector.broadcast %cst_68 : f32 to vector<32x384xf32>
    %197 = arith.mulf %196, %194 : vector<32x384xf32>
    %198 = arith.index_cast %c7_i32 : i32 to index
    %c0_69 = arith.constant 0 : index
    %c0_70 = arith.constant 0 : index
    %199 = vector.load %arg7[%198, %c0_69, %c0_70] : memref<10x32x384xbf16, #tpu.memory_space<vmem>>, vector<1x32x384xbf16>
    %200 = vector.shape_cast %199 : vector<1x32x384xbf16> to vector<32x384xbf16>
    %201 = arith.extf %200 : vector<32x384xbf16> to vector<32x384xf32>
    %202 = arith.addf %197, %201 : vector<32x384xf32>
    %cst_71 = arith.constant 1.000000e+00 : f32
    %203 = vector.broadcast %cst_71 : f32 to vector<32x384xf32>
    %204 = arith.cmpf oge, %202, %203 : vector<32x384xf32>
    %205 = arith.extui %204 : vector<32x384xi1> to vector<32x384xi32>
    %206 = arith.sitofp %205 : vector<32x384xi32> to vector<32x384xf32>
    %cst_72 = arith.constant 0.000000e+00 : f32
    %207 = vector.broadcast %cst_72 : f32 to vector<32x384xf32>
    %208 = arith.select %204, %207, %202 : vector<32x384xi1>, vector<32x384xf32>
    %209 = arith.addf %195, %206 : vector<32x384xf32>
    %c8_i32 = arith.constant 8 : i32
    %cst_73 = arith.constant 0.899999976 : f32
    %210 = vector.broadcast %cst_73 : f32 to vector<32x384xf32>
    %211 = arith.mulf %210, %208 : vector<32x384xf32>
    %212 = arith.index_cast %c8_i32 : i32 to index
    %c0_74 = arith.constant 0 : index
    %c0_75 = arith.constant 0 : index
    %213 = vector.load %arg7[%212, %c0_74, %c0_75] : memref<10x32x384xbf16, #tpu.memory_space<vmem>>, vector<1x32x384xbf16>
    %214 = vector.shape_cast %213 : vector<1x32x384xbf16> to vector<32x384xbf16>
    %215 = arith.extf %214 : vector<32x384xbf16> to vector<32x384xf32>
    %216 = arith.addf %211, %215 : vector<32x384xf32>
    %cst_76 = arith.constant 1.000000e+00 : f32
    %217 = vector.broadcast %cst_76 : f32 to vector<32x384xf32>
    %218 = arith.cmpf oge, %216, %217 : vector<32x384xf32>
    %219 = arith.extui %218 : vector<32x384xi1> to vector<32x384xi32>
    %220 = arith.sitofp %219 : vector<32x384xi32> to vector<32x384xf32>
    %cst_77 = arith.constant 0.000000e+00 : f32
    %221 = vector.broadcast %cst_77 : f32 to vector<32x384xf32>
    %222 = arith.select %218, %221, %216 : vector<32x384xi1>, vector<32x384xf32>
    %223 = arith.addf %209, %220 : vector<32x384xf32>
    %c9_i32 = arith.constant 9 : i32
    %cst_78 = arith.constant 0.899999976 : f32
    %224 = vector.broadcast %cst_78 : f32 to vector<32x384xf32>
    %225 = arith.mulf %224, %222 : vector<32x384xf32>
    %226 = arith.index_cast %c9_i32 : i32 to index
    %c0_79 = arith.constant 0 : index
    %c0_80 = arith.constant 0 : index
    %227 = vector.load %arg7[%226, %c0_79, %c0_80] : memref<10x32x384xbf16, #tpu.memory_space<vmem>>, vector<1x32x384xbf16>
    %228 = vector.shape_cast %227 : vector<1x32x384xbf16> to vector<32x384xbf16>
    %229 = arith.extf %228 : vector<32x384xbf16> to vector<32x384xf32>
    %230 = arith.addf %225, %229 : vector<32x384xf32>
    %cst_81 = arith.constant 1.000000e+00 : f32
    %231 = vector.broadcast %cst_81 : f32 to vector<32x384xf32>
    %232 = arith.cmpf oge, %230, %231 : vector<32x384xf32>
    %233 = arith.extui %232 : vector<32x384xi1> to vector<32x384xi32>
    %234 = arith.sitofp %233 : vector<32x384xi32> to vector<32x384xf32>
    %cst_82 = arith.constant 0.000000e+00 : f32
    %235 = vector.broadcast %cst_82 : f32 to vector<32x384xf32>
    %236 = arith.select %232, %235, %230 : vector<32x384xi1>, vector<32x384xf32>
    %237 = arith.addf %223, %234 : vector<32x384xf32>
    %c10_i32 = arith.constant 10 : i32
    %238 = vector.extract_strided_slice %237 {offsets = [0, 0], sizes = [32, 128], strides = [1, 1]} : vector<32x384xf32> to vector<32x128xf32>
    %239 = vector.shape_cast %238 : vector<32x128xf32> to vector<32x2x64xf32>
    %240 = tpu.transpose %239, [1, 0, 2] : vector<32x2x64xf32> -> vector<2x32x64xf32>
    %241 = vector.shape_cast %240 : vector<2x32x64xf32> to vector<4x16x64xf32>
    %242 = arith.truncf %241 : vector<4x16x64xf32> to vector<4x16x64xbf16>
    %243 = vector.extract_strided_slice %237 {offsets = [0, 128], sizes = [32, 128], strides = [1, 1]} : vector<32x384xf32> to vector<32x128xf32>
    %244 = vector.shape_cast %243 : vector<32x128xf32> to vector<32x2x64xf32>
    %245 = tpu.transpose %244, [1, 0, 2] : vector<32x2x64xf32> -> vector<2x32x64xf32>
    %246 = vector.shape_cast %245 : vector<2x32x64xf32> to vector<4x16x64xf32>
    %247 = arith.truncf %246 : vector<4x16x64xf32> to vector<4x16x64xbf16>
    %248 = vector.extract_strided_slice %237 {offsets = [0, 256], sizes = [32, 128], strides = [1, 1]} : vector<32x384xf32> to vector<32x128xf32>
    %249 = vector.shape_cast %248 : vector<32x128xf32> to vector<32x2x64xf32>
    %250 = tpu.transpose %249, [1, 0, 2] : vector<32x2x64xf32> -> vector<2x32x64xf32>
    %251 = vector.shape_cast %250 : vector<2x32x64xf32> to vector<4x16x64xf32>
    %252 = arith.truncf %251 : vector<4x16x64xf32> to vector<4x16x64xbf16>
    "tpu.trace_start"() <{level = 10 : i32, message = "bqd,bkd->bqk"}> : () -> ()
    %cst_83 = arith.constant dense<0.000000e+00> : vector<4x16x16xf32>
    %253 = tpu.matmul %242, %247, %cst_83 {dimension_numbers = #tpu.dot_dimension_numbers<[2], [2], [1], [1], [0, 0, 0, 1, 1, 1], [0], [0]>} : vector<4x16x64xbf16>, vector<4x16x64xbf16>, vector<4x16x16xf32> -> vector<4x16x16xf32>
    "tpu.trace_stop"() : () -> ()
    %cst_84 = arith.constant 1.250000e-01 : f32
    %254 = vector.broadcast %cst_84 : f32 to vector<4x16x16xf32>
    %255 = arith.mulf %253, %254 : vector<4x16x16xf32>
    %cst_85 = arith.constant dense<0xFF800000> : vector<4x16xf32>
    %256 = vector.multi_reduction <maximumf>, %255, %cst_85 [2] : vector<4x16x16xf32> to vector<4x16xf32>
    %257 = vector.shape_cast %256 : vector<4x16xf32> to vector<4x16x1xf32>
    %258 = vector.broadcast %257 : vector<4x16x1xf32> to vector<4x16x16xf32>
    %259 = arith.subf %255, %258 : vector<4x16x16xf32>
    %260 = math.exp %259 : vector<4x16x16xf32>
    %cst_86 = arith.constant dense<0.000000e+00> : vector<4x16xf32>
    %261 = vector.multi_reduction <add>, %260, %cst_86 [2] : vector<4x16x16xf32> to vector<4x16xf32>
    %262 = vector.shape_cast %261 : vector<4x16xf32> to vector<4x16x1xf32>
    %263 = tpu.reciprocal %262 {approx = true} : vector<4x16x1xf32> -> vector<4x16x1xf32>
    %264 = vector.broadcast %263 : vector<4x16x1xf32> to vector<4x16x16xf32>
    %265 = arith.mulf %260, %264 : vector<4x16x16xf32>
    %266 = arith.truncf %265 : vector<4x16x16xf32> to vector<4x16x16xbf16>
    "tpu.trace_start"() <{level = 10 : i32, message = "bqk,bkd->bqd"}> : () -> ()
    %cst_87 = arith.constant dense<0.000000e+00> : vector<4x16x64xf32>
    %267 = tpu.matmul %266, %252, %cst_87 {dimension_numbers = #tpu.dot_dimension_numbers<[2], [1], [1], [2], [0, 0, 0, 1, 1, 2], [0], [0]>} : vector<4x16x16xbf16>, vector<4x16x64xbf16>, vector<4x16x64xf32> -> vector<4x16x64xf32>
    "tpu.trace_stop"() : () -> ()
    %268 = vector.shape_cast %267 : vector<4x16x64xf32> to vector<2x32x64xf32>
    %269 = arith.truncf %268 : vector<2x32x64xf32> to vector<2x32x64xbf16>
    %c0_88 = arith.constant 0 : index
    %c0_89 = arith.constant 0 : index
    %270 = vector.load %arg4[%c0_88, %c0_89] : memref<128x128xbf16, #tpu.memory_space<vmem>>, vector<128x128xbf16>
    %271 = vector.shape_cast %270 : vector<128x128xbf16> to vector<2x64x128xbf16>
    "tpu.trace_start"() <{level = 10 : i32, message = "hrd,hde->hre"}> : () -> ()
    %cst_90 = arith.constant dense<0.000000e+00> : vector<2x32x128xf32>
    %272 = tpu.matmul %269, %271, %cst_90 {dimension_numbers = #tpu.dot_dimension_numbers<[2], [1], [1], [2], [0, 0, 0, 1, 1, 2], [0], [0]>} : vector<2x32x64xbf16>, vector<2x64x128xbf16>, vector<2x32x128xf32> -> vector<2x32x128xf32>
    "tpu.trace_stop"() : () -> ()
    %cst_91 = arith.constant dense<0.000000e+00> : vector<32x128xf32>
    %273 = vector.multi_reduction <add>, %272, %cst_91 [0] : vector<2x32x128xf32> to vector<32x128xf32>
    %c0_92 = arith.constant 0 : index
    %c0_93 = arith.constant 0 : index
    %274 = vector.load %arg5[%c0_92, %c0_93] : memref<1x128xf32, #tpu.memory_space<vmem>>, vector<1x128xf32>
    %275 = vector.broadcast %274 : vector<1x128xf32> to vector<32x128xf32>
    %276 = arith.addf %273, %275 : vector<32x128xf32>
    %cst_94 = arith.constant 1.000000e+00 : f32
    %277 = vector.broadcast %cst_94 : f32 to vector<32x128xf32>
    %278 = arith.cmpf oge, %276, %277 : vector<32x128xf32>
    %279 = arith.extui %278 : vector<32x128xi1> to vector<32x128xi32>
    %280 = arith.sitofp %279 : vector<32x128xi32> to vector<32x128xf32>
    %281 = vector.shape_cast %280 : vector<32x128xf32> to vector<2x16x128xf32>
    %c0_95 = arith.constant 0 : index
    %c0_96 = arith.constant 0 : index
    %c0_97 = arith.constant 0 : index
    %282 = vector.load %arg6[%c0_95, %c0_96, %c0_97] : memref<2x16x128xf32, #tpu.memory_space<vmem>>, vector<2x16x128xf32>
    tpu.vector_store %arg6[%c0_95, %c0_96, %c0_97], %281 {strides = array<i32>} : memref<2x16x128xf32, #tpu.memory_space<vmem>>, vector<2x16x128xf32>,
    return
  }
  func.func @transform_0(%arg0: i32) -> (i32, i32, i32) {
    %c0_i32 = arith.constant 0 : i32
    %c0_i32_0 = arith.constant 0 : i32
    %c0_i32_1 = arith.constant 0 : i32
    return %arg0, %c0_i32, %c0_i32_0 : i32, i32, i32
  }
  func.func @transform_1(%arg0: i32) -> (i32, i32) {
    %c0_i32 = arith.constant 0 : i32
    %c0_i32_0 = arith.constant 0 : i32
    %c0_i32_1 = arith.constant 0 : i32
    return %c0_i32, %c0_i32_0 : i32, i32
  }
  func.func @transform_2(%arg0: i32) -> (i32, i32) {
    %c0_i32 = arith.constant 0 : i32
    %c0_i32_0 = arith.constant 0 : i32
    %c0_i32_1 = arith.constant 0 : i32
    return %c0_i32, %c0_i32_0 : i32, i32
  }
  func.func @transform_3(%arg0: i32) -> (i32, i32) {
    %c0_i32 = arith.constant 0 : i32
    %c0_i32_0 = arith.constant 0 : i32
    %c0_i32_1 = arith.constant 0 : i32
    return %c0_i32, %c0_i32_0 : i32, i32
  }
  func.func @transform_4(%arg0: i32) -> (i32, i32) {
    %c0_i32 = arith.constant 0 : i32
    %c0_i32_0 = arith.constant 0 : i32
    %c0_i32_1 = arith.constant 0 : i32
    return %c0_i32, %c0_i32_0 : i32, i32
  }
  func.func @transform_5(%arg0: i32) -> (i32, i32, i32) {
    %c0_i32 = arith.constant 0 : i32
    %c0_i32_0 = arith.constant 0 : i32
    %c0_i32_1 = arith.constant 0 : i32
    return %arg0, %c0_i32, %c0_i32_0 : i32, i32, i32
  }
}

</mosaic_0001>

<llo_original>
// kernel: tpu_custom_call.1
$region0: #{tpu_custom_call.1}
  #allocation0 [shape = 'u32[]', space=smem, size = 0x4, offset = 0x4, fixed_abs, tag = 'smem constant byte address 0x4 - core index']
  #allocation1 [shape = 'u32[72,128]{1,0:T(1,128)}', space=vmem, size = 0x9000, scoped, tag = 'internal scratch']
  #allocation2 [shape = 'bf16[10,32,384]{2,1,0:T(8,128)(2,1)}', space=vmem, size = 0x3c000, scoped, tag = 'scratch operand']
  %s0 = inlined_call_operand.hbm [shape: f32[2,16,128], index: 0, kind: input, shape index: {}]
  %s1 = inlined_call_operand.hbm [shape: bf16[128,384], index: 1, kind: input, shape index: {}]
  %s2 = inlined_call_operand.hbm [shape: f32[1,384], index: 2, kind: input, shape index: {}]
  %s3 = inlined_call_operand.hbm [shape: bf16[128,128], index: 3, kind: input, shape index: {}]
  %s4 = inlined_call_operand.vmem [shape: f32[1,128], index: 4, kind: input, shape index: {}]
  %s5 = inlined_call_operand.hbm [shape: f32[2,16,128], index: 5, kind: output, shape index: {}]
  %s6 = sld [smem:[#allocation0]]
  $region46: #{tpu_custom_call.1} parent=0
    _
  %s8 = ssub.s32 1, %s6
  %s9 = scalar_select 0, %s8, %s6
  $region1: #{tpu_custom_call.1} parent=0
    #allocation3 [shape = 'u8[16384]{0}', space=vmem, size = 0x4000, scoped, tag = 'input window, operand 0, single buffered']
    #allocation4 [shape = 's32[1]{0}', space=sflag, size = 0x4, scoped, tag = 'scoped memory for tpu_custom_call.1']
    #allocation5 [shape = 's32[1]{0}', space=sflag, size = 0x4, scoped, tag = 'scoped memory for tpu_custom_call.1']
    #allocation6 [shape = 'u8[98304]{0}', space=vmem, size = 0x18000, scoped, tag = 'input window, operand 1, single buffered']
    #allocation7 [shape = 's32[1]{0}', space=sflag, size = 0x4, scoped, tag = 'scoped memory for tpu_custom_call.1']
    #allocation8 [shape = 'u8[1536]{0}', space=vmem, size = 0x800, scoped, tag = 'input window, operand 2, single buffered']
    #allocation9 [shape = 'u8[32768]{0}', space=vmem, size = 0x8000, scoped, tag = 'input window, operand 3, single buffered']
    #allocation10 [shape = 's32[1]{0}', space=sflag, size = 0x4, scoped, tag = 'scoped memory for tpu_custom_call.1']
    #allocation11 [shape = 'u8[16384]{0}', space=vmem, size = 0x4000, scoped, tag = 'output window, operand 0, single buffered']
    %10 = vsyncpa [#allocation4], 0
    %11 = vsyncpa [#allocation7], 0
    %12 = vsyncpa [#allocation10], 0
    %13 = vsyncpa [#allocation5], 0
    // Predicated region
    $region2: #{tpu_custom_call.1} parent=1 // pred_check
      _
    $region3: #{tpu_custom_call.1} parent=1 // pred_check_branch
      %15 = sbr.rel (0) target = $region5
    $region4: #{tpu_custom_call.1} parent=1 // pred_region
      %17 = vsyncadd [#allocation4], 0
      %s18 = sshll.u32 %s0, 4
      %s19 = int_to_ptr.hbm [resolvable:$true] %s18
      %s20 = sshll.u32 [#allocation3], 4
      %s21 = int_to_ptr.vmem [resolvable:$true] %s20
      %26 = dma.hbm_to_vmem [thread:$0]  %s19, 512, %s21, [#allocation4], 128, 128, 8
    $region5: #{tpu_custom_call.1} parent=1 // pred_fallthru
      _
    // Predicated region
    $region6: #{tpu_custom_call.1} parent=1 // pred_check
      _
    $region7: #{tpu_custom_call.1} parent=1 // pred_check_branch
      %28 = sbr.rel (0) target = $region9
    $region8: #{tpu_custom_call.1} parent=1 // pred_region
      %30 = vsyncadd [#allocation7], 0
      %s31 = sshll.u32 %s1, 4
      %s32 = int_to_ptr.hbm [resolvable:$true] %s31
      %s33 = sshll.u32 [#allocation6], 4
      %s34 = int_to_ptr.vmem [resolvable:$true] %s33
      %39 = dma.hbm_to_vmem [thread:$0]  %s32, 3072, %s34, [#allocation7], 192, 192, 12
    $region9: #{tpu_custom_call.1} parent=1 // pred_fallthru
      _
    // Predicated region
    $region10: #{tpu_custom_call.1} parent=1 // pred_check
      _
    $region11: #{tpu_custom_call.1} parent=1 // pred_check_branch
      %41 = sbr.rel (0) target = $region13
    $region12: #{tpu_custom_call.1} parent=1 // pred_region
      %43 = vsyncadd [#allocation7], 0
      %s45 = sshll.u32 %s2, 4
      %s46 = int_to_ptr.hbm [resolvable:$true] %s45
      %s47 = sshll.u32 [#allocation8], 4
      %s48 = int_to_ptr.vmem [resolvable:$true] %s47
      %50 = dma.hbm_to_vmem [thread:$0]  %s46, 48, %s48, [#allocation7]
    $region13: #{tpu_custom_call.1} parent=1 // pred_fallthru
      _
    // Predicated region
    $region14: #{tpu_custom_call.1} parent=1 // pred_check
      _
    $region15: #{tpu_custom_call.1} parent=1 // pred_check_branch
      %52 = sbr.rel (0) target = $region17
    $region16: #{tpu_custom_call.1} parent=1 // pred_region
      %54 = vsyncadd [#allocation10], 0
      %s55 = sshll.u32 %s3, 4
      %s56 = int_to_ptr.hbm [resolvable:$true] %s55
      %s57 = sshll.u32 [#allocation9], 4
      %s58 = int_to_ptr.vmem [resolvable:$true] %s57
      %63 = dma.hbm_to_vmem [thread:$0]  %s56, 1024, %s58, [#allocation10], 64, 64, 4
    $region17: #{tpu_custom_call.1} parent=1 // pred_fallthru
      _
    // Predicated region
    $region18: #{tpu_custom_call.1} parent=1 // pred_check
      _
    $region19: #{tpu_custom_call.1} parent=1 // pred_check_branch
      %65 = sbr.rel (0) target = $region21
    $region20: #{tpu_custom_call.1} parent=1 // pred_region
      _
    $region21: #{tpu_custom_call.1} parent=1 // pred_fallthru
      _
    // Predicated region
    $region22: #{tpu_custom_call.1} parent=1 // pred_check
      _
    $region23: #{tpu_custom_call.1} parent=1 // pred_check_branch
      %67 = sbr.rel (0) target = $region25
    $region24: #{tpu_custom_call.1} parent=1 // pred_region
      %69 = dma.done [#allocation4], 512
    $region25: #{tpu_custom_call.1} parent=1 // pred_fallthru
      _
    // Predicated region
    $region26: #{tpu_custom_call.1} parent=1 // pred_check
      _
    $region27: #{tpu_custom_call.1} parent=1 // pred_check_branch
      %71 = sbr.rel (0) target = $region29
    $region28: #{tpu_custom_call.1} parent=1 // pred_region
      %73 = dma.done [#allocation7], 3072
    $region29: #{tpu_custom_call.1} parent=1 // pred_fallthru
      _
    // Predicated region
    $region30: #{tpu_custom_call.1} parent=1 // pred_check
      _
    $region31: #{tpu_custom_call.1} parent=1 // pred_check_branch
      %75 = sbr.rel (0) target = $region33
    $region32: #{tpu_custom_call.1} parent=1 // pred_region
      %77 = dma.done [#allocation7], 48
    $region33: #{tpu_custom_call.1} parent=1 // pred_fallthru
      _
    // Predicated region
    $region34: #{tpu_custom_call.1} parent=1 // pred_check
      _
    $region35: #{tpu_custom_call.1} parent=1 // pred_check_branch
      %79 = sbr.rel (0) target = $region37
    $region36: #{tpu_custom_call.1} parent=1 // pred_region
      %81 = dma.done [#allocation10], 1024
    $region37: #{tpu_custom_call.1} parent=1 // pred_fallthru
      _
    %v83 = vld [vmem:[#allocation3] sm:$0xff]
    %v84 = vld [vmem:[#allocation3 + $0x8] sm:$0xff]
    %v85 = vld [vmem:[#allocation3 + $0x10] sm:$0xff]
    %v86 = vld [vmem:[#allocation3 + $0x18] sm:$0xff]
    %v87 = vmax.f32 %v83, 0.0
    %v88 = vmax.f32 %v84, 0.0
    %v89 = vmax.f32 %v85, 0.0
    %v90 = vmax.f32 %v86, 0.0
    %v91 = vmin.f32 %v87, 1.0
    %v92 = vmin.f32 %v88, 1.0
    %v93 = vmin.f32 %v89, 1.0
    %v94 = vmin.f32 %v90, 1.0
    %v95 = vmul.f32 %v91, 100.0
    %v96 = vmul.f32 %v92, 100.0
    %v97 = vmul.f32 %v93, 100.0
    %v98 = vmul.f32 %v94, 100.0
    %v99 = vxor.u32 %v95, 2147483648
    %v100 = vxor.u32 %v96, 2147483648
    %v101 = vxor.u32 %v97, 2147483648
    %v102 = vxor.u32 %v98, 2147483648
    %v103 = vmul.f32 %v99, 1.442695
    %v104 = vpow.pop %v103
    %v105 = vmul.f32 %v100, 1.442695
    %v106 = vpow.pop %v105
    %v107 = vmul.f32 %v101, 1.442695
    %v108 = vpow.pop %v107
    %v109 = vmul.f32 %v102, 1.442695
    %v110 = vpow.pop %v109
    %v111 = vadd.f32 %v104, 1.0
    %v112 = vadd.f32 %v106, 1.0
    %v113 = vadd.f32 %v108, 1.0
    %v114 = vadd.f32 %v110, 1.0
    %v115 = vrcp.pop %v111
    %v116 = vmul.f32 %v111, %v115
    %v117 = vsub.f32 1.0, %v116
    %v118 = vmul.f32 %v115, %v117
    %v119 = vadd.f32 %v115, %v118
    %vm120 = vweird.f32 %v111
    %vm121 = vweird.f32 %v115
    %vm122 = vmor %vm120, %vm121
    %v123 = vsel %vm122, %v115, %v119
    %v124 = vand.u32 2147483647, %v111
    %vm125 = vcmp.eq.f32.partialorder %v124, 8.507059e+37
    %v126 = vand.u32 %v111, 2147483648
    %v127 = vor.u32 1.1754944e-38, %v126
    %v128 = vsel %vm125, %v127, %v123
    %v129 = vmul.f32 1.0, %v128
    %v130 = vrcp.pop %v112
    %v131 = vmul.f32 %v112, %v130
    %v132 = vsub.f32 1.0, %v131
    %v133 = vmul.f32 %v130, %v132
    %v134 = vadd.f32 %v130, %v133
    %vm135 = vweird.f32 %v112
    %vm136 = vweird.f32 %v130
    %vm137 = vmor %vm135, %vm136
    %v138 = vsel %vm137, %v130, %v134
    %v139 = vand.u32 2147483647, %v112
    %vm140 = vcmp.eq.f32.partialorder %v139, 8.507059e+37
    %v141 = vand.u32 %v112, 2147483648
    %v142 = vor.u32 1.1754944e-38, %v141
    %v143 = vsel %vm140, %v142, %v138
    %v144 = vmul.f32 1.0, %v143
    %v145 = vrcp.pop %v113
    %v146 = vmul.f32 %v113, %v145
    %v147 = vsub.f32 1.0, %v146
    %v148 = vmul.f32 %v145, %v147
    %v149 = vadd.f32 %v145, %v148
    %vm150 = vweird.f32 %v113
    %vm151 = vweird.f32 %v145
    %vm152 = vmor %vm150, %vm151
    %v153 = vsel %vm152, %v145, %v149
    %v154 = vand.u32 2147483647, %v113
    %vm155 = vcmp.eq.f32.partialorder %v154, 8.507059e+37
    %v156 = vand.u32 %v113, 2147483648
    %v157 = vor.u32 1.1754944e-38, %v156
    %v158 = vsel %vm155, %v157, %v153
    %v159 = vmul.f32 1.0, %v158
    %v160 = vrcp.pop %v114
    %v161 = vmul.f32 %v114, %v160
    %v162 = vsub.f32 1.0, %v161
    %v163 = vmul.f32 %v160, %v162
    %v164 = vadd.f32 %v160, %v163
    %vm165 = vweird.f32 %v114
    %vm166 = vweird.f32 %v160
    %vm167 = vmor %vm165, %vm166
    %v168 = vsel %vm167, %v160, %v164
    %v169 = vand.u32 2147483647, %v114
    %vm170 = vcmp.eq.f32.partialorder %v169, 8.507059e+37
    %v171 = vand.u32 %v114, 2147483648
    %v172 = vor.u32 1.1754944e-38, %v171
    %v173 = vsel %vm170, %v172, %v168
    %v174 = vmul.f32 1.0, %v173
    %v175 = vpack.c.bf16 %v129, %v129
    %v176 = vpack.c.bf16 %v144, %v144
    %v177 = vpack.c.bf16 %v159, %v159
    %v178 = vpack.c.bf16 %v174, %v174
    %v179 = vsub.f32 %v95, 10.0
    %v180 = vsub.f32 %v96, 10.0
    %v181 = vsub.f32 %v97, 10.0
    %v182 = vsub.f32 %v98, 10.0
    %v183 = vxor.u32 %v179, 2147483648
    %v184 = vxor.u32 %v180, 2147483648
    %v185 = vxor.u32 %v181, 2147483648
    %v186 = vxor.u32 %v182, 2147483648
    %v187 = vmul.f32 %v183, 1.442695
    %v188 = vpow.pop %v187
    %v189 = vmul.f32 %v184, 1.442695
    %v190 = vpow.pop %v189
    %v191 = vmul.f32 %v185, 1.442695
    %v192 = vpow.pop %v191
    %v193 = vmul.f32 %v186, 1.442695
    %v194 = vpow.pop %v193
    %v195 = vadd.f32 %v188, 1.0
    %v196 = vadd.f32 %v190, 1.0
    %v197 = vadd.f32 %v192, 1.0
    %v198 = vadd.f32 %v194, 1.0
    %v199 = vrcp.pop %v195
    %v200 = vmul.f32 %v195, %v199
    %v201 = vsub.f32 1.0, %v200
    %v202 = vmul.f32 %v199, %v201
    %v203 = vadd.f32 %v199, %v202
    %vm204 = vweird.f32 %v195
    %vm205 = vweird.f32 %v199
    %vm206 = vmor %vm204, %vm205
    %v207 = vsel %vm206, %v199, %v203
    %v208 = vand.u32 2147483647, %v195
    %vm209 = vcmp.eq.f32.partialorder %v208, 8.507059e+37
    %v210 = vand.u32 %v195, 2147483648
    %v211 = vor.u32 1.1754944e-38, %v210
    %v212 = vsel %vm209, %v211, %v207
    %v213 = vmul.f32 1.0, %v212
    %v214 = vrcp.pop %v196
    %v215 = vmul.f32 %v196, %v214
    %v216 = vsub.f32 1.0, %v215
    %v217 = vmul.f32 %v214, %v216
    %v218 = vadd.f32 %v214, %v217
    %vm219 = vweird.f32 %v196
    %vm220 = vweird.f32 %v214
    %vm221 = vmor %vm219, %vm220
    %v222 = vsel %vm221, %v214, %v218
    %v223 = vand.u32 2147483647, %v196
    %vm224 = vcmp.eq.f32.partialorder %v223, 8.507059e+37
    %v225 = vand.u32 %v196, 2147483648
    %v226 = vor.u32 1.1754944e-38, %v225
    %v227 = vsel %vm224, %v226, %v222
    %v228 = vmul.f32 1.0, %v227
    %v229 = vrcp.pop %v197
    %v230 = vmul.f32 %v197, %v229
    %v231 = vsub.f32 1.0, %v230
    %v232 = vmul.f32 %v229, %v231
    %v233 = vadd.f32 %v229, %v232
    %vm234 = vweird.f32 %v197
    %vm235 = vweird.f32 %v229
    %vm236 = vmor %vm234, %vm235
    %v237 = vsel %vm236, %v229, %v233
    %v238 = vand.u32 2147483647, %v197
    %vm239 = vcmp.eq.f32.partialorder %v238, 8.507059e+37
    %v240 = vand.u32 %v197, 2147483648
    %v241 = vor.u32 1.1754944e-38, %v240
    %v242 = vsel %vm239, %v241, %v237
    %v243 = vmul.f32 1.0, %v242
    %v244 = vrcp.pop %v198
    %v245 = vmul.f32 %v198, %v244
    %v246 = vsub.f32 1.0, %v245
    %v247 = vmul.f32 %v244, %v246
    %v248 = vadd.f32 %v244, %v247
    %vm249 = vweird.f32 %v198
    %vm250 = vweird.f32 %v244
    %vm251 = vmor %vm249, %vm250
    %v252 = vsel %vm251, %v244, %v248
    %v253 = vand.u32 2147483647, %v198
    %vm254 = vcmp.eq.f32.partialorder %v253, 8.507059e+37
    %v255 = vand.u32 %v198, 2147483648
    %v256 = vor.u32 1.1754944e-38, %v255
    %v257 = vsel %vm254, %v256, %v252
    %v258 = vmul.f32 1.0, %v257
    %v259 = vpack.c.bf16 %v213, %v213
    %v260 = vpack.c.bf16 %v228, %v228
    %v261 = vpack.c.bf16 %v243, %v243
    %v262 = vpack.c.bf16 %v258, %v258
    %v263 = vsub.f32 %v95, 20.0
    %v264 = vsub.f32 %v96, 20.0
    %v265 = vsub.f32 %v97, 20.0
    %v266 = vsub.f32 %v98, 20.0
    %v267 = vxor.u32 %v263, 2147483648
    %v268 = vxor.u32 %v264, 2147483648
    %v269 = vxor.u32 %v265, 2147483648
    %v270 = vxor.u32 %v266, 2147483648
    %v271 = vmul.f32 %v267, 1.442695
    %v272 = vpow.pop %v271
    %v273 = vmul.f32 %v268, 1.442695
    %v274 = vpow.pop %v273
    %v275 = vmul.f32 %v269, 1.442695
    %v276 = vpow.pop %v275
    %v277 = vmul.f32 %v270, 1.442695
    %v278 = vpow.pop %v277
    %v279 = vadd.f32 %v272, 1.0
    %v280 = vadd.f32 %v274, 1.0
    %v281 = vadd.f32 %v276, 1.0
    %v282 = vadd.f32 %v278, 1.0
    %v283 = vrcp.pop %v279
    %v284 = vmul.f32 %v279, %v283
    %v285 = vsub.f32 1.0, %v284
    %v286 = vmul.f32 %v283, %v285
    %v287 = vadd.f32 %v283, %v286
    %vm288 = vweird.f32 %v279
    %vm289 = vweird.f32 %v283
    %vm290 = vmor %vm288, %vm289
    %v291 = vsel %vm290, %v283, %v287
    %v292 = vand.u32 2147483647, %v279
    %vm293 = vcmp.eq.f32.partialorder %v292, 8.507059e+37
    %v294 = vand.u32 %v279, 2147483648
    %v295 = vor.u32 1.1754944e-38, %v294
    %v296 = vsel %vm293, %v295, %v291
    %v297 = vmul.f32 1.0, %v296
    %v298 = vrcp.pop %v280
    %v299 = vmul.f32 %v280, %v298
    %v300 = vsub.f32 1.0, %v299
    %v301 = vmul.f32 %v298, %v300
    %v302 = vadd.f32 %v298, %v301
    %vm303 = vweird.f32 %v280
    %vm304 = vweird.f32 %v298
    %vm305 = vmor %vm303, %vm304
    %v306 = vsel %vm305, %v298, %v302
    %v307 = vand.u32 2147483647, %v280
    %vm308 = vcmp.eq.f32.partialorder %v307, 8.507059e+37
    %v309 = vand.u32 %v280, 2147483648
    %v310 = vor.u32 1.1754944e-38, %v309
    %v311 = vsel %vm308, %v310, %v306
    %v312 = vmul.f32 1.0, %v311
    %v313 = vrcp.pop %v281
    %v314 = vmul.f32 %v281, %v313
    %v315 = vsub.f32 1.0, %v314
    %v316 = vmul.f32 %v313, %v315
    %v317 = vadd.f32 %v313, %v316
    %vm318 = vweird.f32 %v281
    %vm319 = vweird.f32 %v313
    %vm320 = vmor %vm318, %vm319
    %v321 = vsel %vm320, %v313, %v317
    %v322 = vand.u32 2147483647, %v281
    %vm323 = vcmp.eq.f32.partialorder %v322, 8.507059e+37
    %v324 = vand.u32 %v281, 2147483648
    %v325 = vor.u32 1.1754944e-38, %v324
    %v326 = vsel %vm323, %v325, %v321
    %v327 = vmul.f32 1.0, %v326
    %v328 = vrcp.pop %v282
    %v329 = vmul.f32 %v282, %v328
    %v330 = vsub.f32 1.0, %v329
    %v331 = vmul.f32 %v328, %v330
    %v332 = vadd.f32 %v328, %v331
    %vm333 = vweird.f32 %v282
    %vm334 = vweird.f32 %v328
    %vm335 = vmor %vm333, %vm334
    %v336 = vsel %vm335, %v328, %v332
    %v337 = vand.u32 2147483647, %v282
    %vm338 = vcmp.eq.f32.partialorder %v337, 8.507059e+37
    %v339 = vand.u32 %v282, 2147483648
    %v340 = vor.u32 1.1754944e-38, %v339
    %v341 = vsel %vm338, %v340, %v336
    %v342 = vmul.f32 1.0, %v341
    %v343 = vpack.c.bf16 %v297, %v297
    %v344 = vpack.c.bf16 %v312, %v312
    %v345 = vpack.c.bf16 %v327, %v327
    %v346 = vpack.c.bf16 %v342, %v342
    %v347 = vsub.f32 %v95, 30.0
    %v348 = vsub.f32 %v96, 30.0
    %v349 = vsub.f32 %v97, 30.0
    %v350 = vsub.f32 %v98, 30.0
    %v351 = vxor.u32 %v347, 2147483648
    %v352 = vxor.u32 %v348, 2147483648
    %v353 = vxor.u32 %v349, 2147483648
    %v354 = vxor.u32 %v350, 2147483648
    %v355 = vmul.f32 %v351, 1.442695
    %v356 = vpow.pop %v355
    %v357 = vmul.f32 %v352, 1.442695
    %v358 = vpow.pop %v357
    %v359 = vmul.f32 %v353, 1.442695
    %v360 = vpow.pop %v359
    %v361 = vmul.f32 %v354, 1.442695
    %v362 = vpow.pop %v361
    %v363 = vadd.f32 %v356, 1.0
    %v364 = vadd.f32 %v358, 1.0
    %v365 = vadd.f32 %v360, 1.0
    %v366 = vadd.f32 %v362, 1.0
    %v367 = vrcp.pop %v363
    %v368 = vmul.f32 %v363, %v367
    %v369 = vsub.f32 1.0, %v368
    %v370 = vmul.f32 %v367, %v369
    %v371 = vadd.f32 %v367, %v370
    %vm372 = vweird.f32 %v363
    %vm373 = vweird.f32 %v367
    %vm374 = vmor %vm372, %vm373
    %v375 = vsel %vm374, %v367, %v371
    %v376 = vand.u32 2147483647, %v363
    %vm377 = vcmp.eq.f32.partialorder %v376, 8.507059e+37
    %v378 = vand.u32 %v363, 2147483648
    %v379 = vor.u32 1.1754944e-38, %v378
    %v380 = vsel %vm377, %v379, %v375
    %v381 = vmul.f32 1.0, %v380
    %v382 = vrcp.pop %v364
    %v383 = vmul.f32 %v364, %v382
    %v384 = vsub.f32 1.0, %v383
    %v385 = vmul.f32 %v382, %v384
    %v386 = vadd.f32 %v382, %v385
    %vm387 = vweird.f32 %v364
    %vm388 = vweird.f32 %v382
    %vm389 = vmor %vm387, %vm388
    %v390 = vsel %vm389, %v382, %v386
    %v391 = vand.u32 2147483647, %v364
    %vm392 = vcmp.eq.f32.partialorder %v391, 8.507059e+37
    %v393 = vand.u32 %v364, 2147483648
    %v394 = vor.u32 1.1754944e-38, %v393
    %v395 = vsel %vm392, %v394, %v390
    %v396 = vmul.f32 1.0, %v395
    %v397 = vrcp.pop %v365
    %v398 = vmul.f32 %v365, %v397
    %v399 = vsub.f32 1.0, %v398
    %v400 = vmul.f32 %v397, %v399
    %v401 = vadd.f32 %v397, %v400
    %vm402 = vweird.f32 %v365
    %vm403 = vweird.f32 %v397
    %vm404 = vmor %vm402, %vm403
    %v405 = vsel %vm404, %v397, %v401
    %v406 = vand.u32 2147483647, %v365
    %vm407 = vcmp.eq.f32.partialorder %v406, 8.507059e+37
    %v408 = vand.u32 %v365, 2147483648
    %v409 = vor.u32 1.1754944e-38, %v408
    %v410 = vsel %vm407, %v409, %v405
    %v411 = vmul.f32 1.0, %v410
    %v412 = vrcp.pop %v366
    %v413 = vmul.f32 %v366, %v412
    %v414 = vsub.f32 1.0, %v413
    %v415 = vmul.f32 %v412, %v414
    %v416 = vadd.f32 %v412, %v415
    %vm417 = vweird.f32 %v366
    %vm418 = vweird.f32 %v412
    %vm419 = vmor %vm417, %vm418
    %v420 = vsel %vm419, %v412, %v416
    %v421 = vand.u32 2147483647, %v366
    %vm422 = vcmp.eq.f32.partialorder %v421, 8.507059e+37
    %v423 = vand.u32 %v366, 2147483648
    %v424 = vor.u32 1.1754944e-38, %v423
    %v425 = vsel %vm422, %v424, %v420
    %v426 = vmul.f32 1.0, %v425
    %v427 = vpack.c.bf16 %v381, %v381
    %v428 = vpack.c.bf16 %v396, %v396
    %v429 = vpack.c.bf16 %v411, %v411
    %v430 = vpack.c.bf16 %v426, %v426
    %v431 = vsub.f32 %v95, 40.0
    %v432 = vsub.f32 %v96, 40.0
    %v433 = vsub.f32 %v97, 40.0
    %v434 = vsub.f32 %v98, 40.0
    %v435 = vxor.u32 %v431, 2147483648
    %v436 = vxor.u32 %v432, 2147483648
    %v437 = vxor.u32 %v433, 2147483648
    %v438 = vxor.u32 %v434, 2147483648
    %v439 = vmul.f32 %v435, 1.442695
    %v440 = vpow.pop %v439
    %v441 = vmul.f32 %v436, 1.442695
    %v442 = vpow.pop %v441
    %v443 = vmul.f32 %v437, 1.442695
    %v444 = vpow.pop %v443
    %v445 = vmul.f32 %v438, 1.442695
    %v446 = vpow.pop %v445
    %v447 = vadd.f32 %v440, 1.0
    %v448 = vadd.f32 %v442, 1.0
    %v449 = vadd.f32 %v444, 1.0
    %v450 = vadd.f32 %v446, 1.0
    %v451 = vrcp.pop %v447
    %v452 = vmul.f32 %v447, %v451
    %v453 = vsub.f32 1.0, %v452
    %v454 = vmul.f32 %v451, %v453
    %v455 = vadd.f32 %v451, %v454
    %vm456 = vweird.f32 %v447
    %vm457 = vweird.f32 %v451
    %vm458 = vmor %vm456, %vm457
    %v459 = vsel %vm458, %v451, %v455
    %v460 = vand.u32 2147483647, %v447
    %vm461 = vcmp.eq.f32.partialorder %v460, 8.507059e+37
    %v462 = vand.u32 %v447, 2147483648
    %v463 = vor.u32 1.1754944e-38, %v462
    %v464 = vsel %vm461, %v463, %v459
    %v465 = vmul.f32 1.0, %v464
    %v466 = vrcp.pop %v448
    %v467 = vmul.f32 %v448, %v466
    %v468 = vsub.f32 1.0, %v467
    %v469 = vmul.f32 %v466, %v468
    %v470 = vadd.f32 %v466, %v469
    %vm471 = vweird.f32 %v448
    %vm472 = vweird.f32 %v466
    %vm473 = vmor %vm471, %vm472
    %v474 = vsel %vm473, %v466, %v470
    %v475 = vand.u32 2147483647, %v448
    %vm476 = vcmp.eq.f32.partialorder %v475, 8.507059e+37
    %v477 = vand.u32 %v448, 2147483648
    %v478 = vor.u32 1.1754944e-38, %v477
    %v479 = vsel %vm476, %v478, %v474
    %v480 = vmul.f32 1.0, %v479
    %v481 = vrcp.pop %v449
    %v482 = vmul.f32 %v449, %v481
    %v483 = vsub.f32 1.0, %v482
    %v484 = vmul.f32 %v481, %v483
    %v485 = vadd.f32 %v481, %v484
    %vm486 = vweird.f32 %v449
    %vm487 = vweird.f32 %v481
    %vm488 = vmor %vm486, %vm487
    %v489 = vsel %vm488, %v481, %v485
    %v490 = vand.u32 2147483647, %v449
    %vm491 = vcmp.eq.f32.partialorder %v490, 8.507059e+37
    %v492 = vand.u32 %v449, 2147483648
    %v493 = vor.u32 1.1754944e-38, %v492
    %v494 = vsel %vm491, %v493, %v489
    %v495 = vmul.f32 1.0, %v494
    %v496 = vrcp.pop %v450
    %v497 = vmul.f32 %v450, %v496
    %v498 = vsub.f32 1.0, %v497
    %v499 = vmul.f32 %v496, %v498
    %v500 = vadd.f32 %v496, %v499
    %vm501 = vweird.f32 %v450
    %vm502 = vweird.f32 %v496
    %vm503 = vmor %vm501, %vm502
    %v504 = vsel %vm503, %v496, %v500
    %v505 = vand.u32 2147483647, %v450
    %vm506 = vcmp.eq.f32.partialorder %v505, 8.507059e+37
    %v507 = vand.u32 %v450, 2147483648
    %v508 = vor.u32 1.1754944e-38, %v507
    %v509 = vsel %vm506, %v508, %v504
    %v510 = vmul.f32 1.0, %v509
    %v511 = vpack.c.bf16 %v465, %v465
    %v512 = vpack.c.bf16 %v480, %v480
    %v513 = vpack.c.bf16 %v495, %v495
    %v514 = vpack.c.bf16 %v510, %v510
    %v515 = vsub.f32 %v95, 50.0
    %v516 = vsub.f32 %v96, 50.0
    %v517 = vsub.f32 %v97, 50.0
    %v518 = vsub.f32 %v98, 50.0
    %v519 = vxor.u32 %v515, 2147483648
    %v520 = vxor.u32 %v516, 2147483648
    %v521 = vxor.u32 %v517, 2147483648
    %v522 = vxor.u32 %v518, 2147483648
    %v523 = vmul.f32 %v519, 1.442695
    %v524 = vpow.pop %v523
    %v525 = vmul.f32 %v520, 1.442695
    %v526 = vpow.pop %v525
    %v527 = vmul.f32 %v521, 1.442695
    %v528 = vpow.pop %v527
    %v529 = vmul.f32 %v522, 1.442695
    %v530 = vpow.pop %v529
    %v531 = vadd.f32 %v524, 1.0
    %v532 = vadd.f32 %v526, 1.0
    %v533 = vadd.f32 %v528, 1.0
    %v534 = vadd.f32 %v530, 1.0
    %v535 = vrcp.pop %v531
    %v536 = vmul.f32 %v531, %v535
    %v537 = vsub.f32 1.0, %v536
    %v538 = vmul.f32 %v535, %v537
    %v539 = vadd.f32 %v535, %v538
    %vm540 = vweird.f32 %v531
    %vm541 = vweird.f32 %v535
    %vm542 = vmor %vm540, %vm541
    %v543 = vsel %vm542, %v535, %v539
    %v544 = vand.u32 2147483647, %v531
    %vm545 = vcmp.eq.f32.partialorder %v544, 8.507059e+37
    %v546 = vand.u32 %v531, 2147483648
    %v547 = vor.u32 1.1754944e-38, %v546
    %v548 = vsel %vm545, %v547, %v543
    %v549 = vmul.f32 1.0, %v548
    %v550 = vrcp.pop %v532
    %v551 = vmul.f32 %v532, %v550
    %v552 = vsub.f32 1.0, %v551
    %v553 = vmul.f32 %v550, %v552
    %v554 = vadd.f32 %v550, %v553
    %vm555 = vweird.f32 %v532
    %vm556 = vweird.f32 %v550
    %vm557 = vmor %vm555, %vm556
    %v558 = vsel %vm557, %v550, %v554
    %v559 = vand.u32 2147483647, %v532
    %vm560 = vcmp.eq.f32.partialorder %v559, 8.507059e+37
    %v561 = vand.u32 %v532, 2147483648
    %v562 = vor.u32 1.1754944e-38, %v561
    %v563 = vsel %vm560, %v562, %v558
    %v564 = vmul.f32 1.0, %v563
    %v565 = vrcp.pop %v533
    %v566 = vmul.f32 %v533, %v565
    %v567 = vsub.f32 1.0, %v566
    %v568 = vmul.f32 %v565, %v567
    %v569 = vadd.f32 %v565, %v568
    %vm570 = vweird.f32 %v533
    %vm571 = vweird.f32 %v565
    %vm572 = vmor %vm570, %vm571
    %v573 = vsel %vm572, %v565, %v569
    %v574 = vand.u32 2147483647, %v533
    %vm575 = vcmp.eq.f32.partialorder %v574, 8.507059e+37
    %v576 = vand.u32 %v533, 2147483648
    %v577 = vor.u32 1.1754944e-38, %v576
    %v578 = vsel %vm575, %v577, %v573
    %v579 = vmul.f32 1.0, %v578
    %v580 = vrcp.pop %v534
    %v581 = vmul.f32 %v534, %v580
    %v582 = vsub.f32 1.0, %v581
    %v583 = vmul.f32 %v580, %v582
    %v584 = vadd.f32 %v580, %v583
    %vm585 = vweird.f32 %v534
    %vm586 = vweird.f32 %v580
    %vm587 = vmor %vm585, %vm586
    %v588 = vsel %vm587, %v580, %v584
    %v589 = vand.u32 2147483647, %v534
    %vm590 = vcmp.eq.f32.partialorder %v589, 8.507059e+37
    %v591 = vand.u32 %v534, 2147483648
    %v592 = vor.u32 1.1754944e-38, %v591
    %v593 = vsel %vm590, %v592, %v588
    %v594 = vmul.f32 1.0, %v593
    %v595 = vpack.c.bf16 %v549, %v549
    %v596 = vpack.c.bf16 %v564, %v564
    %v597 = vpack.c.bf16 %v579, %v579
    %v598 = vpack.c.bf16 %v594, %v594
    %v599 = vsub.f32 %v95, 60.0
    %v600 = vsub.f32 %v96, 60.0
    %v601 = vsub.f32 %v97, 60.0
    %v602 = vsub.f32 %v98, 60.0
    %v603 = vxor.u32 %v599, 2147483648
    %v604 = vxor.u32 %v600, 2147483648
    %v605 = vxor.u32 %v601, 2147483648
    %v606 = vxor.u32 %v602, 2147483648
    %v607 = vmul.f32 %v603, 1.442695
    %v608 = vpow.pop %v607
    %v609 = vmul.f32 %v604, 1.442695
    %v610 = vpow.pop %v609
    %v611 = vmul.f32 %v605, 1.442695
    %v612 = vpow.pop %v611
    %v613 = vmul.f32 %v606, 1.442695
    %v614 = vpow.pop %v613
    %v615 = vadd.f32 %v608, 1.0
    %v616 = vadd.f32 %v610, 1.0
    %v617 = vadd.f32 %v612, 1.0
    %v618 = vadd.f32 %v614, 1.0
    %v619 = vrcp.pop %v615
    %v620 = vmul.f32 %v615, %v619
    %v621 = vsub.f32 1.0, %v620
    %v622 = vmul.f32 %v619, %v621
    %v623 = vadd.f32 %v619, %v622
    %vm624 = vweird.f32 %v615
    %vm625 = vweird.f32 %v619
    %vm626 = vmor %vm624, %vm625
    %v627 = vsel %vm626, %v619, %v623
    %v628 = vand.u32 2147483647, %v615
    %vm629 = vcmp.eq.f32.partialorder %v628, 8.507059e+37
    %v630 = vand.u32 %v615, 2147483648
    %v631 = vor.u32 1.1754944e-38, %v630
    %v632 = vsel %vm629, %v631, %v627
    %v633 = vmul.f32 1.0, %v632
    %v634 = vrcp.pop %v616
    %v635 = vmul.f32 %v616, %v634
    %v636 = vsub.f32 1.0, %v635
    %v637 = vmul.f32 %v634, %v636
    %v638 = vadd.f32 %v634, %v637
    %vm639 = vweird.f32 %v616
    %vm640 = vweird.f32 %v634
    %vm641 = vmor %vm639, %vm640
    %v642 = vsel %vm641, %v634, %v638
    %v643 = vand.u32 2147483647, %v616
    %vm644 = vcmp.eq.f32.partialorder %v643, 8.507059e+37
    %v645 = vand.u32 %v616, 2147483648
    %v646 = vor.u32 1.1754944e-38, %v645
    %v647 = vsel %vm644, %v646, %v642
    %v648 = vmul.f32 1.0, %v647
    %v649 = vrcp.pop %v617
    %v650 = vmul.f32 %v617, %v649
    %v651 = vsub.f32 1.0, %v650
    %v652 = vmul.f32 %v649, %v651
    %v653 = vadd.f32 %v649, %v652
    %vm654 = vweird.f32 %v617
    %vm655 = vweird.f32 %v649
    %vm656 = vmor %vm654, %vm655
    %v657 = vsel %vm656, %v649, %v653
    %v658 = vand.u32 2147483647, %v617
    %vm659 = vcmp.eq.f32.partialorder %v658, 8.507059e+37
    %v660 = vand.u32 %v617, 2147483648
    %v661 = vor.u32 1.1754944e-38, %v660
    %v662 = vsel %vm659, %v661, %v657
    %v663 = vmul.f32 1.0, %v662
    %v664 = vrcp.pop %v618
    %v665 = vmul.f32 %v618, %v664
    %v666 = vsub.f32 1.0, %v665
    %v667 = vmul.f32 %v664, %v666
    %v668 = vadd.f32 %v664, %v667
    %vm669 = vweird.f32 %v618
    %vm670 = vweird.f32 %v664
    %vm671 = vmor %vm669, %vm670
    %v672 = vsel %vm671, %v664, %v668
    %v673 = vand.u32 2147483647, %v618
    %vm674 = vcmp.eq.f32.partialorder %v673, 8.507059e+37
    %v675 = vand.u32 %v618, 2147483648
    %v676 = vor.u32 1.1754944e-38, %v675
    %v677 = vsel %vm674, %v676, %v672
    %v678 = vmul.f32 1.0, %v677
    %v679 = vpack.c.bf16 %v633, %v633
    %v680 = vpack.c.bf16 %v648, %v648
    %v681 = vpack.c.bf16 %v663, %v663
    %v682 = vpack.c.bf16 %v678, %v678
    %v683 = vsub.f32 %v95, 70.0
    %v684 = vsub.f32 %v96, 70.0
    %v685 = vsub.f32 %v97, 70.0
    %v686 = vsub.f32 %v98, 70.0
    %v687 = vxor.u32 %v683, 2147483648
    %v688 = vxor.u32 %v684, 2147483648
    %v689 = vxor.u32 %v685, 2147483648
    %v690 = vxor.u32 %v686, 2147483648
    %v691 = vmul.f32 %v687, 1.442695
    %v692 = vpow.pop %v691
    %v693 = vmul.f32 %v688, 1.442695
    %v694 = vpow.pop %v693
    %v695 = vmul.f32 %v689, 1.442695
    %v696 = vpow.pop %v695
    %v697 = vmul.f32 %v690, 1.442695
    %v698 = vpow.pop %v697
    %v699 = vadd.f32 %v692, 1.0
    %v700 = vadd.f32 %v694, 1.0
    %v701 = vadd.f32 %v696, 1.0
    %v702 = vadd.f32 %v698, 1.0
    %v703 = vrcp.pop %v699
    %v704 = vmul.f32 %v699, %v703
    %v705 = vsub.f32 1.0, %v704
    %v706 = vmul.f32 %v703, %v705
    %v707 = vadd.f32 %v703, %v706
    %vm708 = vweird.f32 %v699
    %vm709 = vweird.f32 %v703
    %vm710 = vmor %vm708, %vm709
    %v711 = vsel %vm710, %v703, %v707
    %v712 = vand.u32 2147483647, %v699
    %vm713 = vcmp.eq.f32.partialorder %v712, 8.507059e+37
    %v714 = vand.u32 %v699, 2147483648
    %v715 = vor.u32 1.1754944e-38, %v714
    %v716 = vsel %vm713, %v715, %v711
    %v717 = vmul.f32 1.0, %v716
    %v718 = vrcp.pop %v700
    %v719 = vmul.f32 %v700, %v718
    %v720 = vsub.f32 1.0, %v719
    %v721 = vmul.f32 %v718, %v720
    %v722 = vadd.f32 %v718, %v721
    %vm723 = vweird.f32 %v700
    %vm724 = vweird.f32 %v718
    %vm725 = vmor %vm723, %vm724
    %v726 = vsel %vm725, %v718, %v722
    %v727 = vand.u32 2147483647, %v700
    %vm728 = vcmp.eq.f32.partialorder %v727, 8.507059e+37
    %v729 = vand.u32 %v700, 2147483648
    %v730 = vor.u32 1.1754944e-38, %v729
    %v731 = vsel %vm728, %v730, %v726
    %v732 = vmul.f32 1.0, %v731
    %v733 = vrcp.pop %v701
    %v734 = vmul.f32 %v701, %v733
    %v735 = vsub.f32 1.0, %v734
    %v736 = vmul.f32 %v733, %v735
    %v737 = vadd.f32 %v733, %v736
    %vm738 = vweird.f32 %v701
    %vm739 = vweird.f32 %v733
    %vm740 = vmor %vm738, %vm739
    %v741 = vsel %vm740, %v733, %v737
    %v742 = vand.u32 2147483647, %v701
    %vm743 = vcmp.eq.f32.partialorder %v742, 8.507059e+37
    %v744 = vand.u32 %v701, 2147483648
    %v745 = vor.u32 1.1754944e-38, %v744
    %v746 = vsel %vm743, %v745, %v741
    %v747 = vmul.f32 1.0, %v746
    %v748 = vrcp.pop %v702
    %v749 = vmul.f32 %v702, %v748
    %v750 = vsub.f32 1.0, %v749
    %v751 = vmul.f32 %v748, %v750
    %v752 = vadd.f32 %v748, %v751
    %vm753 = vweird.f32 %v702
    %vm754 = vweird.f32 %v748
    %vm755 = vmor %vm753, %vm754
    %v756 = vsel %vm755, %v748, %v752
    %v757 = vand.u32 2147483647, %v702
    %vm758 = vcmp.eq.f32.partialorder %v757, 8.507059e+37
    %v759 = vand.u32 %v702, 2147483648
    %v760 = vor.u32 1.1754944e-38, %v759
    %v761 = vsel %vm758, %v760, %v756
    %v762 = vmul.f32 1.0, %v761
    %v763 = vpack.c.bf16 %v717, %v717
    %v764 = vpack.c.bf16 %v732, %v732
    %v765 = vpack.c.bf16 %v747, %v747
    %v766 = vpack.c.bf16 %v762, %v762
    %v767 = vsub.f32 %v95, 80.0
    %v768 = vsub.f32 %v96, 80.0
    %v769 = vsub.f32 %v97, 80.0
    %v770 = vsub.f32 %v98, 80.0
    %v771 = vxor.u32 %v767, 2147483648
    %v772 = vxor.u32 %v768, 2147483648
    %v773 = vxor.u32 %v769, 2147483648
    %v774 = vxor.u32 %v770, 2147483648
    %v775 = vmul.f32 %v771, 1.442695
    %v776 = vpow.pop %v775
    %v777 = vmul.f32 %v772, 1.442695
    %v778 = vpow.pop %v777
    %v779 = vmul.f32 %v773, 1.442695
    %v780 = vpow.pop %v779
    %v781 = vmul.f32 %v774, 1.442695
    %v782 = vpow.pop %v781
    %v783 = vadd.f32 %v776, 1.0
    %v784 = vadd.f32 %v778, 1.0
    %v785 = vadd.f32 %v780, 1.0
    %v786 = vadd.f32 %v782, 1.0
    %v787 = vrcp.pop %v783
    %v788 = vmul.f32 %v783, %v787
    %v789 = vsub.f32 1.0, %v788
    %v790 = vmul.f32 %v787, %v789
    %v791 = vadd.f32 %v787, %v790
    %vm792 = vweird.f32 %v783
    %vm793 = vweird.f32 %v787
    %vm794 = vmor %vm792, %vm793
    %v795 = vsel %vm794, %v787, %v791
    %v796 = vand.u32 2147483647, %v783
    %vm797 = vcmp.eq.f32.partialorder %v796, 8.507059e+37
    %v798 = vand.u32 %v783, 2147483648
    %v799 = vor.u32 1.1754944e-38, %v798
    %v800 = vsel %vm797, %v799, %v795
    %v801 = vmul.f32 1.0, %v800
    %v802 = vrcp.pop %v784
    %v803 = vmul.f32 %v784, %v802
    %v804 = vsub.f32 1.0, %v803
    %v805 = vmul.f32 %v802, %v804
    %v806 = vadd.f32 %v802, %v805
    %vm807 = vweird.f32 %v784
    %vm808 = vweird.f32 %v802
    %vm809 = vmor %vm807, %vm808
    %v810 = vsel %vm809, %v802, %v806
    %v811 = vand.u32 2147483647, %v784
    %vm812 = vcmp.eq.f32.partialorder %v811, 8.507059e+37
    %v813 = vand.u32 %v784, 2147483648
    %v814 = vor.u32 1.1754944e-38, %v813
    %v815 = vsel %vm812, %v814, %v810
    %v816 = vmul.f32 1.0, %v815
    %v817 = vrcp.pop %v785
    %v818 = vmul.f32 %v785, %v817
    %v819 = vsub.f32 1.0, %v818
    %v820 = vmul.f32 %v817, %v819
    %v821 = vadd.f32 %v817, %v820
    %vm822 = vweird.f32 %v785
    %vm823 = vweird.f32 %v817
    %vm824 = vmor %vm822, %vm823
    %v825 = vsel %vm824, %v817, %v821
    %v826 = vand.u32 2147483647, %v785
    %vm827 = vcmp.eq.f32.partialorder %v826, 8.507059e+37
    %v828 = vand.u32 %v785, 2147483648
    %v829 = vor.u32 1.1754944e-38, %v828
    %v830 = vsel %vm827, %v829, %v825
    %v831 = vmul.f32 1.0, %v830
    %v832 = vrcp.pop %v786
    %v833 = vmul.f32 %v786, %v832
    %v834 = vsub.f32 1.0, %v833
    %v835 = vmul.f32 %v832, %v834
    %v836 = vadd.f32 %v832, %v835
    %vm837 = vweird.f32 %v786
    %vm838 = vweird.f32 %v832
    %vm839 = vmor %vm837, %vm838
    %v840 = vsel %vm839, %v832, %v836
    %v841 = vand.u32 2147483647, %v786
    %vm842 = vcmp.eq.f32.partialorder %v841, 8.507059e+37
    %v843 = vand.u32 %v786, 2147483648
    %v844 = vor.u32 1.1754944e-38, %v843
    %v845 = vsel %vm842, %v844, %v840
    %v846 = vmul.f32 1.0, %v845
    %v847 = vpack.c.bf16 %v801, %v801
    %v848 = vpack.c.bf16 %v816, %v816
    %v849 = vpack.c.bf16 %v831, %v831
    %v850 = vpack.c.bf16 %v846, %v846
    %v851 = vsub.f32 %v95, 90.0
    %v852 = vsub.f32 %v96, 90.0
    %v853 = vsub.f32 %v97, 90.0
    %v854 = vsub.f32 %v98, 90.0
    %v855 = vxor.u32 %v851, 2147483648
    %v856 = vxor.u32 %v852, 2147483648
    %v857 = vxor.u32 %v853, 2147483648
    %v858 = vxor.u32 %v854, 2147483648
    %v859 = vmul.f32 %v855, 1.442695
    %v860 = vpow.pop %v859
    %v861 = vmul.f32 %v856, 1.442695
    %v862 = vpow.pop %v861
    %v863 = vmul.f32 %v857, 1.442695
    %v864 = vpow.pop %v863
    %v865 = vmul.f32 %v858, 1.442695
    %v866 = vpow.pop %v865
    %v867 = vadd.f32 %v860, 1.0
    %v868 = vadd.f32 %v862, 1.0
    %v869 = vadd.f32 %v864, 1.0
    %v870 = vadd.f32 %v866, 1.0
    %v871 = vrcp.pop %v867
    %v872 = vmul.f32 %v867, %v871
    %v873 = vsub.f32 1.0, %v872
    %v874 = vmul.f32 %v871, %v873
    %v875 = vadd.f32 %v871, %v874
    %vm876 = vweird.f32 %v867
    %vm877 = vweird.f32 %v871
    %vm878 = vmor %vm876, %vm877
    %v879 = vsel %vm878, %v871, %v875
    %v880 = vand.u32 2147483647, %v867
    %vm881 = vcmp.eq.f32.partialorder %v880, 8.507059e+37
    %v882 = vand.u32 %v867, 2147483648
    %v883 = vor.u32 1.1754944e-38, %v882
    %v884 = vsel %vm881, %v883, %v879
    %v885 = vmul.f32 1.0, %v884
    %v886 = vrcp.pop %v868
    %v887 = vmul.f32 %v868, %v886
    %v888 = vsub.f32 1.0, %v887
    %v889 = vmul.f32 %v886, %v888
    %v890 = vadd.f32 %v886, %v889
    %vm891 = vweird.f32 %v868
    %vm892 = vweird.f32 %v886
    %vm893 = vmor %vm891, %vm892
    %v894 = vsel %vm893, %v886, %v890
    %v895 = vand.u32 2147483647, %v868
    %vm896 = vcmp.eq.f32.partialorder %v895, 8.507059e+37
    %v897 = vand.u32 %v868, 2147483648
    %v898 = vor.u32 1.1754944e-38, %v897
    %v899 = vsel %vm896, %v898, %v894
    %v900 = vmul.f32 1.0, %v899
    %v901 = vrcp.pop %v869
    %v902 = vmul.f32 %v869, %v901
    %v903 = vsub.f32 1.0, %v902
    %v904 = vmul.f32 %v901, %v903
    %v905 = vadd.f32 %v901, %v904
    %vm906 = vweird.f32 %v869
    %vm907 = vweird.f32 %v901
    %vm908 = vmor %vm906, %vm907
    %v909 = vsel %vm908, %v901, %v905
    %v910 = vand.u32 2147483647, %v869
    %vm911 = vcmp.eq.f32.partialorder %v910, 8.507059e+37
    %v912 = vand.u32 %v869, 2147483648
    %v913 = vor.u32 1.1754944e-38, %v912
    %v914 = vsel %vm911, %v913, %v909
    %v915 = vmul.f32 1.0, %v914
    %v916 = vrcp.pop %v870
    %v917 = vmul.f32 %v870, %v916
    %v918 = vsub.f32 1.0, %v917
    %v919 = vmul.f32 %v916, %v918
    %v920 = vadd.f32 %v916, %v919
    %vm921 = vweird.f32 %v870
    %vm922 = vweird.f32 %v916
    %vm923 = vmor %vm921, %vm922
    %v924 = vsel %vm923, %v916, %v920
    %v925 = vand.u32 2147483647, %v870
    %vm926 = vcmp.eq.f32.partialorder %v925, 8.507059e+37
    %v927 = vand.u32 %v870, 2147483648
    %v928 = vor.u32 1.1754944e-38, %v927
    %v929 = vsel %vm926, %v928, %v924
    %v930 = vmul.f32 1.0, %v929
    %v931 = vpack.c.bf16 %v885, %v885
    %v932 = vpack.c.bf16 %v900, %v900
    %v933 = vpack.c.bf16 %v915, %v915
    %v934 = vpack.c.bf16 %v930, %v930
    %v939 = vunpack.c.l.b16 %v175
    %v940 = vunpack.c.l.b16 %v176
    %v941 = vunpack.c.l.b16 %v177
    %v942 = vunpack.c.l.b16 %v178
    %v943 = vpack.c.b16 %v940, %v939
    %v944 = vpack.c.b16 %v942, %v941
    %v951 = vunpack.c.l.b16 %v259
    %v952 = vunpack.c.l.b16 %v260
    %v953 = vunpack.c.l.b16 %v261
    %v954 = vunpack.c.l.b16 %v262
    %v955 = vpack.c.b16 %v952, %v951
    %v956 = vpack.c.b16 %v954, %v953
    %v963 = vunpack.c.l.b16 %v343
    %v964 = vunpack.c.l.b16 %v344
    %v965 = vunpack.c.l.b16 %v345
    %v966 = vunpack.c.l.b16 %v346
    %v967 = vpack.c.b16 %v964, %v963
    %v968 = vpack.c.b16 %v966, %v965
    %v975 = vunpack.c.l.b16 %v427
    %v976 = vunpack.c.l.b16 %v428
    %v977 = vunpack.c.l.b16 %v429
    %v978 = vunpack.c.l.b16 %v430
    %v979 = vpack.c.b16 %v976, %v975
    %v980 = vpack.c.b16 %v978, %v977
    %v987 = vunpack.c.l.b16 %v511
    %v988 = vunpack.c.l.b16 %v512
    %v989 = vunpack.c.l.b16 %v513
    %v990 = vunpack.c.l.b16 %v514
    %v991 = vpack.c.b16 %v988, %v987
    %v992 = vpack.c.b16 %v990, %v989
    %v999 = vunpack.c.l.b16 %v595
    %v1000 = vunpack.c.l.b16 %v596
    %v1001 = vunpack.c.l.b16 %v597
    %v1002 = vunpack.c.l.b16 %v598
    %v1003 = vpack.c.b16 %v1000, %v999
    %v1004 = vpack.c.b16 %v1002, %v1001
    %v1011 = vunpack.c.l.b16 %v679
    %v1012 = vunpack.c.l.b16 %v680
    %v1013 = vunpack.c.l.b16 %v681
    %v1014 = vunpack.c.l.b16 %v682
    %v1015 = vpack.c.b16 %v1012, %v1011
    %v1016 = vpack.c.b16 %v1014, %v1013
    %v1023 = vunpack.c.l.b16 %v763
    %v1024 = vunpack.c.l.b16 %v764
    %v1025 = vunpack.c.l.b16 %v765
    %v1026 = vunpack.c.l.b16 %v766
    %v1027 = vpack.c.b16 %v1024, %v1023
    %v1028 = vpack.c.b16 %v1026, %v1025
    %v1035 = vunpack.c.l.b16 %v847
    %v1036 = vunpack.c.l.b16 %v848
    %v1037 = vunpack.c.l.b16 %v849
    %v1038 = vunpack.c.l.b16 %v850
    %v1039 = vpack.c.b16 %v1036, %v1035
    %v1040 = vpack.c.b16 %v1038, %v1037
    %v1047 = vunpack.c.l.b16 %v931
    %v1048 = vunpack.c.l.b16 %v932
    %v1049 = vunpack.c.l.b16 %v933
    %v1050 = vunpack.c.l.b16 %v934
    %v1051 = vpack.c.b16 %v1048, %v1047
    %v1052 = vpack.c.b16 %v1050, %v1049
    %v1055 = vld [vmem:[#allocation6] sm:$0xff]
    %v1056 = vld [vmem:[#allocation6 + $0x8] sm:$0xf]
    %v1057 = vld [vmem:[#allocation6 + $0xc] sm:$0xff]
    %v1058 = vld [vmem:[#allocation6 + $0x14] sm:$0xf]
    %v1059 = vld [vmem:[#allocation6 + $0x18] sm:$0xff]
    %v1060 = vld [vmem:[#allocation6 + $0x20] sm:$0xf]
    %v1061 = vld [vmem:[#allocation6 + $0x24] sm:$0xff]
    %v1062 = vld [vmem:[#allocation6 + $0x2c] sm:$0xf]
    %v1063 = vld [vmem:[#allocation6 + $0x30] sm:$0xff]
    %v1064 = vld [vmem:[#allocation6 + $0x38] sm:$0xf]
    %v1065 = vld [vmem:[#allocation6 + $0x3c] sm:$0xff]
    %v1066 = vld [vmem:[#allocation6 + $0x44] sm:$0xf]
    %v1067 = vld [vmem:[#allocation6 + $0x48] sm:$0xff]
    %v1068 = vld [vmem:[#allocation6 + $0x50] sm:$0xf]
    %v1069 = vld [vmem:[#allocation6 + $0x54] sm:$0xff]
    %v1070 = vld [vmem:[#allocation6 + $0x5c] sm:$0xf]
    %v1071 = vld [vmem:[#allocation6 + $0x60] sm:$0xff]
    %v1072 = vld [vmem:[#allocation6 + $0x68] sm:$0xf]
    %v1073 = vld [vmem:[#allocation6 + $0x6c] sm:$0xff]
    %v1074 = vld [vmem:[#allocation6 + $0x74] sm:$0xf]
    %v1075 = vld [vmem:[#allocation6 + $0x78] sm:$0xff]
    %v1076 = vld [vmem:[#allocation6 + $0x80] sm:$0xf]
    %v1077 = vld [vmem:[#allocation6 + $0x84] sm:$0xff]
    %v1078 = vld [vmem:[#allocation6 + $0x8c] sm:$0xf]
    %v1079 = vld [vmem:[#allocation6 + $0x90] sm:$0xff]
    %v1080 = vld [vmem:[#allocation6 + $0x98] sm:$0xf]
    %v1081 = vld [vmem:[#allocation6 + $0x9c] sm:$0xff]
    %v1082 = vld [vmem:[#allocation6 + $0xa4] sm:$0xf]
    %v1083 = vld [vmem:[#allocation6 + $0xa8] sm:$0xff]
    %v1084 = vld [vmem:[#allocation6 + $0xb0] sm:$0xf]
    %v1085 = vld [vmem:[#allocation6 + $0xb4] sm:$0xff]
    %v1086 = vld [vmem:[#allocation6 + $0xbc] sm:$0xf]
    %v1087 = vld [vmem:[#allocation8] sm:$0x7]
    %v1089 = vperm.slane %v1087, 0
    %v1090 = vperm.slane %v1087, 1
    %v1091 = vperm.slane %v1087, 2
    %v1127 = vunpack.c.l.b16 %v1055
    %v1128 = vunpack.c.h.b16 %v1055
    %v1129 = vunpack.c.l.b16 %v1056
    %v1130 = vunpack.c.l.b16 %v1057
    %v1131 = vunpack.c.h.b16 %v1057
    %v1132 = vunpack.c.l.b16 %v1058
    %v1133 = vunpack.c.l.b16 %v1059
    %v1134 = vunpack.c.h.b16 %v1059
    %v1135 = vunpack.c.l.b16 %v1060
    %v1136 = vunpack.c.l.b16 %v1061
    %v1137 = vunpack.c.h.b16 %v1061
    %v1138 = vunpack.c.l.b16 %v1062
    %v1139 = vunpack.c.l.b16 %v1063
    %v1140 = vunpack.c.h.b16 %v1063
    %v1141 = vunpack.c.l.b16 %v1064
    %v1142 = vunpack.c.l.b16 %v1065
    %v1143 = vunpack.c.h.b16 %v1065
    %v1144 = vunpack.c.l.b16 %v1066
    %v1145 = vunpack.c.l.b16 %v1067
    %v1146 = vunpack.c.h.b16 %v1067
    %v1147 = vunpack.c.l.b16 %v1068
    %v1148 = vunpack.c.l.b16 %v1069
    %v1149 = vunpack.c.h.b16 %v1069
    %v1150 = vunpack.c.l.b16 %v1070
    %v1151 = vunpack.c.l.b16 %v1071
    %v1152 = vunpack.c.h.b16 %v1071
    %v1153 = vunpack.c.l.b16 %v1072
    %v1154 = vunpack.c.l.b16 %v1073
    %v1155 = vunpack.c.h.b16 %v1073
    %v1156 = vunpack.c.l.b16 %v1074
    %v1157 = vunpack.c.l.b16 %v1075
    %v1158 = vunpack.c.h.b16 %v1075
    %v1159 = vunpack.c.l.b16 %v1076
    %v1160 = vunpack.c.l.b16 %v1077
    %v1161 = vunpack.c.h.b16 %v1077
    %v1162 = vunpack.c.l.b16 %v1078
    %v1163 = vunpack.c.l.b16 %v1079
    %v1164 = vunpack.c.h.b16 %v1079
    %v1165 = vunpack.c.l.b16 %v1080
    %v1166 = vunpack.c.l.b16 %v1081
    %v1167 = vunpack.c.h.b16 %v1081
    %v1168 = vunpack.c.l.b16 %v1082
    %v1169 = vunpack.c.l.b16 %v1083
    %v1170 = vunpack.c.h.b16 %v1083
    %v1171 = vunpack.c.l.b16 %v1084
    %v1172 = vunpack.c.l.b16 %v1085
    %v1173 = vunpack.c.h.b16 %v1085
    %v1174 = vunpack.c.l.b16 %v1086
    %v1175 = vpack.c.b16 %v1130, %v1127
    %v1176 = vpack.c.b16 %v1131, %v1128
    %v1177 = vpack.c.b16 %v1132, %v1129
    %v1178 = vpack.c.b16 %v1136, %v1133
    %v1179 = vpack.c.b16 %v1137, %v1134
    %v1180 = vpack.c.b16 %v1138, %v1135
    %v1181 = vpack.c.b16 %v1142, %v1139
    %v1182 = vpack.c.b16 %v1143, %v1140
    %v1183 = vpack.c.b16 %v1144, %v1141
    %v1184 = vpack.c.b16 %v1148, %v1145
    %v1185 = vpack.c.b16 %v1149, %v1146
    %v1186 = vpack.c.b16 %v1150, %v1147
    %v1187 = vpack.c.b16 %v1154, %v1151
    %v1188 = vpack.c.b16 %v1155, %v1152
    %v1189 = vpack.c.b16 %v1156, %v1153
    %v1190 = vpack.c.b16 %v1160, %v1157
    %v1191 = vpack.c.b16 %v1161, %v1158
    %v1192 = vpack.c.b16 %v1162, %v1159
    %v1193 = vpack.c.b16 %v1166, %v1163
    %v1194 = vpack.c.b16 %v1167, %v1164
    %v1195 = vpack.c.b16 %v1168, %v1165
    %v1196 = vpack.c.b16 %v1172, %v1169
    %v1197 = vpack.c.b16 %v1173, %v1170
    %v1198 = vpack.c.b16 %v1174, %v1171
    %1223 = vmatpush.bf16.msra.mxu0 %v1196
    %1224 = vmatpush.bf16.msra.mxu0 %v1193
    %1225 = vmatpush.bf16.msra.mxu0 %v1190
    %1226 = vmatpush.bf16.msra.mxu0 %v1187
    %1227 = vmatpush.bf16.msra.mxu0 %v1184
    %1228 = vmatpush.bf16.msra.mxu0 %v1181
    %1229 = vmatpush.bf16.msra.mxu0 %v1178
    %1230 = vmatpush.bf16.msra.mxu0 %v1175
    %1231 = vmatmul.bf16.gmra.mxu0 %v943
    %v1232 = vpop.f32.mrf.mxu0
    %v1233 = vadd.f32 %v1089, %v1232
    %v1234 = vpop.f32.mrf.mxu0
    %v1235 = vadd.f32 %v1089, %v1234
    %1236 = vmatmul.bf16.gmra.mxu0 %v944
    %v1237 = vpop.f32.mrf.mxu0
    %v1238 = vadd.f32 %v1089, %v1237
    %v1239 = vpop.f32.mrf.mxu0
    %v1240 = vadd.f32 %v1089, %v1239
    %1241 = vmatmul.bf16.gmra.mxu0 %v955
    %v1242 = vpop.f32.mrf.mxu0
    %v1243 = vadd.f32 %v1089, %v1242
    %v1244 = vpop.f32.mrf.mxu0
    %v1245 = vadd.f32 %v1089, %v1244
    %1246 = vmatmul.bf16.gmra.mxu0 %v956
    %v1247 = vpop.f32.mrf.mxu0
    %v1248 = vadd.f32 %v1089, %v1247
    %v1249 = vpop.f32.mrf.mxu0
    %v1250 = vadd.f32 %v1089, %v1249
    %1251 = vmatmul.bf16.gmra.mxu0 %v967
    %v1252 = vpop.f32.mrf.mxu0
    %v1253 = vadd.f32 %v1089, %v1252
    %v1254 = vpop.f32.mrf.mxu0
    %v1255 = vadd.f32 %v1089, %v1254
    %1256 = vmatmul.bf16.gmra.mxu0 %v968
    %v1257 = vpop.f32.mrf.mxu0
    %v1258 = vadd.f32 %v1089, %v1257
    %v1259 = vpop.f32.mrf.mxu0
    %v1260 = vadd.f32 %v1089, %v1259
    %1261 = vmatmul.bf16.gmra.mxu0 %v979
    %v1262 = vpop.f32.mrf.mxu0
    %v1263 = vadd.f32 %v1089, %v1262
    %v1264 = vpop.f32.mrf.mxu0
    %v1265 = vadd.f32 %v1089, %v1264
    %1266 = vmatmul.bf16.gmra.mxu0 %v980
    %v1267 = vpop.f32.mrf.mxu0
    %v1268 = vadd.f32 %v1089, %v1267
    %v1269 = vpop.f32.mrf.mxu0
    %v1270 = vadd.f32 %v1089, %v1269
    %1271 = vmatmul.bf16.gmra.mxu0 %v991
    %v1272 = vpop.f32.mrf.mxu0
    %v1273 = vadd.f32 %v1089, %v1272
    %v1274 = vpop.f32.mrf.mxu0
    %v1275 = vadd.f32 %v1089, %v1274
    %1276 = vmatmul.bf16.gmra.mxu0 %v992
    %v1277 = vpop.f32.mrf.mxu0
    %v1278 = vadd.f32 %v1089, %v1277
    %v1279 = vpop.f32.mrf.mxu0
    %v1280 = vadd.f32 %v1089, %v1279
    %1281 = vmatmul.bf16.gmra.mxu0 %v1003
    %v1282 = vpop.f32.mrf.mxu0
    %v1283 = vadd.f32 %v1089, %v1282
    %v1284 = vpop.f32.mrf.mxu0
    %v1285 = vadd.f32 %v1089, %v1284
    %1286 = vmatmul.bf16.gmra.mxu0 %v1004
    %v1287 = vpop.f32.mrf.mxu0
    %v1288 = vadd.f32 %v1089, %v1287
    %v1289 = vpop.f32.mrf.mxu0
    %v1290 = vadd.f32 %v1089, %v1289
    %1291 = vmatmul.bf16.gmra.mxu0 %v1015
    %v1292 = vpop.f32.mrf.mxu0
    %v1293 = vadd.f32 %v1089, %v1292
    %v1294 = vpop.f32.mrf.mxu0
    %v1295 = vadd.f32 %v1089, %v1294
    %1296 = vmatmul.bf16.gmra.mxu0 %v1016
    %v1297 = vpop.f32.mrf.mxu0
    %v1298 = vadd.f32 %v1089, %v1297
    %v1299 = vpop.f32.mrf.mxu0
    %v1300 = vadd.f32 %v1089, %v1299
    %1301 = vmatmul.bf16.gmra.mxu0 %v1027
    %v1302 = vpop.f32.mrf.mxu0
    %v1303 = vadd.f32 %v1089, %v1302
    %v1304 = vpop.f32.mrf.mxu0
    %v1305 = vadd.f32 %v1089, %v1304
    %1306 = vmatmul.bf16.gmra.mxu0 %v1028
    %v1307 = vpop.f32.mrf.mxu0
    %v1308 = vadd.f32 %v1089, %v1307
    %v1309 = vpop.f32.mrf.mxu0
    %v1310 = vadd.f32 %v1089, %v1309
    %1311 = vmatmul.bf16.gmra.mxu0 %v1039
    %v1312 = vpop.f32.mrf.mxu0
    %v1313 = vadd.f32 %v1089, %v1312
    %v1314 = vpop.f32.mrf.mxu0
    %v1315 = vadd.f32 %v1089, %v1314
    %1316 = vmatmul.bf16.gmra.mxu0 %v1040
    %v1317 = vpop.f32.mrf.mxu0
    %v1318 = vadd.f32 %v1089, %v1317
    %v1319 = vpop.f32.mrf.mxu0
    %v1320 = vadd.f32 %v1089, %v1319
    %1321 = vmatmul.bf16.gmra.mxu0 %v1051
    %v1322 = vpop.f32.mrf.mxu0
    %v1323 = vadd.f32 %v1089, %v1322
    %v1324 = vpop.f32.mrf.mxu0
    %v1325 = vadd.f32 %v1089, %v1324
    %1326 = vmatmul.bf16.gmra.mxu0 %v1052
    %v1327 = vpop.f32.mrf.mxu0
    %v1328 = vadd.f32 %v1089, %v1327
    %v1329 = vpop.f32.mrf.mxu0
    %v1330 = vadd.f32 %v1089, %v1329
    %1331 = vdwg.mxu0
    %1332 = vmatpush.bf16.msra.mxu0 %v1197
    %1333 = vmatpush.bf16.msra.mxu0 %v1194
    %1334 = vmatpush.bf16.msra.mxu0 %v1191
    %1335 = vmatpush.bf16.msra.mxu0 %v1188
    %1336 = vmatpush.bf16.msra.mxu0 %v1185
    %1337 = vmatpush.bf16.msra.mxu0 %v1182
    %1338 = vmatpush.bf16.msra.mxu0 %v1179
    %1339 = vmatpush.bf16.msra.mxu0 %v1176
    %1340 = vmatmul.bf16.gmra.mxu0 %v943
    %v1341 = vpop.f32.mrf.mxu0
    %v1342 = vadd.f32 %v1090, %v1341
    %v1343 = vpop.f32.mrf.mxu0
    %v1344 = vadd.f32 %v1090, %v1343
    %1345 = vmatmul.bf16.gmra.mxu0 %v944
    %v1346 = vpop.f32.mrf.mxu0
    %v1347 = vadd.f32 %v1090, %v1346
    %v1348 = vpop.f32.mrf.mxu0
    %v1349 = vadd.f32 %v1090, %v1348
    %1350 = vmatmul.bf16.gmra.mxu0 %v955
    %v1351 = vpop.f32.mrf.mxu0
    %v1352 = vadd.f32 %v1090, %v1351
    %v1353 = vpop.f32.mrf.mxu0
    %v1354 = vadd.f32 %v1090, %v1353
    %1355 = vmatmul.bf16.gmra.mxu0 %v956
    %v1356 = vpop.f32.mrf.mxu0
    %v1357 = vadd.f32 %v1090, %v1356
    %v1358 = vpop.f32.mrf.mxu0
    %v1359 = vadd.f32 %v1090, %v1358
    %1360 = vmatmul.bf16.gmra.mxu0 %v967
    %v1361 = vpop.f32.mrf.mxu0
    %v1362 = vadd.f32 %v1090, %v1361
    %v1363 = vpop.f32.mrf.mxu0
    %v1364 = vadd.f32 %v1090, %v1363
    %1365 = vmatmul.bf16.gmra.mxu0 %v968
    %v1366 = vpop.f32.mrf.mxu0
    %v1367 = vadd.f32 %v1090, %v1366
    %v1368 = vpop.f32.mrf.mxu0
    %v1369 = vadd.f32 %v1090, %v1368
    %1370 = vmatmul.bf16.gmra.mxu0 %v979
    %v1371 = vpop.f32.mrf.mxu0
    %v1372 = vadd.f32 %v1090, %v1371
    %v1373 = vpop.f32.mrf.mxu0
    %v1374 = vadd.f32 %v1090, %v1373
    %1375 = vmatmul.bf16.gmra.mxu0 %v980
    %v1376 = vpop.f32.mrf.mxu0
    %v1377 = vadd.f32 %v1090, %v1376
    %v1378 = vpop.f32.mrf.mxu0
    %v1379 = vadd.f32 %v1090, %v1378
    %1380 = vmatmul.bf16.gmra.mxu0 %v991
    %v1381 = vpop.f32.mrf.mxu0
    %v1382 = vadd.f32 %v1090, %v1381
    %v1383 = vpop.f32.mrf.mxu0
    %v1384 = vadd.f32 %v1090, %v1383
    %1385 = vmatmul.bf16.gmra.mxu0 %v992
    %v1386 = vpop.f32.mrf.mxu0
    %v1387 = vadd.f32 %v1090, %v1386
    %v1388 = vpop.f32.mrf.mxu0
    %v1389 = vadd.f32 %v1090, %v1388
    %1390 = vmatmul.bf16.gmra.mxu0 %v1003
    %v1391 = vpop.f32.mrf.mxu0
    %v1392 = vadd.f32 %v1090, %v1391
    %v1393 = vpop.f32.mrf.mxu0
    %v1394 = vadd.f32 %v1090, %v1393
    %1395 = vmatmul.bf16.gmra.mxu0 %v1004
    %v1396 = vpop.f32.mrf.mxu0
    %v1397 = vadd.f32 %v1090, %v1396
    %v1398 = vpop.f32.mrf.mxu0
    %v1399 = vadd.f32 %v1090, %v1398
    %1400 = vmatmul.bf16.gmra.mxu0 %v1015
    %v1401 = vpop.f32.mrf.mxu0
    %v1402 = vadd.f32 %v1090, %v1401
    %v1403 = vpop.f32.mrf.mxu0
    %v1404 = vadd.f32 %v1090, %v1403
    %1405 = vmatmul.bf16.gmra.mxu0 %v1016
    %v1406 = vpop.f32.mrf.mxu0
    %v1407 = vadd.f32 %v1090, %v1406
    %v1408 = vpop.f32.mrf.mxu0
    %v1409 = vadd.f32 %v1090, %v1408
    %1410 = vmatmul.bf16.gmra.mxu0 %v1027
    %v1411 = vpop.f32.mrf.mxu0
    %v1412 = vadd.f32 %v1090, %v1411
    %v1413 = vpop.f32.mrf.mxu0
    %v1414 = vadd.f32 %v1090, %v1413
    %1415 = vmatmul.bf16.gmra.mxu0 %v1028
    %v1416 = vpop.f32.mrf.mxu0
    %v1417 = vadd.f32 %v1090, %v1416
    %v1418 = vpop.f32.mrf.mxu0
    %v1419 = vadd.f32 %v1090, %v1418
    %1420 = vmatmul.bf16.gmra.mxu0 %v1039
    %v1421 = vpop.f32.mrf.mxu0
    %v1422 = vadd.f32 %v1090, %v1421
    %v1423 = vpop.f32.mrf.mxu0
    %v1424 = vadd.f32 %v1090, %v1423
    %1425 = vmatmul.bf16.gmra.mxu0 %v1040
    %v1426 = vpop.f32.mrf.mxu0
    %v1427 = vadd.f32 %v1090, %v1426
    %v1428 = vpop.f32.mrf.mxu0
    %v1429 = vadd.f32 %v1090, %v1428
    %1430 = vmatmul.bf16.gmra.mxu0 %v1051
    %v1431 = vpop.f32.mrf.mxu0
    %v1432 = vadd.f32 %v1090, %v1431
    %v1433 = vpop.f32.mrf.mxu0
    %v1434 = vadd.f32 %v1090, %v1433
    %1435 = vmatmul.bf16.gmra.mxu0 %v1052
    %v1436 = vpop.f32.mrf.mxu0
    %v1437 = vadd.f32 %v1090, %v1436
    %v1438 = vpop.f32.mrf.mxu0
    %v1439 = vadd.f32 %v1090, %v1438
    %1440 = vdwg.mxu0
    %1441 = vmatpush.bf16.msra.mxu0 %v1198
    %1442 = vmatpush.bf16.msra.mxu0 %v1195
    %1443 = vmatpush.bf16.msra.mxu0 %v1192
    %1444 = vmatpush.bf16.msra.mxu0 %v1189
    %1445 = vmatpush.bf16.msra.mxu0 %v1186
    %1446 = vmatpush.bf16.msra.mxu0 %v1183
    %1447 = vmatpush.bf16.msra.mxu0 %v1180
    %1448 = vmatpush.bf16.msra.mxu0 %v1177
    %1449 = vmatmul.bf16.gmra.mxu0 %v943
    %v1450 = vpop.f32.mrf.mxu0
    %v1451 = vadd.f32 %v1091, %v1450
    %v1452 = vpop.f32.mrf.mxu0
    %v1453 = vadd.f32 %v1091, %v1452
    %1454 = vmatmul.bf16.gmra.mxu0 %v944
    %v1455 = vpop.f32.mrf.mxu0
    %v1456 = vadd.f32 %v1091, %v1455
    %v1457 = vpop.f32.mrf.mxu0
    %v1458 = vadd.f32 %v1091, %v1457
    %1459 = vmatmul.bf16.gmra.mxu0 %v955
    %v1460 = vpop.f32.mrf.mxu0
    %v1461 = vadd.f32 %v1091, %v1460
    %v1462 = vpop.f32.mrf.mxu0
    %v1463 = vadd.f32 %v1091, %v1462
    %1464 = vmatmul.bf16.gmra.mxu0 %v956
    %v1465 = vpop.f32.mrf.mxu0
    %v1466 = vadd.f32 %v1091, %v1465
    %v1467 = vpop.f32.mrf.mxu0
    %v1468 = vadd.f32 %v1091, %v1467
    %1469 = vmatmul.bf16.gmra.mxu0 %v967
    %v1470 = vpop.f32.mrf.mxu0
    %v1471 = vadd.f32 %v1091, %v1470
    %v1472 = vpop.f32.mrf.mxu0
    %v1473 = vadd.f32 %v1091, %v1472
    %1474 = vmatmul.bf16.gmra.mxu0 %v968
    %v1475 = vpop.f32.mrf.mxu0
    %v1476 = vadd.f32 %v1091, %v1475
    %v1477 = vpop.f32.mrf.mxu0
    %v1478 = vadd.f32 %v1091, %v1477
    %1479 = vmatmul.bf16.gmra.mxu0 %v979
    %v1480 = vpop.f32.mrf.mxu0
    %v1481 = vadd.f32 %v1091, %v1480
    %v1482 = vpop.f32.mrf.mxu0
    %v1483 = vadd.f32 %v1091, %v1482
    %1484 = vmatmul.bf16.gmra.mxu0 %v980
    %v1485 = vpop.f32.mrf.mxu0
    %v1486 = vadd.f32 %v1091, %v1485
    %v1487 = vpop.f32.mrf.mxu0
    %v1488 = vadd.f32 %v1091, %v1487
    %1489 = vmatmul.bf16.gmra.mxu0 %v991
    %v1490 = vpop.f32.mrf.mxu0
    %v1491 = vadd.f32 %v1091, %v1490
    %v1492 = vpop.f32.mrf.mxu0
    %v1493 = vadd.f32 %v1091, %v1492
    %1494 = vmatmul.bf16.gmra.mxu0 %v992
    %v1495 = vpop.f32.mrf.mxu0
    %v1496 = vadd.f32 %v1091, %v1495
    %v1497 = vpop.f32.mrf.mxu0
    %v1498 = vadd.f32 %v1091, %v1497
    %1499 = vmatmul.bf16.gmra.mxu0 %v1003
    %v1500 = vpop.f32.mrf.mxu0
    %v1501 = vadd.f32 %v1091, %v1500
    %v1502 = vpop.f32.mrf.mxu0
    %v1503 = vadd.f32 %v1091, %v1502
    %1504 = vmatmul.bf16.gmra.mxu0 %v1004
    %v1505 = vpop.f32.mrf.mxu0
    %v1506 = vadd.f32 %v1091, %v1505
    %v1507 = vpop.f32.mrf.mxu0
    %v1508 = vadd.f32 %v1091, %v1507
    %1509 = vmatmul.bf16.gmra.mxu0 %v1015
    %v1510 = vpop.f32.mrf.mxu0
    %v1511 = vadd.f32 %v1091, %v1510
    %v1512 = vpop.f32.mrf.mxu0
    %v1513 = vadd.f32 %v1091, %v1512
    %1514 = vmatmul.bf16.gmra.mxu0 %v1016
    %v1515 = vpop.f32.mrf.mxu0
    %v1516 = vadd.f32 %v1091, %v1515
    %v1517 = vpop.f32.mrf.mxu0
    %v1518 = vadd.f32 %v1091, %v1517
    %1519 = vmatmul.bf16.gmra.mxu0 %v1027
    %v1520 = vpop.f32.mrf.mxu0
    %v1521 = vadd.f32 %v1091, %v1520
    %v1522 = vpop.f32.mrf.mxu0
    %v1523 = vadd.f32 %v1091, %v1522
    %1524 = vmatmul.bf16.gmra.mxu0 %v1028
    %v1525 = vpop.f32.mrf.mxu0
    %v1526 = vadd.f32 %v1091, %v1525
    %v1527 = vpop.f32.mrf.mxu0
    %v1528 = vadd.f32 %v1091, %v1527
    %1529 = vmatmul.bf16.gmra.mxu0 %v1039
    %v1530 = vpop.f32.mrf.mxu0
    %v1531 = vadd.f32 %v1091, %v1530
    %v1532 = vpop.f32.mrf.mxu0
    %v1533 = vadd.f32 %v1091, %v1532
    %1534 = vmatmul.bf16.gmra.mxu0 %v1040
    %v1535 = vpop.f32.mrf.mxu0
    %v1536 = vadd.f32 %v1091, %v1535
    %v1537 = vpop.f32.mrf.mxu0
    %v1538 = vadd.f32 %v1091, %v1537
    %1539 = vmatmul.bf16.gmra.mxu0 %v1051
    %v1540 = vpop.f32.mrf.mxu0
    %v1541 = vadd.f32 %v1091, %v1540
    %v1542 = vpop.f32.mrf.mxu0
    %v1543 = vadd.f32 %v1091, %v1542
    %1544 = vmatmul.bf16.gmra.mxu0 %v1052
    %v1545 = vpop.f32.mrf.mxu0
    %v1546 = vadd.f32 %v1091, %v1545
    %v1547 = vpop.f32.mrf.mxu0
    %v1548 = vadd.f32 %v1091, %v1547
    %1549 = vdwg.mxu0
    %v1550 = vpack.c.bf16 %v1342, %v1233
    %v1551 = vpack.c.bf16 %v1451, %v1451
    %v1552 = vpack.c.bf16 %v1344, %v1235
    %v1553 = vpack.c.bf16 %v1453, %v1453
    %v1554 = vpack.c.bf16 %v1347, %v1238
    %v1555 = vpack.c.bf16 %v1456, %v1456
    %v1556 = vpack.c.bf16 %v1349, %v1240
    %v1557 = vpack.c.bf16 %v1458, %v1458
    %v1558 = vpack.c.bf16 %v1352, %v1243
    %v1559 = vpack.c.bf16 %v1461, %v1461
    %v1560 = vpack.c.bf16 %v1354, %v1245
    %v1561 = vpack.c.bf16 %v1463, %v1463
    %v1562 = vpack.c.bf16 %v1357, %v1248
    %v1563 = vpack.c.bf16 %v1466, %v1466
    %v1564 = vpack.c.bf16 %v1359, %v1250
    %v1565 = vpack.c.bf16 %v1468, %v1468
    %v1566 = vpack.c.bf16 %v1362, %v1253
    %v1567 = vpack.c.bf16 %v1471, %v1471
    %v1568 = vpack.c.bf16 %v1364, %v1255
    %v1569 = vpack.c.bf16 %v1473, %v1473
    %v1570 = vpack.c.bf16 %v1367, %v1258
    %v1571 = vpack.c.bf16 %v1476, %v1476
    %v1572 = vpack.c.bf16 %v1369, %v1260
    %v1573 = vpack.c.bf16 %v1478, %v1478
    %v1574 = vpack.c.bf16 %v1372, %v1263
    %v1575 = vpack.c.bf16 %v1481, %v1481
    %v1576 = vpack.c.bf16 %v1374, %v1265
    %v1577 = vpack.c.bf16 %v1483, %v1483
    %v1578 = vpack.c.bf16 %v1377, %v1268
    %v1579 = vpack.c.bf16 %v1486, %v1486
    %v1580 = vpack.c.bf16 %v1379, %v1270
    %v1581 = vpack.c.bf16 %v1488, %v1488
    %v1582 = vpack.c.bf16 %v1382, %v1273
    %v1583 = vpack.c.bf16 %v1491, %v1491
    %v1584 = vpack.c.bf16 %v1384, %v1275
    %v1585 = vpack.c.bf16 %v1493, %v1493
    %v1586 = vpack.c.bf16 %v1387, %v1278
    %v1587 = vpack.c.bf16 %v1496, %v1496
    %v1588 = vpack.c.bf16 %v1389, %v1280
    %v1589 = vpack.c.bf16 %v1498, %v1498
    %v1590 = vpack.c.bf16 %v1392, %v1283
    %v1591 = vpack.c.bf16 %v1501, %v1501
    %v1592 = vpack.c.bf16 %v1394, %v1285
    %v1593 = vpack.c.bf16 %v1503, %v1503
    %v1594 = vpack.c.bf16 %v1397, %v1288
    %v1595 = vpack.c.bf16 %v1506, %v1506
    %v1596 = vpack.c.bf16 %v1399, %v1290
    %v1597 = vpack.c.bf16 %v1508, %v1508
    %v1598 = vpack.c.bf16 %v1402, %v1293
    %v1599 = vpack.c.bf16 %v1511, %v1511
    %v1600 = vpack.c.bf16 %v1404, %v1295
    %v1601 = vpack.c.bf16 %v1513, %v1513
    %v1602 = vpack.c.bf16 %v1407, %v1298
    %v1603 = vpack.c.bf16 %v1516, %v1516
    %v1604 = vpack.c.bf16 %v1409, %v1300
    %v1605 = vpack.c.bf16 %v1518, %v1518
    %v1606 = vpack.c.bf16 %v1412, %v1303
    %v1607 = vpack.c.bf16 %v1521, %v1521
    %v1608 = vpack.c.bf16 %v1414, %v1305
    %v1609 = vpack.c.bf16 %v1523, %v1523
    %v1610 = vpack.c.bf16 %v1417, %v1308
    %v1611 = vpack.c.bf16 %v1526, %v1526
    %v1612 = vpack.c.bf16 %v1419, %v1310
    %v1613 = vpack.c.bf16 %v1528, %v1528
    %v1614 = vpack.c.bf16 %v1422, %v1313
    %v1615 = vpack.c.bf16 %v1531, %v1531
    %v1616 = vpack.c.bf16 %v1424, %v1315
    %v1617 = vpack.c.bf16 %v1533, %v1533
    %v1618 = vpack.c.bf16 %v1427, %v1318
    %v1619 = vpack.c.bf16 %v1536, %v1536
    %v1620 = vpack.c.bf16 %v1429, %v1320
    %v1621 = vpack.c.bf16 %v1538, %v1538
    %v1622 = vpack.c.bf16 %v1432, %v1323
    %v1623 = vpack.c.bf16 %v1541, %v1541
    %v1624 = vpack.c.bf16 %v1434, %v1325
    %v1625 = vpack.c.bf16 %v1543, %v1543
    %v1626 = vpack.c.bf16 %v1437, %v1328
    %v1627 = vpack.c.bf16 %v1546, %v1546
    %v1628 = vpack.c.bf16 %v1439, %v1330
    %v1629 = vpack.c.bf16 %v1548, %v1548
    %1630 = vst [vmem:[#allocation2] sm:$0xff] %v1550
    %1631 = vst [vmem:[#allocation2 + $0x8] sm:$0xf] %v1551
    %1632 = vst [vmem:[#allocation2 + $0xc] sm:$0xff] %v1552
    %1633 = vst [vmem:[#allocation2 + $0x14] sm:$0xf] %v1553
    %1634 = vst [vmem:[#allocation2 + $0x18] sm:$0xff] %v1554
    %1635 = vst [vmem:[#allocation2 + $0x20] sm:$0xf] %v1555
    %1636 = vst [vmem:[#allocation2 + $0x24] sm:$0xff] %v1556
    %1637 = vst [vmem:[#allocation2 + $0x2c] sm:$0xf] %v1557
    %1638 = vst [vmem:[#allocation2 + $0x30] sm:$0xff] %v1558
    %1639 = vst [vmem:[#allocation2 + $0x38] sm:$0xf] %v1559
    %1640 = vst [vmem:[#allocation2 + $0x3c] sm:$0xff] %v1560
    %1641 = vst [vmem:[#allocation2 + $0x44] sm:$0xf] %v1561
    %1642 = vst [vmem:[#allocation2 + $0x48] sm:$0xff] %v1562
    %1643 = vst [vmem:[#allocation2 + $0x50] sm:$0xf] %v1563
    %1644 = vst [vmem:[#allocation2 + $0x54] sm:$0xff] %v1564
    %1645 = vst [vmem:[#allocation2 + $0x5c] sm:$0xf] %v1565
    %1646 = vst [vmem:[#allocation2 + $0x60] sm:$0xff] %v1566
    %1647 = vst [vmem:[#allocation2 + $0x68] sm:$0xf] %v1567
    %1648 = vst [vmem:[#allocation2 + $0x6c] sm:$0xff] %v1568
    %1649 = vst [vmem:[#allocation2 + $0x74] sm:$0xf] %v1569
    %1650 = vst [vmem:[#allocation2 + $0x78] sm:$0xff] %v1570
    %1651 = vst [vmem:[#allocation2 + $0x80] sm:$0xf] %v1571
    %1652 = vst [vmem:[#allocation2 + $0x84] sm:$0xff] %v1572
    %1653 = vst [vmem:[#allocation2 + $0x8c] sm:$0xf] %v1573
    %1654 = vst [vmem:[#allocation2 + $0x90] sm:$0xff] %v1574
    %1655 = vst [vmem:[#allocation2 + $0x98] sm:$0xf] %v1575
    %1656 = vst [vmem:[#allocation2 + $0x9c] sm:$0xff] %v1576
    %1657 = vst [vmem:[#allocation2 + $0xa4] sm:$0xf] %v1577
    %1658 = vst [vmem:[#allocation2 + $0xa8] sm:$0xff] %v1578
    %1659 = vst [vmem:[#allocation2 + $0xb0] sm:$0xf] %v1579
    %1660 = vst [vmem:[#allocation2 + $0xb4] sm:$0xff] %v1580
    %1661 = vst [vmem:[#allocation2 + $0xbc] sm:$0xf] %v1581
    %1662 = vst [vmem:[#allocation2 + $0xc0] sm:$0xff] %v1582
    %1663 = vst [vmem:[#allocation2 + $0xc8] sm:$0xf] %v1583
    %1664 = vst [vmem:[#allocation2 + $0xcc] sm:$0xff] %v1584
    %1665 = vst [vmem:[#allocation2 + $0xd4] sm:$0xf] %v1585
    %1666 = vst [vmem:[#allocation2 + $0xd8] sm:$0xff] %v1586
    %1667 = vst [vmem:[#allocation2 + $0xe0] sm:$0xf] %v1587
    %1668 = vst [vmem:[#allocation2 + $0xe4] sm:$0xff] %v1588
    %1669 = vst [vmem:[#allocation2 + $0xec] sm:$0xf] %v1589
    %1670 = vst [vmem:[#allocation2 + $0xf0] sm:$0xff] %v1590
    %1671 = vst [vmem:[#allocation2 + $0xf8] sm:$0xf] %v1591
    %1672 = vst [vmem:[#allocation2 + $0xfc] sm:$0xff] %v1592
    %1673 = vst [vmem:[#allocation2 + $0x104] sm:$0xf] %v1593
    %1674 = vst [vmem:[#allocation2 + $0x108] sm:$0xff] %v1594
    %1675 = vst [vmem:[#allocation2 + $0x110] sm:$0xf] %v1595
    %1676 = vst [vmem:[#allocation2 + $0x114] sm:$0xff] %v1596
    %1677 = vst [vmem:[#allocation2 + $0x11c] sm:$0xf] %v1597
    %1678 = vst [vmem:[#allocation2 + $0x120] sm:$0xff] %v1598
    %1679 = vst [vmem:[#allocation2 + $0x128] sm:$0xf] %v1599
    %1680 = vst [vmem:[#allocation2 + $0x12c] sm:$0xff] %v1600
    %1681 = vst [vmem:[#allocation2 + $0x134] sm:$0xf] %v1601
    %1682 = vst [vmem:[#allocation2 + $0x138] sm:$0xff] %v1602
    %1683 = vst [vmem:[#allocation2 + $0x140] sm:$0xf] %v1603
    %1684 = vst [vmem:[#allocation2 + $0x144] sm:$0xff] %v1604
    %1685 = vst [vmem:[#allocation2 + $0x14c] sm:$0xf] %v1605
    %1686 = vst [vmem:[#allocation2 + $0x150] sm:$0xff] %v1606
    %1687 = vst [vmem:[#allocation2 + $0x158] sm:$0xf] %v1607
    %1688 = vst [vmem:[#allocation2 + $0x15c] sm:$0xff] %v1608
    %1689 = vst [vmem:[#allocation2 + $0x164] sm:$0xf] %v1609
    %1690 = vst [vmem:[#allocation2 + $0x168] sm:$0xff] %v1610
    %1691 = vst [vmem:[#allocation2 + $0x170] sm:$0xf] %v1611
    %1692 = vst [vmem:[#allocation2 + $0x174] sm:$0xff] %v1612
    %1693 = vst [vmem:[#allocation2 + $0x17c] sm:$0xf] %v1613
    %1694 = vst [vmem:[#allocation2 + $0x180] sm:$0xff] %v1614
    %1695 = vst [vmem:[#allocation2 + $0x188] sm:$0xf] %v1615
    %1696 = vst [vmem:[#allocation2 + $0x18c] sm:$0xff] %v1616
    %1697 = vst [vmem:[#allocation2 + $0x194] sm:$0xf] %v1617
    %1698 = vst [vmem:[#allocation2 + $0x198] sm:$0xff] %v1618
    %1699 = vst [vmem:[#allocation2 + $0x1a0] sm:$0xf] %v1619
    %1700 = vst [vmem:[#allocation2 + $0x1a4] sm:$0xff] %v1620
    %1701 = vst [vmem:[#allocation2 + $0x1ac] sm:$0xf] %v1621
    %1702 = vst [vmem:[#allocation2 + $0x1b0] sm:$0xff] %v1622
    %1703 = vst [vmem:[#allocation2 + $0x1b8] sm:$0xf] %v1623
    %1704 = vst [vmem:[#allocation2 + $0x1bc] sm:$0xff] %v1624
    %1705 = vst [vmem:[#allocation2 + $0x1c4] sm:$0xf] %v1625
    %1706 = vst [vmem:[#allocation2 + $0x1c8] sm:$0xff] %v1626
    %1707 = vst [vmem:[#allocation2 + $0x1d0] sm:$0xf] %v1627
    %1708 = vst [vmem:[#allocation2 + $0x1d4] sm:$0xff] %v1628
    %1709 = vst [vmem:[#allocation2 + $0x1dc] sm:$0xf] %v1629
    %v1710 = vld [vmem:[#allocation2] sm:$0xff]
    %v1711 = vld [vmem:[#allocation2 + $0x8] sm:$0xf]
    %v1712 = vld [vmem:[#allocation2 + $0xc] sm:$0xff]
    %v1713 = vld [vmem:[#allocation2 + $0x14] sm:$0xf]
    %v1714 = vld [vmem:[#allocation2 + $0x18] sm:$0xff]
    %v1715 = vld [vmem:[#allocation2 + $0x20] sm:$0xf]
    %v1716 = vld [vmem:[#allocation2 + $0x24] sm:$0xff]
    %v1717 = vld [vmem:[#allocation2 + $0x2c] sm:$0xf]
    %v1718 = vunpack.c.l.bf16 %v1710
    %v1719 = vunpack.c.h.bf16 %v1710
    %v1720 = vunpack.c.l.bf16 %v1711
    %v1721 = vunpack.c.l.bf16 %v1712
    %v1722 = vunpack.c.h.bf16 %v1712
    %v1723 = vunpack.c.l.bf16 %v1713
    %v1724 = vunpack.c.l.bf16 %v1714
    %v1725 = vunpack.c.h.bf16 %v1714
    %v1726 = vunpack.c.l.bf16 %v1715
    %v1727 = vunpack.c.l.bf16 %v1716
    %v1728 = vunpack.c.h.bf16 %v1716
    %v1729 = vunpack.c.l.bf16 %v1717
    %v1730 = vadd.f32 %v1718, 0.0
    %v1731 = vadd.f32 %v1719, 0.0
    %v1732 = vadd.f32 %v1720, 0.0
    %v1733 = vadd.f32 %v1721, 0.0
    %v1734 = vadd.f32 %v1722, 0.0
    %v1735 = vadd.f32 %v1723, 0.0
    %v1736 = vadd.f32 %v1724, 0.0
    %v1737 = vadd.f32 %v1725, 0.0
    %v1738 = vadd.f32 %v1726, 0.0
    %v1739 = vadd.f32 %v1727, 0.0
    %v1740 = vadd.f32 %v1728, 0.0
    %v1741 = vadd.f32 %v1729, 0.0
    %vm1742 = vcmp.ge.f32.partialorder %v1730, 1.0
    %vm1743 = vcmp.ge.f32.partialorder %v1731, 1.0
    %vm1744 = vcmp.ge.f32.partialorder %v1732, 1.0
    %vm1745 = vcmp.ge.f32.partialorder %v1733, 1.0
    %vm1746 = vcmp.ge.f32.partialorder %v1734, 1.0
    %vm1747 = vcmp.ge.f32.partialorder %v1735, 1.0
    %vm1748 = vcmp.ge.f32.partialorder %v1736, 1.0
    %vm1749 = vcmp.ge.f32.partialorder %v1737, 1.0
    %vm1750 = vcmp.ge.f32.partialorder %v1738, 1.0
    %vm1751 = vcmp.ge.f32.partialorder %v1739, 1.0
    %vm1752 = vcmp.ge.f32.partialorder %v1740, 1.0
    %vm1753 = vcmp.ge.f32.partialorder %v1741, 1.0
    %v1754 = vsel %vm1742, 1, 0
    %v1755 = vsel %vm1743, 1, 0
    %v1756 = vsel %vm1744, 1, 0
    %v1757 = vsel %vm1745, 1, 0
    %v1758 = vsel %vm1746, 1, 0
    %v1759 = vsel %vm1747, 1, 0
    %v1760 = vsel %vm1748, 1, 0
    %v1761 = vsel %vm1749, 1, 0
    %v1762 = vsel %vm1750, 1, 0
    %v1763 = vsel %vm1751, 1, 0
    %v1764 = vsel %vm1752, 1, 0
    %v1765 = vsel %vm1753, 1, 0
    %v1766 = vcvt.s32.f32 %v1754
    %v1767 = vcvt.s32.f32 %v1755
    %v1768 = vcvt.s32.f32 %v1756
    %v1769 = vcvt.s32.f32 %v1757
    %v1770 = vcvt.s32.f32 %v1758
    %v1771 = vcvt.s32.f32 %v1759
    %v1772 = vcvt.s32.f32 %v1760
    %v1773 = vcvt.s32.f32 %v1761
    %v1774 = vcvt.s32.f32 %v1762
    %v1775 = vcvt.s32.f32 %v1763
    %v1776 = vcvt.s32.f32 %v1764
    %v1777 = vcvt.s32.f32 %v1765
    %v1778 = vsel %vm1742, 0.0, %v1730
    %v1779 = vsel %vm1743, 0.0, %v1731
    %v1780 = vsel %vm1744, 0.0, %v1732
    %v1781 = vsel %vm1745, 0.0, %v1733
    %v1782 = vsel %vm1746, 0.0, %v1734
    %v1783 = vsel %vm1747, 0.0, %v1735
    %v1784 = vsel %vm1748, 0.0, %v1736
    %v1785 = vsel %vm1749, 0.0, %v1737
    %v1786 = vsel %vm1750, 0.0, %v1738
    %v1787 = vsel %vm1751, 0.0, %v1739
    %v1788 = vsel %vm1752, 0.0, %v1740
    %v1789 = vsel %vm1753, 0.0, %v1741
    %v1790 = vadd.f32 %v1766, 0.0
    %v1791 = vadd.f32 %v1767, 0.0
    %v1792 = vadd.f32 %v1768, 0.0
    %v1793 = vadd.f32 %v1769, 0.0
    %v1794 = vadd.f32 %v1770, 0.0
    %v1795 = vadd.f32 %v1771, 0.0
    %v1796 = vadd.f32 %v1772, 0.0
    %v1797 = vadd.f32 %v1773, 0.0
    %v1798 = vadd.f32 %v1774, 0.0
    %v1799 = vadd.f32 %v1775, 0.0
    %v1800 = vadd.f32 %v1776, 0.0
    %v1801 = vadd.f32 %v1777, 0.0
    %v1802 = vmul.f32 %v1778, 0.9
    %v1803 = vmul.f32 %v1779, 0.9
    %v1804 = vmul.f32 %v1780, 0.9
    %v1805 = vmul.f32 %v1781, 0.9
    %v1806 = vmul.f32 %v1782, 0.9
    %v1807 = vmul.f32 %v1783, 0.9
    %v1808 = vmul.f32 %v1784, 0.9
    %v1809 = vmul.f32 %v1785, 0.9
    %v1810 = vmul.f32 %v1786, 0.9
    %v1811 = vmul.f32 %v1787, 0.9
    %v1812 = vmul.f32 %v1788, 0.9
    %v1813 = vmul.f32 %v1789, 0.9
    %s1814 = scalar_lea.vmem [#allocation2], 48
    %v1815 = vld [vmem:[%s1814] sm:$0xff]
    %v1816 = vld [vmem:[%s1814 + $0x8] sm:$0xf]
    %v1817 = vld [vmem:[%s1814 + $0xc] sm:$0xff]
    %v1818 = vld [vmem:[%s1814 + $0x14] sm:$0xf]
    %v1819 = vld [vmem:[%s1814 + $0x18] sm:$0xff]
    %v1820 = vld [vmem:[%s1814 + $0x20] sm:$0xf]
    %v1821 = vld [vmem:[%s1814 + $0x24] sm:$0xff]
    %v1822 = vld [vmem:[%s1814 + $0x2c] sm:$0xf]
    %v1823 = vunpack.c.l.bf16 %v1815
    %v1824 = vunpack.c.h.bf16 %v1815
    %v1825 = vunpack.c.l.bf16 %v1816
    %v1826 = vunpack.c.l.bf16 %v1817
    %v1827 = vunpack.c.h.bf16 %v1817
    %v1828 = vunpack.c.l.bf16 %v1818
    %v1829 = vunpack.c.l.bf16 %v1819
    %v1830 = vunpack.c.h.bf16 %v1819
    %v1831 = vunpack.c.l.bf16 %v1820
    %v1832 = vunpack.c.l.bf16 %v1821
    %v1833 = vunpack.c.h.bf16 %v1821
    %v1834 = vunpack.c.l.bf16 %v1822
    %v1835 = vadd.f32 %v1802, %v1823
    %v1836 = vadd.f32 %v1803, %v1824
    %v1837 = vadd.f32 %v1804, %v1825
    %v1838 = vadd.f32 %v1805, %v1826
    %v1839 = vadd.f32 %v1806, %v1827
    %v1840 = vadd.f32 %v1807, %v1828
    %v1841 = vadd.f32 %v1808, %v1829
    %v1842 = vadd.f32 %v1809, %v1830
    %v1843 = vadd.f32 %v1810, %v1831
    %v1844 = vadd.f32 %v1811, %v1832
    %v1845 = vadd.f32 %v1812, %v1833
    %v1846 = vadd.f32 %v1813, %v1834
    %vm1847 = vcmp.ge.f32.partialorder %v1835, 1.0
    %vm1848 = vcmp.ge.f32.partialorder %v1836, 1.0
    %vm1849 = vcmp.ge.f32.partialorder %v1837, 1.0
    %vm1850 = vcmp.ge.f32.partialorder %v1838, 1.0
    %vm1851 = vcmp.ge.f32.partialorder %v1839, 1.0
    %vm1852 = vcmp.ge.f32.partialorder %v1840, 1.0
    %vm1853 = vcmp.ge.f32.partialorder %v1841, 1.0
    %vm1854 = vcmp.ge.f32.partialorder %v1842, 1.0
    %vm1855 = vcmp.ge.f32.partialorder %v1843, 1.0
    %vm1856 = vcmp.ge.f32.partialorder %v1844, 1.0
    %vm1857 = vcmp.ge.f32.partialorder %v1845, 1.0
    %vm1858 = vcmp.ge.f32.partialorder %v1846, 1.0
    %v1859 = vsel %vm1847, 1, 0
    %v1860 = vsel %vm1848, 1, 0
    %v1861 = vsel %vm1849, 1, 0
    %v1862 = vsel %vm1850, 1, 0
    %v1863 = vsel %vm1851, 1, 0
    %v1864 = vsel %vm1852, 1, 0
    %v1865 = vsel %vm1853, 1, 0
    %v1866 = vsel %vm1854, 1, 0
    %v1867 = vsel %vm1855, 1, 0
    %v1868 = vsel %vm1856, 1, 0
    %v1869 = vsel %vm1857, 1, 0
    %v1870 = vsel %vm1858, 1, 0
    %v1871 = vcvt.s32.f32 %v1859
    %v1872 = vcvt.s32.f32 %v1860
    %v1873 = vcvt.s32.f32 %v1861
    %v1874 = vcvt.s32.f32 %v1862
    %v1875 = vcvt.s32.f32 %v1863
    %v1876 = vcvt.s32.f32 %v1864
    %v1877 = vcvt.s32.f32 %v1865
    %v1878 = vcvt.s32.f32 %v1866
    %v1879 = vcvt.s32.f32 %v1867
    %v1880 = vcvt.s32.f32 %v1868
    %v1881 = vcvt.s32.f32 %v1869
    %v1882 = vcvt.s32.f32 %v1870
    %v1883 = vsel %vm1847, 0.0, %v1835
    %v1884 = vsel %vm1848, 0.0, %v1836
    %v1885 = vsel %vm1849, 0.0, %v1837
    %v1886 = vsel %vm1850, 0.0, %v1838
    %v1887 = vsel %vm1851, 0.0, %v1839
    %v1888 = vsel %vm1852, 0.0, %v1840
    %v1889 = vsel %vm1853, 0.0, %v1841
    %v1890 = vsel %vm1854, 0.0, %v1842
    %v1891 = vsel %vm1855, 0.0, %v1843
    %v1892 = vsel %vm1856, 0.0, %v1844
    %v1893 = vsel %vm1857, 0.0, %v1845
    %v1894 = vsel %vm1858, 0.0, %v1846
    %v1895 = vadd.f32 %v1790, %v1871
    %v1896 = vadd.f32 %v1791, %v1872
    %v1897 = vadd.f32 %v1792, %v1873
    %v1898 = vadd.f32 %v1793, %v1874
    %v1899 = vadd.f32 %v1794, %v1875
    %v1900 = vadd.f32 %v1795, %v1876
    %v1901 = vadd.f32 %v1796, %v1877
    %v1902 = vadd.f32 %v1797, %v1878
    %v1903 = vadd.f32 %v1798, %v1879
    %v1904 = vadd.f32 %v1799, %v1880
    %v1905 = vadd.f32 %v1800, %v1881
    %v1906 = vadd.f32 %v1801, %v1882
    %v1907 = vmul.f32 %v1883, 0.9
    %v1908 = vmul.f32 %v1884, 0.9
    %v1909 = vmul.f32 %v1885, 0.9
    %v1910 = vmul.f32 %v1886, 0.9
    %v1911 = vmul.f32 %v1887, 0.9
    %v1912 = vmul.f32 %v1888, 0.9
    %v1913 = vmul.f32 %v1889, 0.9
    %v1914 = vmul.f32 %v1890, 0.9
    %v1915 = vmul.f32 %v1891, 0.9
    %v1916 = vmul.f32 %v1892, 0.9
    %v1917 = vmul.f32 %v1893, 0.9
    %v1918 = vmul.f32 %v1894, 0.9
    %s1919 = scalar_lea.vmem [#allocation2], 96
    %v1920 = vld [vmem:[%s1919] sm:$0xff]
    %v1921 = vld [vmem:[%s1919 + $0x8] sm:$0xf]
    %v1922 = vld [vmem:[%s1919 + $0xc] sm:$0xff]
    %v1923 = vld [vmem:[%s1919 + $0x14] sm:$0xf]
    %v1924 = vld [vmem:[%s1919 + $0x18] sm:$0xff]
    %v1925 = vld [vmem:[%s1919 + $0x20] sm:$0xf]
    %v1926 = vld [vmem:[%s1919 + $0x24] sm:$0xff]
    %v1927 = vld [vmem:[%s1919 + $0x2c] sm:$0xf]
    %v1928 = vunpack.c.l.bf16 %v1920
    %v1929 = vunpack.c.h.bf16 %v1920
    %v1930 = vunpack.c.l.bf16 %v1921
    %v1931 = vunpack.c.l.bf16 %v1922
    %v1932 = vunpack.c.h.bf16 %v1922
    %v1933 = vunpack.c.l.bf16 %v1923
    %v1934 = vunpack.c.l.bf16 %v1924
    %v1935 = vunpack.c.h.bf16 %v1924
    %v1936 = vunpack.c.l.bf16 %v1925
    %v1937 = vunpack.c.l.bf16 %v1926
    %v1938 = vunpack.c.h.bf16 %v1926
    %v1939 = vunpack.c.l.bf16 %v1927
    %v1940 = vadd.f32 %v1907, %v1928
    %v1941 = vadd.f32 %v1908, %v1929
    %v1942 = vadd.f32 %v1909, %v1930
    %v1943 = vadd.f32 %v1910, %v1931
    %v1944 = vadd.f32 %v1911, %v1932
    %v1945 = vadd.f32 %v1912, %v1933
    %v1946 = vadd.f32 %v1913, %v1934
    %v1947 = vadd.f32 %v1914, %v1935
    %v1948 = vadd.f32 %v1915, %v1936
    %v1949 = vadd.f32 %v1916, %v1937
    %v1950 = vadd.f32 %v1917, %v1938
    %v1951 = vadd.f32 %v1918, %v1939
    %vm1952 = vcmp.ge.f32.partialorder %v1940, 1.0
    %vm1953 = vcmp.ge.f32.partialorder %v1941, 1.0
    %vm1954 = vcmp.ge.f32.partialorder %v1942, 1.0
    %vm1955 = vcmp.ge.f32.partialorder %v1943, 1.0
    %vm1956 = vcmp.ge.f32.partialorder %v1944, 1.0
    %vm1957 = vcmp.ge.f32.partialorder %v1945, 1.0
    %vm1958 = vcmp.ge.f32.partialorder %v1946, 1.0
    %vm1959 = vcmp.ge.f32.partialorder %v1947, 1.0
    %vm1960 = vcmp.ge.f32.partialorder %v1948, 1.0
    %vm1961 = vcmp.ge.f32.partialorder %v1949, 1.0
    %vm1962 = vcmp.ge.f32.partialorder %v1950, 1.0
    %vm1963 = vcmp.ge.f32.partialorder %v1951, 1.0
    %v1964 = vsel %vm1952, 1, 0
    %v1965 = vsel %vm1953, 1, 0
    %v1966 = vsel %vm1954, 1, 0
    %v1967 = vsel %vm1955, 1, 0
    %v1968 = vsel %vm1956, 1, 0
    %v1969 = vsel %vm1957, 1, 0
    %v1970 = vsel %vm1958, 1, 0
    %v1971 = vsel %vm1959, 1, 0
    %v1972 = vsel %vm1960, 1, 0
    %v1973 = vsel %vm1961, 1, 0
    %v1974 = vsel %vm1962, 1, 0
    %v1975 = vsel %vm1963, 1, 0
    %v1976 = vcvt.s32.f32 %v1964
    %v1977 = vcvt.s32.f32 %v1965
    %v1978 = vcvt.s32.f32 %v1966
    %v1979 = vcvt.s32.f32 %v1967
    %v1980 = vcvt.s32.f32 %v1968
    %v1981 = vcvt.s32.f32 %v1969
    %v1982 = vcvt.s32.f32 %v1970
    %v1983 = vcvt.s32.f32 %v1971
    %v1984 = vcvt.s32.f32 %v1972
    %v1985 = vcvt.s32.f32 %v1973
    %v1986 = vcvt.s32.f32 %v1974
    %v1987 = vcvt.s32.f32 %v1975
    %v1988 = vsel %vm1952, 0.0, %v1940
    %v1989 = vsel %vm1953, 0.0, %v1941
    %v1990 = vsel %vm1954, 0.0, %v1942
    %v1991 = vsel %vm1955, 0.0, %v1943
    %v1992 = vsel %vm1956, 0.0, %v1944
    %v1993 = vsel %vm1957, 0.0, %v1945
    %v1994 = vsel %vm1958, 0.0, %v1946
    %v1995 = vsel %vm1959, 0.0, %v1947
    %v1996 = vsel %vm1960, 0.0, %v1948
    %v1997 = vsel %vm1961, 0.0, %v1949
    %v1998 = vsel %vm1962, 0.0, %v1950
    %v1999 = vsel %vm1963, 0.0, %v1951
    %v2000 = vadd.f32 %v1895, %v1976
    %v2001 = vadd.f32 %v1896, %v1977
    %v2002 = vadd.f32 %v1897, %v1978
    %v2003 = vadd.f32 %v1898, %v1979
    %v2004 = vadd.f32 %v1899, %v1980
    %v2005 = vadd.f32 %v1900, %v1981
    %v2006 = vadd.f32 %v1901, %v1982
    %v2007 = vadd.f32 %v1902, %v1983
    %v2008 = vadd.f32 %v1903, %v1984
    %v2009 = vadd.f32 %v1904, %v1985
    %v2010 = vadd.f32 %v1905, %v1986
    %v2011 = vadd.f32 %v1906, %v1987
    %v2012 = vmul.f32 %v1988, 0.9
    %v2013 = vmul.f32 %v1989, 0.9
    %v2014 = vmul.f32 %v1990, 0.9
    %v2015 = vmul.f32 %v1991, 0.9
    %v2016 = vmul.f32 %v1992, 0.9
    %v2017 = vmul.f32 %v1993, 0.9
    %v2018 = vmul.f32 %v1994, 0.9
    %v2019 = vmul.f32 %v1995, 0.9
    %v2020 = vmul.f32 %v1996, 0.9
    %v2021 = vmul.f32 %v1997, 0.9
    %v2022 = vmul.f32 %v1998, 0.9
    %v2023 = vmul.f32 %v1999, 0.9
    %s2024 = scalar_lea.vmem [#allocation2], 144
    %v2025 = vld [vmem:[%s2024] sm:$0xff]
    %v2026 = vld [vmem:[%s2024 + $0x8] sm:$0xf]
    %v2027 = vld [vmem:[%s2024 + $0xc] sm:$0xff]
    %v2028 = vld [vmem:[%s2024 + $0x14] sm:$0xf]
    %v2029 = vld [vmem:[%s2024 + $0x18] sm:$0xff]
    %v2030 = vld [vmem:[%s2024 + $0x20] sm:$0xf]
    %v2031 = vld [vmem:[%s2024 + $0x24] sm:$0xff]
    %v2032 = vld [vmem:[%s2024 + $0x2c] sm:$0xf]
    %v2033 = vunpack.c.l.bf16 %v2025
    %v2034 = vunpack.c.h.bf16 %v2025
    %v2035 = vunpack.c.l.bf16 %v2026
    %v2036 = vunpack.c.l.bf16 %v2027
    %v2037 = vunpack.c.h.bf16 %v2027
    %v2038 = vunpack.c.l.bf16 %v2028
    %v2039 = vunpack.c.l.bf16 %v2029
    %v2040 = vunpack.c.h.bf16 %v2029
    %v2041 = vunpack.c.l.bf16 %v2030
    %v2042 = vunpack.c.l.bf16 %v2031
    %v2043 = vunpack.c.h.bf16 %v2031
    %v2044 = vunpack.c.l.bf16 %v2032
    %v2045 = vadd.f32 %v2012, %v2033
    %v2046 = vadd.f32 %v2013, %v2034
    %v2047 = vadd.f32 %v2014, %v2035
    %v2048 = vadd.f32 %v2015, %v2036
    %v2049 = vadd.f32 %v2016, %v2037
    %v2050 = vadd.f32 %v2017, %v2038
    %v2051 = vadd.f32 %v2018, %v2039
    %v2052 = vadd.f32 %v2019, %v2040
    %v2053 = vadd.f32 %v2020, %v2041
    %v2054 = vadd.f32 %v2021, %v2042
    %v2055 = vadd.f32 %v2022, %v2043
    %v2056 = vadd.f32 %v2023, %v2044
    %vm2057 = vcmp.ge.f32.partialorder %v2045, 1.0
    %vm2058 = vcmp.ge.f32.partialorder %v2046, 1.0
    %vm2059 = vcmp.ge.f32.partialorder %v2047, 1.0
    %vm2060 = vcmp.ge.f32.partialorder %v2048, 1.0
    %vm2061 = vcmp.ge.f32.partialorder %v2049, 1.0
    %vm2062 = vcmp.ge.f32.partialorder %v2050, 1.0
    %vm2063 = vcmp.ge.f32.partialorder %v2051, 1.0
    %vm2064 = vcmp.ge.f32.partialorder %v2052, 1.0
    %vm2065 = vcmp.ge.f32.partialorder %v2053, 1.0
    %vm2066 = vcmp.ge.f32.partialorder %v2054, 1.0
    %vm2067 = vcmp.ge.f32.partialorder %v2055, 1.0
    %vm2068 = vcmp.ge.f32.partialorder %v2056, 1.0
    %v2069 = vsel %vm2057, 1, 0
    %v2070 = vsel %vm2058, 1, 0
    %v2071 = vsel %vm2059, 1, 0
    %v2072 = vsel %vm2060, 1, 0
    %v2073 = vsel %vm2061, 1, 0
    %v2074 = vsel %vm2062, 1, 0
    %v2075 = vsel %vm2063, 1, 0
    %v2076 = vsel %vm2064, 1, 0
    %v2077 = vsel %vm2065, 1, 0
    %v2078 = vsel %vm2066, 1, 0
    %v2079 = vsel %vm2067, 1, 0
    %v2080 = vsel %vm2068, 1, 0
    %v2081 = vcvt.s32.f32 %v2069
    %v2082 = vcvt.s32.f32 %v2070
    %v2083 = vcvt.s32.f32 %v2071
    %v2084 = vcvt.s32.f32 %v2072
    %v2085 = vcvt.s32.f32 %v2073
    %v2086 = vcvt.s32.f32 %v2074
    %v2087 = vcvt.s32.f32 %v2075
    %v2088 = vcvt.s32.f32 %v2076
    %v2089 = vcvt.s32.f32 %v2077
    %v2090 = vcvt.s32.f32 %v2078
    %v2091 = vcvt.s32.f32 %v2079
    %v2092 = vcvt.s32.f32 %v2080
    %v2093 = vsel %vm2057, 0.0, %v2045
    %v2094 = vsel %vm2058, 0.0, %v2046
    %v2095 = vsel %vm2059, 0.0, %v2047
    %v2096 = vsel %vm2060, 0.0, %v2048
    %v2097 = vsel %vm2061, 0.0, %v2049
    %v2098 = vsel %vm2062, 0.0, %v2050
    %v2099 = vsel %vm2063, 0.0, %v2051
    %v2100 = vsel %vm2064, 0.0, %v2052
    %v2101 = vsel %vm2065, 0.0, %v2053
    %v2102 = vsel %vm2066, 0.0, %v2054
    %v2103 = vsel %vm2067, 0.0, %v2055
    %v2104 = vsel %vm2068, 0.0, %v2056
    %v2105 = vadd.f32 %v2000, %v2081
    %v2106 = vadd.f32 %v2001, %v2082
    %v2107 = vadd.f32 %v2002, %v2083
    %v2108 = vadd.f32 %v2003, %v2084
    %v2109 = vadd.f32 %v2004, %v2085
    %v2110 = vadd.f32 %v2005, %v2086
    %v2111 = vadd.f32 %v2006, %v2087
    %v2112 = vadd.f32 %v2007, %v2088
    %v2113 = vadd.f32 %v2008, %v2089
    %v2114 = vadd.f32 %v2009, %v2090
    %v2115 = vadd.f32 %v2010, %v2091
    %v2116 = vadd.f32 %v2011, %v2092
    %v2117 = vmul.f32 %v2093, 0.9
    %v2118 = vmul.f32 %v2094, 0.9
    %v2119 = vmul.f32 %v2095, 0.9
    %v2120 = vmul.f32 %v2096, 0.9
    %v2121 = vmul.f32 %v2097, 0.9
    %v2122 = vmul.f32 %v2098, 0.9
    %v2123 = vmul.f32 %v2099, 0.9
    %v2124 = vmul.f32 %v2100, 0.9
    %v2125 = vmul.f32 %v2101, 0.9
    %v2126 = vmul.f32 %v2102, 0.9
    %v2127 = vmul.f32 %v2103, 0.9
    %v2128 = vmul.f32 %v2104, 0.9
    %s2129 = scalar_lea.vmem [#allocation2], 192
    %v2130 = vld [vmem:[%s2129] sm:$0xff]
    %v2131 = vld [vmem:[%s2129 + $0x8] sm:$0xf]
    %v2132 = vld [vmem:[%s2129 + $0xc] sm:$0xff]
    %v2133 = vld [vmem:[%s2129 + $0x14] sm:$0xf]
    %v2134 = vld [vmem:[%s2129 + $0x18] sm:$0xff]
    %v2135 = vld [vmem:[%s2129 + $0x20] sm:$0xf]
    %v2136 = vld [vmem:[%s2129 + $0x24] sm:$0xff]
    %v2137 = vld [vmem:[%s2129 + $0x2c] sm:$0xf]
    %v2138 = vunpack.c.l.bf16 %v2130
    %v2139 = vunpack.c.h.bf16 %v2130
    %v2140 = vunpack.c.l.bf16 %v2131
    %v2141 = vunpack.c.l.bf16 %v2132
    %v2142 = vunpack.c.h.bf16 %v2132
    %v2143 = vunpack.c.l.bf16 %v2133
    %v2144 = vunpack.c.l.bf16 %v2134
    %v2145 = vunpack.c.h.bf16 %v2134
    %v2146 = vunpack.c.l.bf16 %v2135
    %v2147 = vunpack.c.l.bf16 %v2136
    %v2148 = vunpack.c.h.bf16 %v2136
    %v2149 = vunpack.c.l.bf16 %v2137
    %v2150 = vadd.f32 %v2117, %v2138
    %v2151 = vadd.f32 %v2118, %v2139
    %v2152 = vadd.f32 %v2119, %v2140
    %v2153 = vadd.f32 %v2120, %v2141
    %v2154 = vadd.f32 %v2121, %v2142
    %v2155 = vadd.f32 %v2122, %v2143
    %v2156 = vadd.f32 %v2123, %v2144
    %v2157 = vadd.f32 %v2124, %v2145
    %v2158 = vadd.f32 %v2125, %v2146
    %v2159 = vadd.f32 %v2126, %v2147
    %v2160 = vadd.f32 %v2127, %v2148
    %v2161 = vadd.f32 %v2128, %v2149
    %vm2162 = vcmp.ge.f32.partialorder %v2150, 1.0
    %vm2163 = vcmp.ge.f32.partialorder %v2151, 1.0
    %vm2164 = vcmp.ge.f32.partialorder %v2152, 1.0
    %vm2165 = vcmp.ge.f32.partialorder %v2153, 1.0
    %vm2166 = vcmp.ge.f32.partialorder %v2154, 1.0
    %vm2167 = vcmp.ge.f32.partialorder %v2155, 1.0
    %vm2168 = vcmp.ge.f32.partialorder %v2156, 1.0
    %vm2169 = vcmp.ge.f32.partialorder %v2157, 1.0
    %vm2170 = vcmp.ge.f32.partialorder %v2158, 1.0
    %vm2171 = vcmp.ge.f32.partialorder %v2159, 1.0
    %vm2172 = vcmp.ge.f32.partialorder %v2160, 1.0
    %vm2173 = vcmp.ge.f32.partialorder %v2161, 1.0
    %v2174 = vsel %vm2162, 1, 0
    %v2175 = vsel %vm2163, 1, 0
    %v2176 = vsel %vm2164, 1, 0
    %v2177 = vsel %vm2165, 1, 0
    %v2178 = vsel %vm2166, 1, 0
    %v2179 = vsel %vm2167, 1, 0
    %v2180 = vsel %vm2168, 1, 0
    %v2181 = vsel %vm2169, 1, 0
    %v2182 = vsel %vm2170, 1, 0
    %v2183 = vsel %vm2171, 1, 0
    %v2184 = vsel %vm2172, 1, 0
    %v2185 = vsel %vm2173, 1, 0
    %v2186 = vcvt.s32.f32 %v2174
    %v2187 = vcvt.s32.f32 %v2175
    %v2188 = vcvt.s32.f32 %v2176
    %v2189 = vcvt.s32.f32 %v2177
    %v2190 = vcvt.s32.f32 %v2178
    %v2191 = vcvt.s32.f32 %v2179
    %v2192 = vcvt.s32.f32 %v2180
    %v2193 = vcvt.s32.f32 %v2181
    %v2194 = vcvt.s32.f32 %v2182
    %v2195 = vcvt.s32.f32 %v2183
    %v2196 = vcvt.s32.f32 %v2184
    %v2197 = vcvt.s32.f32 %v2185
    %v2198 = vsel %vm2162, 0.0, %v2150
    %v2199 = vsel %vm2163, 0.0, %v2151
    %v2200 = vsel %vm2164, 0.0, %v2152
    %v2201 = vsel %vm2165, 0.0, %v2153
    %v2202 = vsel %vm2166, 0.0, %v2154
    %v2203 = vsel %vm2167, 0.0, %v2155
    %v2204 = vsel %vm2168, 0.0, %v2156
    %v2205 = vsel %vm2169, 0.0, %v2157
    %v2206 = vsel %vm2170, 0.0, %v2158
    %v2207 = vsel %vm2171, 0.0, %v2159
    %v2208 = vsel %vm2172, 0.0, %v2160
    %v2209 = vsel %vm2173, 0.0, %v2161
    %v2210 = vadd.f32 %v2105, %v2186
    %v2211 = vadd.f32 %v2106, %v2187
    %v2212 = vadd.f32 %v2107, %v2188
    %v2213 = vadd.f32 %v2108, %v2189
    %v2214 = vadd.f32 %v2109, %v2190
    %v2215 = vadd.f32 %v2110, %v2191
    %v2216 = vadd.f32 %v2111, %v2192
    %v2217 = vadd.f32 %v2112, %v2193
    %v2218 = vadd.f32 %v2113, %v2194
    %v2219 = vadd.f32 %v2114, %v2195
    %v2220 = vadd.f32 %v2115, %v2196
    %v2221 = vadd.f32 %v2116, %v2197
    %v2222 = vmul.f32 %v2198, 0.9
    %v2223 = vmul.f32 %v2199, 0.9
    %v2224 = vmul.f32 %v2200, 0.9
    %v2225 = vmul.f32 %v2201, 0.9
    %v2226 = vmul.f32 %v2202, 0.9
    %v2227 = vmul.f32 %v2203, 0.9
    %v2228 = vmul.f32 %v2204, 0.9
    %v2229 = vmul.f32 %v2205, 0.9
    %v2230 = vmul.f32 %v2206, 0.9
    %v2231 = vmul.f32 %v2207, 0.9
    %v2232 = vmul.f32 %v2208, 0.9
    %v2233 = vmul.f32 %v2209, 0.9
    %s2234 = scalar_lea.vmem [#allocation2], 240
    %v2235 = vld [vmem:[%s2234] sm:$0xff]
    %v2236 = vld [vmem:[%s2234 + $0x8] sm:$0xf]
    %v2237 = vld [vmem:[%s2234 + $0xc] sm:$0xff]
    %v2238 = vld [vmem:[%s2234 + $0x14] sm:$0xf]
    %v2239 = vld [vmem:[%s2234 + $0x18] sm:$0xff]
    %v2240 = vld [vmem:[%s2234 + $0x20] sm:$0xf]
    %v2241 = vld [vmem:[%s2234 + $0x24] sm:$0xff]
    %v2242 = vld [vmem:[%s2234 + $0x2c] sm:$0xf]
    %v2243 = vunpack.c.l.bf16 %v2235
    %v2244 = vunpack.c.h.bf16 %v2235
    %v2245 = vunpack.c.l.bf16 %v2236
    %v2246 = vunpack.c.l.bf16 %v2237
    %v2247 = vunpack.c.h.bf16 %v2237
    %v2248 = vunpack.c.l.bf16 %v2238
    %v2249 = vunpack.c.l.bf16 %v2239
    %v2250 = vunpack.c.h.bf16 %v2239
    %v2251 = vunpack.c.l.bf16 %v2240
    %v2252 = vunpack.c.l.bf16 %v2241
    %v2253 = vunpack.c.h.bf16 %v2241
    %v2254 = vunpack.c.l.bf16 %v2242
    %v2255 = vadd.f32 %v2222, %v2243
    %v2256 = vadd.f32 %v2223, %v2244
    %v2257 = vadd.f32 %v2224, %v2245
    %v2258 = vadd.f32 %v2225, %v2246
    %v2259 = vadd.f32 %v2226, %v2247
    %v2260 = vadd.f32 %v2227, %v2248
    %v2261 = vadd.f32 %v2228, %v2249
    %v2262 = vadd.f32 %v2229, %v2250
    %v2263 = vadd.f32 %v2230, %v2251
    %v2264 = vadd.f32 %v2231, %v2252
    %v2265 = vadd.f32 %v2232, %v2253
    %v2266 = vadd.f32 %v2233, %v2254
    %vm2267 = vcmp.ge.f32.partialorder %v2255, 1.0
    %vm2268 = vcmp.ge.f32.partialorder %v2256, 1.0
    %vm2269 = vcmp.ge.f32.partialorder %v2257, 1.0
    %vm2270 = vcmp.ge.f32.partialorder %v2258, 1.0
    %vm2271 = vcmp.ge.f32.partialorder %v2259, 1.0
    %vm2272 = vcmp.ge.f32.partialorder %v2260, 1.0
    %vm2273 = vcmp.ge.f32.partialorder %v2261, 1.0
    %vm2274 = vcmp.ge.f32.partialorder %v2262, 1.0
    %vm2275 = vcmp.ge.f32.partialorder %v2263, 1.0
    %vm2276 = vcmp.ge.f32.partialorder %v2264, 1.0
    %vm2277 = vcmp.ge.f32.partialorder %v2265, 1.0
    %vm2278 = vcmp.ge.f32.partialorder %v2266, 1.0
    %v2279 = vsel %vm2267, 1, 0
    %v2280 = vsel %vm2268, 1, 0
    %v2281 = vsel %vm2269, 1, 0
    %v2282 = vsel %vm2270, 1, 0
    %v2283 = vsel %vm2271, 1, 0
    %v2284 = vsel %vm2272, 1, 0
    %v2285 = vsel %vm2273, 1, 0
    %v2286 = vsel %vm2274, 1, 0
    %v2287 = vsel %vm2275, 1, 0
    %v2288 = vsel %vm2276, 1, 0
    %v2289 = vsel %vm2277, 1, 0
    %v2290 = vsel %vm2278, 1, 0
    %v2291 = vcvt.s32.f32 %v2279
    %v2292 = vcvt.s32.f32 %v2280
    %v2293 = vcvt.s32.f32 %v2281
    %v2294 = vcvt.s32.f32 %v2282
    %v2295 = vcvt.s32.f32 %v2283
    %v2296 = vcvt.s32.f32 %v2284
    %v2297 = vcvt.s32.f32 %v2285
    %v2298 = vcvt.s32.f32 %v2286
    %v2299 = vcvt.s32.f32 %v2287
    %v2300 = vcvt.s32.f32 %v2288
    %v2301 = vcvt.s32.f32 %v2289
    %v2302 = vcvt.s32.f32 %v2290
    %v2303 = vsel %vm2267, 0.0, %v2255
    %v2304 = vsel %vm2268, 0.0, %v2256
    %v2305 = vsel %vm2269, 0.0, %v2257
    %v2306 = vsel %vm2270, 0.0, %v2258
    %v2307 = vsel %vm2271, 0.0, %v2259
    %v2308 = vsel %vm2272, 0.0, %v2260
    %v2309 = vsel %vm2273, 0.0, %v2261
    %v2310 = vsel %vm2274, 0.0, %v2262
    %v2311 = vsel %vm2275, 0.0, %v2263
    %v2312 = vsel %vm2276, 0.0, %v2264
    %v2313 = vsel %vm2277, 0.0, %v2265
    %v2314 = vsel %vm2278, 0.0, %v2266
    %v2315 = vadd.f32 %v2210, %v2291
    %v2316 = vadd.f32 %v2211, %v2292
    %v2317 = vadd.f32 %v2212, %v2293
    %v2318 = vadd.f32 %v2213, %v2294
    %v2319 = vadd.f32 %v2214, %v2295
    %v2320 = vadd.f32 %v2215, %v2296
    %v2321 = vadd.f32 %v2216, %v2297
    %v2322 = vadd.f32 %v2217, %v2298
    %v2323 = vadd.f32 %v2218, %v2299
    %v2324 = vadd.f32 %v2219, %v2300
    %v2325 = vadd.f32 %v2220, %v2301
    %v2326 = vadd.f32 %v2221, %v2302
    %v2327 = vmul.f32 %v2303, 0.9
    %v2328 = vmul.f32 %v2304, 0.9
    %v2329 = vmul.f32 %v2305, 0.9
    %v2330 = vmul.f32 %v2306, 0.9
    %v2331 = vmul.f32 %v2307, 0.9
    %v2332 = vmul.f32 %v2308, 0.9
    %v2333 = vmul.f32 %v2309, 0.9
    %v2334 = vmul.f32 %v2310, 0.9
    %v2335 = vmul.f32 %v2311, 0.9
    %v2336 = vmul.f32 %v2312, 0.9
    %v2337 = vmul.f32 %v2313, 0.9
    %v2338 = vmul.f32 %v2314, 0.9
    %s2339 = scalar_lea.vmem [#allocation2], 288
    %v2340 = vld [vmem:[%s2339] sm:$0xff]
    %v2341 = vld [vmem:[%s2339 + $0x8] sm:$0xf]
    %v2342 = vld [vmem:[%s2339 + $0xc] sm:$0xff]
    %v2343 = vld [vmem:[%s2339 + $0x14] sm:$0xf]
    %v2344 = vld [vmem:[%s2339 + $0x18] sm:$0xff]
    %v2345 = vld [vmem:[%s2339 + $0x20] sm:$0xf]
    %v2346 = vld [vmem:[%s2339 + $0x24] sm:$0xff]
    %v2347 = vld [vmem:[%s2339 + $0x2c] sm:$0xf]
    %v2348 = vunpack.c.l.bf16 %v2340
    %v2349 = vunpack.c.h.bf16 %v2340
    %v2350 = vunpack.c.l.bf16 %v2341
    %v2351 = vunpack.c.l.bf16 %v2342
    %v2352 = vunpack.c.h.bf16 %v2342
    %v2353 = vunpack.c.l.bf16 %v2343
    %v2354 = vunpack.c.l.bf16 %v2344
    %v2355 = vunpack.c.h.bf16 %v2344
    %v2356 = vunpack.c.l.bf16 %v2345
    %v2357 = vunpack.c.l.bf16 %v2346
    %v2358 = vunpack.c.h.bf16 %v2346
    %v2359 = vunpack.c.l.bf16 %v2347
    %v2360 = vadd.f32 %v2327, %v2348
    %v2361 = vadd.f32 %v2328, %v2349
    %v2362 = vadd.f32 %v2329, %v2350
    %v2363 = vadd.f32 %v2330, %v2351
    %v2364 = vadd.f32 %v2331, %v2352
    %v2365 = vadd.f32 %v2332, %v2353
    %v2366 = vadd.f32 %v2333, %v2354
    %v2367 = vadd.f32 %v2334, %v2355
    %v2368 = vadd.f32 %v2335, %v2356
    %v2369 = vadd.f32 %v2336, %v2357
    %v2370 = vadd.f32 %v2337, %v2358
    %v2371 = vadd.f32 %v2338, %v2359
    %vm2372 = vcmp.ge.f32.partialorder %v2360, 1.0
    %vm2373 = vcmp.ge.f32.partialorder %v2361, 1.0
    %vm2374 = vcmp.ge.f32.partialorder %v2362, 1.0
    %vm2375 = vcmp.ge.f32.partialorder %v2363, 1.0
    %vm2376 = vcmp.ge.f32.partialorder %v2364, 1.0
    %vm2377 = vcmp.ge.f32.partialorder %v2365, 1.0
    %vm2378 = vcmp.ge.f32.partialorder %v2366, 1.0
    %vm2379 = vcmp.ge.f32.partialorder %v2367, 1.0
    %vm2380 = vcmp.ge.f32.partialorder %v2368, 1.0
    %vm2381 = vcmp.ge.f32.partialorder %v2369, 1.0
    %vm2382 = vcmp.ge.f32.partialorder %v2370, 1.0
    %vm2383 = vcmp.ge.f32.partialorder %v2371, 1.0
    %v2384 = vsel %vm2372, 1, 0
    %v2385 = vsel %vm2373, 1, 0
    %v2386 = vsel %vm2374, 1, 0
    %v2387 = vsel %vm2375, 1, 0
    %v2388 = vsel %vm2376, 1, 0
    %v2389 = vsel %vm2377, 1, 0
    %v2390 = vsel %vm2378, 1, 0
    %v2391 = vsel %vm2379, 1, 0
    %v2392 = vsel %vm2380, 1, 0
    %v2393 = vsel %vm2381, 1, 0
    %v2394 = vsel %vm2382, 1, 0
    %v2395 = vsel %vm2383, 1, 0
    %v2396 = vcvt.s32.f32 %v2384
    %v2397 = vcvt.s32.f32 %v2385
    %v2398 = vcvt.s32.f32 %v2386
    %v2399 = vcvt.s32.f32 %v2387
    %v2400 = vcvt.s32.f32 %v2388
    %v2401 = vcvt.s32.f32 %v2389
    %v2402 = vcvt.s32.f32 %v2390
    %v2403 = vcvt.s32.f32 %v2391
    %v2404 = vcvt.s32.f32 %v2392
    %v2405 = vcvt.s32.f32 %v2393
    %v2406 = vcvt.s32.f32 %v2394
    %v2407 = vcvt.s32.f32 %v2395
    %v2408 = vsel %vm2372, 0.0, %v2360
    %v2409 = vsel %vm2373, 0.0, %v2361
    %v2410 = vsel %vm2374, 0.0, %v2362
    %v2411 = vsel %vm2375, 0.0, %v2363
    %v2412 = vsel %vm2376, 0.0, %v2364
    %v2413 = vsel %vm2377, 0.0, %v2365
    %v2414 = vsel %vm2378, 0.0, %v2366
    %v2415 = vsel %vm2379, 0.0, %v2367
    %v2416 = vsel %vm2380, 0.0, %v2368
    %v2417 = vsel %vm2381, 0.0, %v2369
    %v2418 = vsel %vm2382, 0.0, %v2370
    %v2419 = vsel %vm2383, 0.0, %v2371
    %v2420 = vadd.f32 %v2315, %v2396
    %v2421 = vadd.f32 %v2316, %v2397
    %v2422 = vadd.f32 %v2317, %v2398
    %v2423 = vadd.f32 %v2318, %v2399
    %v2424 = vadd.f32 %v2319, %v2400
    %v2425 = vadd.f32 %v2320, %v2401
    %v2426 = vadd.f32 %v2321, %v2402
    %v2427 = vadd.f32 %v2322, %v2403
    %v2428 = vadd.f32 %v2323, %v2404
    %v2429 = vadd.f32 %v2324, %v2405
    %v2430 = vadd.f32 %v2325, %v2406
    %v2431 = vadd.f32 %v2326, %v2407
    %v2432 = vmul.f32 %v2408, 0.9
    %v2433 = vmul.f32 %v2409, 0.9
    %v2434 = vmul.f32 %v2410, 0.9
    %v2435 = vmul.f32 %v2411, 0.9
    %v2436 = vmul.f32 %v2412, 0.9
    %v2437 = vmul.f32 %v2413, 0.9
    %v2438 = vmul.f32 %v2414, 0.9
    %v2439 = vmul.f32 %v2415, 0.9
    %v2440 = vmul.f32 %v2416, 0.9
    %v2441 = vmul.f32 %v2417, 0.9
    %v2442 = vmul.f32 %v2418, 0.9
    %v2443 = vmul.f32 %v2419, 0.9
    %s2444 = scalar_lea.vmem [#allocation2], 336
    %v2445 = vld [vmem:[%s2444] sm:$0xff]
    %v2446 = vld [vmem:[%s2444 + $0x8] sm:$0xf]
    %v2447 = vld [vmem:[%s2444 + $0xc] sm:$0xff]
    %v2448 = vld [vmem:[%s2444 + $0x14] sm:$0xf]
    %v2449 = vld [vmem:[%s2444 + $0x18] sm:$0xff]
    %v2450 = vld [vmem:[%s2444 + $0x20] sm:$0xf]
    %v2451 = vld [vmem:[%s2444 + $0x24] sm:$0xff]
    %v2452 = vld [vmem:[%s2444 + $0x2c] sm:$0xf]
    %v2453 = vunpack.c.l.bf16 %v2445
    %v2454 = vunpack.c.h.bf16 %v2445
    %v2455 = vunpack.c.l.bf16 %v2446
    %v2456 = vunpack.c.l.bf16 %v2447
    %v2457 = vunpack.c.h.bf16 %v2447
    %v2458 = vunpack.c.l.bf16 %v2448
    %v2459 = vunpack.c.l.bf16 %v2449
    %v2460 = vunpack.c.h.bf16 %v2449
    %v2461 = vunpack.c.l.bf16 %v2450
    %v2462 = vunpack.c.l.bf16 %v2451
    %v2463 = vunpack.c.h.bf16 %v2451
    %v2464 = vunpack.c.l.bf16 %v2452
    %v2465 = vadd.f32 %v2432, %v2453
    %v2466 = vadd.f32 %v2433, %v2454
    %v2467 = vadd.f32 %v2434, %v2455
    %v2468 = vadd.f32 %v2435, %v2456
    %v2469 = vadd.f32 %v2436, %v2457
    %v2470 = vadd.f32 %v2437, %v2458
    %v2471 = vadd.f32 %v2438, %v2459
    %v2472 = vadd.f32 %v2439, %v2460
    %v2473 = vadd.f32 %v2440, %v2461
    %v2474 = vadd.f32 %v2441, %v2462
    %v2475 = vadd.f32 %v2442, %v2463
    %v2476 = vadd.f32 %v2443, %v2464
    %vm2477 = vcmp.ge.f32.partialorder %v2465, 1.0
    %vm2478 = vcmp.ge.f32.partialorder %v2466, 1.0
    %vm2479 = vcmp.ge.f32.partialorder %v2467, 1.0
    %vm2480 = vcmp.ge.f32.partialorder %v2468, 1.0
    %vm2481 = vcmp.ge.f32.partialorder %v2469, 1.0
    %vm2482 = vcmp.ge.f32.partialorder %v2470, 1.0
    %vm2483 = vcmp.ge.f32.partialorder %v2471, 1.0
    %vm2484 = vcmp.ge.f32.partialorder %v2472, 1.0
    %vm2485 = vcmp.ge.f32.partialorder %v2473, 1.0
    %vm2486 = vcmp.ge.f32.partialorder %v2474, 1.0
    %vm2487 = vcmp.ge.f32.partialorder %v2475, 1.0
    %vm2488 = vcmp.ge.f32.partialorder %v2476, 1.0
    %v2489 = vsel %vm2477, 1, 0
    %v2490 = vsel %vm2478, 1, 0
    %v2491 = vsel %vm2479, 1, 0
    %v2492 = vsel %vm2480, 1, 0
    %v2493 = vsel %vm2481, 1, 0
    %v2494 = vsel %vm2482, 1, 0
    %v2495 = vsel %vm2483, 1, 0
    %v2496 = vsel %vm2484, 1, 0
    %v2497 = vsel %vm2485, 1, 0
    %v2498 = vsel %vm2486, 1, 0
    %v2499 = vsel %vm2487, 1, 0
    %v2500 = vsel %vm2488, 1, 0
    %v2501 = vcvt.s32.f32 %v2489
    %v2502 = vcvt.s32.f32 %v2490
    %v2503 = vcvt.s32.f32 %v2491
    %v2504 = vcvt.s32.f32 %v2492
    %v2505 = vcvt.s32.f32 %v2493
    %v2506 = vcvt.s32.f32 %v2494
    %v2507 = vcvt.s32.f32 %v2495
    %v2508 = vcvt.s32.f32 %v2496
    %v2509 = vcvt.s32.f32 %v2497
    %v2510 = vcvt.s32.f32 %v2498
    %v2511 = vcvt.s32.f32 %v2499
    %v2512 = vcvt.s32.f32 %v2500
    %v2513 = vsel %vm2477, 0.0, %v2465
    %v2514 = vsel %vm2478, 0.0, %v2466
    %v2515 = vsel %vm2479, 0.0, %v2467
    %v2516 = vsel %vm2480, 0.0, %v2468
    %v2517 = vsel %vm2481, 0.0, %v2469
    %v2518 = vsel %vm2482, 0.0, %v2470
    %v2519 = vsel %vm2483, 0.0, %v2471
    %v2520 = vsel %vm2484, 0.0, %v2472
    %v2521 = vsel %vm2485, 0.0, %v2473
    %v2522 = vsel %vm2486, 0.0, %v2474
    %v2523 = vsel %vm2487, 0.0, %v2475
    %v2524 = vsel %vm2488, 0.0, %v2476
    %v2525 = vadd.f32 %v2420, %v2501
    %v2526 = vadd.f32 %v2421, %v2502
    %v2527 = vadd.f32 %v2422, %v2503
    %v2528 = vadd.f32 %v2423, %v2504
    %v2529 = vadd.f32 %v2424, %v2505
    %v2530 = vadd.f32 %v2425, %v2506
    %v2531 = vadd.f32 %v2426, %v2507
    %v2532 = vadd.f32 %v2427, %v2508
    %v2533 = vadd.f32 %v2428, %v2509
    %v2534 = vadd.f32 %v2429, %v2510
    %v2535 = vadd.f32 %v2430, %v2511
    %v2536 = vadd.f32 %v2431, %v2512
    %v2537 = vmul.f32 %v2513, 0.9
    %v2538 = vmul.f32 %v2514, 0.9
    %v2539 = vmul.f32 %v2515, 0.9
    %v2540 = vmul.f32 %v2516, 0.9
    %v2541 = vmul.f32 %v2517, 0.9
    %v2542 = vmul.f32 %v2518, 0.9
    %v2543 = vmul.f32 %v2519, 0.9
    %v2544 = vmul.f32 %v2520, 0.9
    %v2545 = vmul.f32 %v2521, 0.9
    %v2546 = vmul.f32 %v2522, 0.9
    %v2547 = vmul.f32 %v2523, 0.9
    %v2548 = vmul.f32 %v2524, 0.9
    %s2549 = scalar_lea.vmem [#allocation2], 384
    %v2550 = vld [vmem:[%s2549] sm:$0xff]
    %v2551 = vld [vmem:[%s2549 + $0x8] sm:$0xf]
    %v2552 = vld [vmem:[%s2549 + $0xc] sm:$0xff]
    %v2553 = vld [vmem:[%s2549 + $0x14] sm:$0xf]
    %v2554 = vld [vmem:[%s2549 + $0x18] sm:$0xff]
    %v2555 = vld [vmem:[%s2549 + $0x20] sm:$0xf]
    %v2556 = vld [vmem:[%s2549 + $0x24] sm:$0xff]
    %v2557 = vld [vmem:[%s2549 + $0x2c] sm:$0xf]
    %v2558 = vunpack.c.l.bf16 %v2550
    %v2559 = vunpack.c.h.bf16 %v2550
    %v2560 = vunpack.c.l.bf16 %v2551
    %v2561 = vunpack.c.l.bf16 %v2552
    %v2562 = vunpack.c.h.bf16 %v2552
    %v2563 = vunpack.c.l.bf16 %v2553
    %v2564 = vunpack.c.l.bf16 %v2554
    %v2565 = vunpack.c.h.bf16 %v2554
    %v2566 = vunpack.c.l.bf16 %v2555
    %v2567 = vunpack.c.l.bf16 %v2556
    %v2568 = vunpack.c.h.bf16 %v2556
    %v2569 = vunpack.c.l.bf16 %v2557
    %v2570 = vadd.f32 %v2537, %v2558
    %v2571 = vadd.f32 %v2538, %v2559
    %v2572 = vadd.f32 %v2539, %v2560
    %v2573 = vadd.f32 %v2540, %v2561
    %v2574 = vadd.f32 %v2541, %v2562
    %v2575 = vadd.f32 %v2542, %v2563
    %v2576 = vadd.f32 %v2543, %v2564
    %v2577 = vadd.f32 %v2544, %v2565
    %v2578 = vadd.f32 %v2545, %v2566
    %v2579 = vadd.f32 %v2546, %v2567
    %v2580 = vadd.f32 %v2547, %v2568
    %v2581 = vadd.f32 %v2548, %v2569
    %vm2582 = vcmp.ge.f32.partialorder %v2570, 1.0
    %vm2583 = vcmp.ge.f32.partialorder %v2571, 1.0
    %vm2584 = vcmp.ge.f32.partialorder %v2572, 1.0
    %vm2585 = vcmp.ge.f32.partialorder %v2573, 1.0
    %vm2586 = vcmp.ge.f32.partialorder %v2574, 1.0
    %vm2587 = vcmp.ge.f32.partialorder %v2575, 1.0
    %vm2588 = vcmp.ge.f32.partialorder %v2576, 1.0
    %vm2589 = vcmp.ge.f32.partialorder %v2577, 1.0
    %vm2590 = vcmp.ge.f32.partialorder %v2578, 1.0
    %vm2591 = vcmp.ge.f32.partialorder %v2579, 1.0
    %vm2592 = vcmp.ge.f32.partialorder %v2580, 1.0
    %vm2593 = vcmp.ge.f32.partialorder %v2581, 1.0
    %v2594 = vsel %vm2582, 1, 0
    %v2595 = vsel %vm2583, 1, 0
    %v2596 = vsel %vm2584, 1, 0
    %v2597 = vsel %vm2585, 1, 0
    %v2598 = vsel %vm2586, 1, 0
    %v2599 = vsel %vm2587, 1, 0
    %v2600 = vsel %vm2588, 1, 0
    %v2601 = vsel %vm2589, 1, 0
    %v2602 = vsel %vm2590, 1, 0
    %v2603 = vsel %vm2591, 1, 0
    %v2604 = vsel %vm2592, 1, 0
    %v2605 = vsel %vm2593, 1, 0
    %v2606 = vcvt.s32.f32 %v2594
    %v2607 = vcvt.s32.f32 %v2595
    %v2608 = vcvt.s32.f32 %v2596
    %v2609 = vcvt.s32.f32 %v2597
    %v2610 = vcvt.s32.f32 %v2598
    %v2611 = vcvt.s32.f32 %v2599
    %v2612 = vcvt.s32.f32 %v2600
    %v2613 = vcvt.s32.f32 %v2601
    %v2614 = vcvt.s32.f32 %v2602
    %v2615 = vcvt.s32.f32 %v2603
    %v2616 = vcvt.s32.f32 %v2604
    %v2617 = vcvt.s32.f32 %v2605
    %v2618 = vsel %vm2582, 0.0, %v2570
    %v2619 = vsel %vm2583, 0.0, %v2571
    %v2620 = vsel %vm2584, 0.0, %v2572
    %v2621 = vsel %vm2585, 0.0, %v2573
    %v2622 = vsel %vm2586, 0.0, %v2574
    %v2623 = vsel %vm2587, 0.0, %v2575
    %v2624 = vsel %vm2588, 0.0, %v2576
    %v2625 = vsel %vm2589, 0.0, %v2577
    %v2626 = vsel %vm2590, 0.0, %v2578
    %v2627 = vsel %vm2591, 0.0, %v2579
    %v2628 = vsel %vm2592, 0.0, %v2580
    %v2629 = vsel %vm2593, 0.0, %v2581
    %v2630 = vadd.f32 %v2525, %v2606
    %v2631 = vadd.f32 %v2526, %v2607
    %v2632 = vadd.f32 %v2527, %v2608
    %v2633 = vadd.f32 %v2528, %v2609
    %v2634 = vadd.f32 %v2529, %v2610
    %v2635 = vadd.f32 %v2530, %v2611
    %v2636 = vadd.f32 %v2531, %v2612
    %v2637 = vadd.f32 %v2532, %v2613
    %v2638 = vadd.f32 %v2533, %v2614
    %v2639 = vadd.f32 %v2534, %v2615
    %v2640 = vadd.f32 %v2535, %v2616
    %v2641 = vadd.f32 %v2536, %v2617
    %v2642 = vmul.f32 %v2618, 0.9
    %v2643 = vmul.f32 %v2619, 0.9
    %v2644 = vmul.f32 %v2620, 0.9
    %v2645 = vmul.f32 %v2621, 0.9
    %v2646 = vmul.f32 %v2622, 0.9
    %v2647 = vmul.f32 %v2623, 0.9
    %v2648 = vmul.f32 %v2624, 0.9
    %v2649 = vmul.f32 %v2625, 0.9
    %v2650 = vmul.f32 %v2626, 0.9
    %v2651 = vmul.f32 %v2627, 0.9
    %v2652 = vmul.f32 %v2628, 0.9
    %v2653 = vmul.f32 %v2629, 0.9
    %s2654 = scalar_lea.vmem [#allocation2], 432
    %v2655 = vld [vmem:[%s2654] sm:$0xff]
    %v2656 = vld [vmem:[%s2654 + $0x8] sm:$0xf]
    %v2657 = vld [vmem:[%s2654 + $0xc] sm:$0xff]
    %v2658 = vld [vmem:[%s2654 + $0x14] sm:$0xf]
    %v2659 = vld [vmem:[%s2654 + $0x18] sm:$0xff]
    %v2660 = vld [vmem:[%s2654 + $0x20] sm:$0xf]
    %v2661 = vld [vmem:[%s2654 + $0x24] sm:$0xff]
    %v2662 = vld [vmem:[%s2654 + $0x2c] sm:$0xf]
    %v2663 = vunpack.c.l.bf16 %v2655
    %v2664 = vunpack.c.h.bf16 %v2655
    %v2665 = vunpack.c.l.bf16 %v2656
    %v2666 = vunpack.c.l.bf16 %v2657
    %v2667 = vunpack.c.h.bf16 %v2657
    %v2668 = vunpack.c.l.bf16 %v2658
    %v2669 = vunpack.c.l.bf16 %v2659
    %v2670 = vunpack.c.h.bf16 %v2659
    %v2671 = vunpack.c.l.bf16 %v2660
    %v2672 = vunpack.c.l.bf16 %v2661
    %v2673 = vunpack.c.h.bf16 %v2661
    %v2674 = vunpack.c.l.bf16 %v2662
    %v2675 = vadd.f32 %v2642, %v2663
    %v2676 = vadd.f32 %v2643, %v2664
    %v2677 = vadd.f32 %v2644, %v2665
    %v2678 = vadd.f32 %v2645, %v2666
    %v2679 = vadd.f32 %v2646, %v2667
    %v2680 = vadd.f32 %v2647, %v2668
    %v2681 = vadd.f32 %v2648, %v2669
    %v2682 = vadd.f32 %v2649, %v2670
    %v2683 = vadd.f32 %v2650, %v2671
    %v2684 = vadd.f32 %v2651, %v2672
    %v2685 = vadd.f32 %v2652, %v2673
    %v2686 = vadd.f32 %v2653, %v2674
    %vm2687 = vcmp.ge.f32.partialorder %v2675, 1.0
    %vm2688 = vcmp.ge.f32.partialorder %v2676, 1.0
    %vm2689 = vcmp.ge.f32.partialorder %v2677, 1.0
    %vm2690 = vcmp.ge.f32.partialorder %v2678, 1.0
    %vm2691 = vcmp.ge.f32.partialorder %v2679, 1.0
    %vm2692 = vcmp.ge.f32.partialorder %v2680, 1.0
    %vm2693 = vcmp.ge.f32.partialorder %v2681, 1.0
    %vm2694 = vcmp.ge.f32.partialorder %v2682, 1.0
    %vm2695 = vcmp.ge.f32.partialorder %v2683, 1.0
    %vm2696 = vcmp.ge.f32.partialorder %v2684, 1.0
    %vm2697 = vcmp.ge.f32.partialorder %v2685, 1.0
    %vm2698 = vcmp.ge.f32.partialorder %v2686, 1.0
    %v2699 = vsel %vm2687, 1, 0
    %v2700 = vsel %vm2688, 1, 0
    %v2701 = vsel %vm2689, 1, 0
    %v2702 = vsel %vm2690, 1, 0
    %v2703 = vsel %vm2691, 1, 0
    %v2704 = vsel %vm2692, 1, 0
    %v2705 = vsel %vm2693, 1, 0
    %v2706 = vsel %vm2694, 1, 0
    %v2707 = vsel %vm2695, 1, 0
    %v2708 = vsel %vm2696, 1, 0
    %v2709 = vsel %vm2697, 1, 0
    %v2710 = vsel %vm2698, 1, 0
    %v2711 = vcvt.s32.f32 %v2699
    %v2712 = vcvt.s32.f32 %v2700
    %v2713 = vcvt.s32.f32 %v2701
    %v2714 = vcvt.s32.f32 %v2702
    %v2715 = vcvt.s32.f32 %v2703
    %v2716 = vcvt.s32.f32 %v2704
    %v2717 = vcvt.s32.f32 %v2705
    %v2718 = vcvt.s32.f32 %v2706
    %v2719 = vcvt.s32.f32 %v2707
    %v2720 = vcvt.s32.f32 %v2708
    %v2721 = vcvt.s32.f32 %v2709
    %v2722 = vcvt.s32.f32 %v2710
    %v2723 = vadd.f32 %v2630, %v2711
    %v2724 = vadd.f32 %v2631, %v2712
    %v2725 = vadd.f32 %v2632, %v2713
    %v2726 = vadd.f32 %v2633, %v2714
    %v2727 = vadd.f32 %v2634, %v2715
    %v2728 = vadd.f32 %v2635, %v2716
    %v2729 = vadd.f32 %v2636, %v2717
    %v2730 = vadd.f32 %v2637, %v2718
    %v2731 = vadd.f32 %v2638, %v2719
    %v2732 = vadd.f32 %v2639, %v2720
    %v2733 = vadd.f32 %v2640, %v2721
    %v2734 = vadd.f32 %v2641, %v2722
    %2739 = vrot.lane.b32.xlu0 %v2723, 64
    %v2740 = vpop.permute.xlu0 %2739
    %2741 = vrot.lane.b32.xlu0 %v2726, 64
    %v2742 = vpop.permute.xlu0 %2741
    %2743 = vrot.lane.b32.xlu0 %v2729, 64
    %v2744 = vpop.permute.xlu0 %2743
    %2745 = vrot.lane.b32.xlu0 %v2732, 64
    %v2746 = vpop.permute.xlu0 %2745
    %v2751 = vrot.slane %v2723, 4
    %vm2752 = vcmask 1047556
    %v2753 = vsel %vm2752, 0.0, %v2751
    %v2755 = vunpack.c.l.s4 1983009808
    %v2756 = vunpack.c.0.s8 %v2755
    %v2757 = vperm.slane %v2723, %v2756
    %v2759 = vunpack.c.l.s4 1983009808
    %v2760 = vunpack.c.0.s8 %v2759
    %v2761 = vperm.slane %v2753, %v2760
    %v2762 = vrot.slane %v2740, 4
    %v2763 = vsel %vm2752, 0.0, %v2762
    %v2765 = vunpack.c.l.s4 1983009808
    %v2766 = vunpack.c.0.s8 %v2765
    %v2767 = vperm.slane %v2740, %v2766
    %v2769 = vunpack.c.l.s4 1983009808
    %v2770 = vunpack.c.0.s8 %v2769
    %v2771 = vperm.slane %v2763, %v2770
    %v2772 = vrot.slane %v2767, 4
    %v2773 = vsel %vm2752, %v2772, %v2757
    %v2774 = vrot.slane %v2757, 4
    %v2775 = vsel %vm2752, %v2767, %v2774
    %v2777 = vunpack.c.l.s4 1934713408
    %v2778 = vunpack.c.0.s8 %v2777
    %v2779 = vperm.slane %v2773, %v2778
    %v2781 = vunpack.c.l.s4 1934713408
    %v2782 = vunpack.c.0.s8 %v2781
    %v2783 = vperm.slane %v2775, %v2782
    %v2784 = vrot.slane %v2771, 4
    %v2785 = vsel %vm2752, %v2784, %v2761
    %v2786 = vrot.slane %v2761, 4
    %v2787 = vsel %vm2752, %v2771, %v2786
    %v2789 = vunpack.c.l.s4 1934713408
    %v2790 = vunpack.c.0.s8 %v2789
    %v2791 = vperm.slane %v2785, %v2790
    %v2793 = vunpack.c.l.s4 1934713408
    %v2794 = vunpack.c.0.s8 %v2793
    %v2795 = vperm.slane %v2787, %v2794
    %v2796 = vrot.slane %v2779, 4
    %v2797 = vsel %vm2752, 0.0, %v2796
    %v2798 = vrot.slane %v2783, 4
    %v2799 = vsel %vm2752, 0.0, %v2798
    %v2800 = vrot.slane %v2791, 4
    %v2801 = vsel %vm2752, 0.0, %v2800
    %v2802 = vrot.slane %v2795, 4
    %v2803 = vsel %vm2752, 0.0, %v2802
    %v2804 = vrot.slane %v2726, 4
    %v2805 = vsel %vm2752, 0.0, %v2804
    %v2807 = vunpack.c.l.s4 1983009808
    %v2808 = vunpack.c.0.s8 %v2807
    %v2809 = vperm.slane %v2726, %v2808
    %v2811 = vunpack.c.l.s4 1983009808
    %v2812 = vunpack.c.0.s8 %v2811
    %v2813 = vperm.slane %v2805, %v2812
    %v2814 = vrot.slane %v2742, 4
    %v2815 = vsel %vm2752, 0.0, %v2814
    %v2817 = vunpack.c.l.s4 1983009808
    %v2818 = vunpack.c.0.s8 %v2817
    %v2819 = vperm.slane %v2742, %v2818
    %v2821 = vunpack.c.l.s4 1983009808
    %v2822 = vunpack.c.0.s8 %v2821
    %v2823 = vperm.slane %v2815, %v2822
    %v2824 = vrot.slane %v2819, 4
    %v2825 = vsel %vm2752, %v2824, %v2809
    %v2826 = vrot.slane %v2809, 4
    %v2827 = vsel %vm2752, %v2819, %v2826
    %v2829 = vunpack.c.l.s4 1934713408
    %v2830 = vunpack.c.0.s8 %v2829
    %v2831 = vperm.slane %v2825, %v2830
    %v2833 = vunpack.c.l.s4 1934713408
    %v2834 = vunpack.c.0.s8 %v2833
    %v2835 = vperm.slane %v2827, %v2834
    %v2836 = vrot.slane %v2823, 4
    %v2837 = vsel %vm2752, %v2836, %v2813
    %v2838 = vrot.slane %v2813, 4
    %v2839 = vsel %vm2752, %v2823, %v2838
    %v2841 = vunpack.c.l.s4 1934713408
    %v2842 = vunpack.c.0.s8 %v2841
    %v2843 = vperm.slane %v2837, %v2842
    %v2845 = vunpack.c.l.s4 1934713408
    %v2846 = vunpack.c.0.s8 %v2845
    %v2847 = vperm.slane %v2839, %v2846
    %v2848 = vrot.slane %v2831, 4
    %v2849 = vsel %vm2752, 0.0, %v2848
    %v2850 = vrot.slane %v2835, 4
    %v2851 = vsel %vm2752, 0.0, %v2850
    %v2852 = vrot.slane %v2843, 4
    %v2853 = vsel %vm2752, 0.0, %v2852
    %v2854 = vrot.slane %v2847, 4
    %v2855 = vsel %vm2752, 0.0, %v2854
    %v2856 = vrot.slane %v2729, 4
    %v2857 = vsel %vm2752, 0.0, %v2856
    %v2859 = vunpack.c.l.s4 1983009808
    %v2860 = vunpack.c.0.s8 %v2859
    %v2861 = vperm.slane %v2729, %v2860
    %v2863 = vunpack.c.l.s4 1983009808
    %v2864 = vunpack.c.0.s8 %v2863
    %v2865 = vperm.slane %v2857, %v2864
    %v2866 = vrot.slane %v2744, 4
    %v2867 = vsel %vm2752, 0.0, %v2866
    %v2869 = vunpack.c.l.s4 1983009808
    %v2870 = vunpack.c.0.s8 %v2869
    %v2871 = vperm.slane %v2744, %v2870
    %v2873 = vunpack.c.l.s4 1983009808
    %v2874 = vunpack.c.0.s8 %v2873
    %v2875 = vperm.slane %v2867, %v2874
    %v2876 = vrot.slane %v2871, 4
    %v2877 = vsel %vm2752, %v2876, %v2861
    %v2878 = vrot.slane %v2861, 4
    %v2879 = vsel %vm2752, %v2871, %v2878
    %v2881 = vunpack.c.l.s4 1934713408
    %v2882 = vunpack.c.0.s8 %v2881
    %v2883 = vperm.slane %v2877, %v2882
    %v2885 = vunpack.c.l.s4 1934713408
    %v2886 = vunpack.c.0.s8 %v2885
    %v2887 = vperm.slane %v2879, %v2886
    %v2888 = vrot.slane %v2875, 4
    %v2889 = vsel %vm2752, %v2888, %v2865
    %v2890 = vrot.slane %v2865, 4
    %v2891 = vsel %vm2752, %v2875, %v2890
    %v2893 = vunpack.c.l.s4 1934713408
    %v2894 = vunpack.c.0.s8 %v2893
    %v2895 = vperm.slane %v2889, %v2894
    %v2897 = vunpack.c.l.s4 1934713408
    %v2898 = vunpack.c.0.s8 %v2897
    %v2899 = vperm.slane %v2891, %v2898
    %v2900 = vrot.slane %v2883, 4
    %v2901 = vsel %vm2752, 0.0, %v2900
    %v2902 = vrot.slane %v2887, 4
    %v2903 = vsel %vm2752, 0.0, %v2902
    %v2904 = vrot.slane %v2895, 4
    %v2905 = vsel %vm2752, 0.0, %v2904
    %v2906 = vrot.slane %v2899, 4
    %v2907 = vsel %vm2752, 0.0, %v2906
    %v2908 = vrot.slane %v2732, 4
    %v2909 = vsel %vm2752, 0.0, %v2908
    %v2911 = vunpack.c.l.s4 1983009808
    %v2912 = vunpack.c.0.s8 %v2911
    %v2913 = vperm.slane %v2732, %v2912
    %v2915 = vunpack.c.l.s4 1983009808
    %v2916 = vunpack.c.0.s8 %v2915
    %v2917 = vperm.slane %v2909, %v2916
    %v2918 = vrot.slane %v2746, 4
    %v2919 = vsel %vm2752, 0.0, %v2918
    %v2921 = vunpack.c.l.s4 1983009808
    %v2922 = vunpack.c.0.s8 %v2921
    %v2923 = vperm.slane %v2746, %v2922
    %v2925 = vunpack.c.l.s4 1983009808
    %v2926 = vunpack.c.0.s8 %v2925
    %v2927 = vperm.slane %v2919, %v2926
    %v2928 = vrot.slane %v2923, 4
    %v2929 = vsel %vm2752, %v2928, %v2913
    %v2930 = vrot.slane %v2913, 4
    %v2931 = vsel %vm2752, %v2923, %v2930
    %v2933 = vunpack.c.l.s4 1934713408
    %v2934 = vunpack.c.0.s8 %v2933
    %v2935 = vperm.slane %v2929, %v2934
    %v2937 = vunpack.c.l.s4 1934713408
    %v2938 = vunpack.c.0.s8 %v2937
    %v2939 = vperm.slane %v2931, %v2938
    %v2940 = vrot.slane %v2927, 4
    %v2941 = vsel %vm2752, %v2940, %v2917
    %v2942 = vrot.slane %v2917, 4
    %v2943 = vsel %vm2752, %v2927, %v2942
    %v2945 = vunpack.c.l.s4 1934713408
    %v2946 = vunpack.c.0.s8 %v2945
    %v2947 = vperm.slane %v2941, %v2946
    %v2949 = vunpack.c.l.s4 1934713408
    %v2950 = vunpack.c.0.s8 %v2949
    %v2951 = vperm.slane %v2943, %v2950
    %v2952 = vrot.slane %v2935, 4
    %v2953 = vsel %vm2752, 0.0, %v2952
    %v2954 = vrot.slane %v2939, 4
    %v2955 = vsel %vm2752, 0.0, %v2954
    %v2956 = vrot.slane %v2947, 4
    %v2957 = vsel %vm2752, 0.0, %v2956
    %v2958 = vrot.slane %v2951, 4
    %v2959 = vsel %vm2752, 0.0, %v2958
    %v2960 = vsel %vm2752, %v2798, %v2779
    %v2962 = vunpack.c.l.s4 1983009808
    %v2963 = vunpack.c.0.s8 %v2962
    %v2964 = vperm.slane %v2960, %v2963
    %v2965 = vrot.slane %v2799, 4
    %v2966 = vsel %vm2752, %v2965, %v2797
    %v2968 = vunpack.c.l.s4 1983009808
    %v2969 = vunpack.c.0.s8 %v2968
    %v2970 = vperm.slane %v2966, %v2969
    %v2971 = vsel %vm2752, %v2802, %v2791
    %v2973 = vunpack.c.l.s4 1983009808
    %v2974 = vunpack.c.0.s8 %v2973
    %v2975 = vperm.slane %v2971, %v2974
    %v2976 = vrot.slane %v2803, 4
    %v2977 = vsel %vm2752, %v2976, %v2801
    %v2979 = vunpack.c.l.s4 1983009808
    %v2980 = vunpack.c.0.s8 %v2979
    %v2981 = vperm.slane %v2977, %v2980
    %v2982 = vrot.slane %v2970, 4
    %v2983 = vsel %vm2752, %v2982, %v2964
    %v2985 = vunpack.c.l.s4 1934713408
    %v2986 = vunpack.c.0.s8 %v2985
    %v2987 = vperm.slane %v2983, %v2986
    %v2988 = vrot.slane %v2981, 4
    %v2989 = vsel %vm2752, %v2988, %v2975
    %v2991 = vunpack.c.l.s4 1934713408
    %v2992 = vunpack.c.0.s8 %v2991
    %v2993 = vperm.slane %v2989, %v2992
    %v2994 = vrot.slane %v2993, 4
    %v2995 = vsel %vm2752, %v2994, %v2987
    %v2996 = vrot.slane %v2987, 4
    %v2997 = vsel %vm2752, %v2993, %v2996
    %v2998 = vsel %vm2752, %v2850, %v2831
    %v3000 = vunpack.c.l.s4 1983009808
    %v3001 = vunpack.c.0.s8 %v3000
    %v3002 = vperm.slane %v2998, %v3001
    %v3003 = vrot.slane %v2851, 4
    %v3004 = vsel %vm2752, %v3003, %v2849
    %v3006 = vunpack.c.l.s4 1983009808
    %v3007 = vunpack.c.0.s8 %v3006
    %v3008 = vperm.slane %v3004, %v3007
    %v3009 = vsel %vm2752, %v2854, %v2843
    %v3011 = vunpack.c.l.s4 1983009808
    %v3012 = vunpack.c.0.s8 %v3011
    %v3013 = vperm.slane %v3009, %v3012
    %v3014 = vrot.slane %v2855, 4
    %v3015 = vsel %vm2752, %v3014, %v2853
    %v3017 = vunpack.c.l.s4 1983009808
    %v3018 = vunpack.c.0.s8 %v3017
    %v3019 = vperm.slane %v3015, %v3018
    %v3020 = vrot.slane %v3008, 4
    %v3021 = vsel %vm2752, %v3020, %v3002
    %v3023 = vunpack.c.l.s4 1934713408
    %v3024 = vunpack.c.0.s8 %v3023
    %v3025 = vperm.slane %v3021, %v3024
    %v3026 = vrot.slane %v3019, 4
    %v3027 = vsel %vm2752, %v3026, %v3013
    %v3029 = vunpack.c.l.s4 1934713408
    %v3030 = vunpack.c.0.s8 %v3029
    %v3031 = vperm.slane %v3027, %v3030
    %v3032 = vrot.slane %v3031, 4
    %v3033 = vsel %vm2752, %v3032, %v3025
    %v3034 = vrot.slane %v3025, 4
    %v3035 = vsel %vm2752, %v3031, %v3034
    %v3036 = vsel %vm2752, %v2902, %v2883
    %v3038 = vunpack.c.l.s4 1983009808
    %v3039 = vunpack.c.0.s8 %v3038
    %v3040 = vperm.slane %v3036, %v3039
    %v3041 = vrot.slane %v2903, 4
    %v3042 = vsel %vm2752, %v3041, %v2901
    %v3044 = vunpack.c.l.s4 1983009808
    %v3045 = vunpack.c.0.s8 %v3044
    %v3046 = vperm.slane %v3042, %v3045
    %v3047 = vsel %vm2752, %v2906, %v2895
    %v3049 = vunpack.c.l.s4 1983009808
    %v3050 = vunpack.c.0.s8 %v3049
    %v3051 = vperm.slane %v3047, %v3050
    %v3052 = vrot.slane %v2907, 4
    %v3053 = vsel %vm2752, %v3052, %v2905
    %v3055 = vunpack.c.l.s4 1983009808
    %v3056 = vunpack.c.0.s8 %v3055
    %v3057 = vperm.slane %v3053, %v3056
    %v3058 = vrot.slane %v3046, 4
    %v3059 = vsel %vm2752, %v3058, %v3040
    %v3061 = vunpack.c.l.s4 1934713408
    %v3062 = vunpack.c.0.s8 %v3061
    %v3063 = vperm.slane %v3059, %v3062
    %v3064 = vrot.slane %v3057, 4
    %v3065 = vsel %vm2752, %v3064, %v3051
    %v3067 = vunpack.c.l.s4 1934713408
    %v3068 = vunpack.c.0.s8 %v3067
    %v3069 = vperm.slane %v3065, %v3068
    %v3070 = vrot.slane %v3069, 4
    %v3071 = vsel %vm2752, %v3070, %v3063
    %v3072 = vrot.slane %v3063, 4
    %v3073 = vsel %vm2752, %v3069, %v3072
    %v3074 = vsel %vm2752, %v2954, %v2935
    %v3076 = vunpack.c.l.s4 1983009808
    %v3077 = vunpack.c.0.s8 %v3076
    %v3078 = vperm.slane %v3074, %v3077
    %v3079 = vrot.slane %v2955, 4
    %v3080 = vsel %vm2752, %v3079, %v2953
    %v3082 = vunpack.c.l.s4 1983009808
    %v3083 = vunpack.c.0.s8 %v3082
    %v3084 = vperm.slane %v3080, %v3083
    %v3085 = vsel %vm2752, %v2958, %v2947
    %v3087 = vunpack.c.l.s4 1983009808
    %v3088 = vunpack.c.0.s8 %v3087
    %v3089 = vperm.slane %v3085, %v3088
    %v3090 = vrot.slane %v2959, 4
    %v3091 = vsel %vm2752, %v3090, %v2957
    %v3093 = vunpack.c.l.s4 1983009808
    %v3094 = vunpack.c.0.s8 %v3093
    %v3095 = vperm.slane %v3091, %v3094
    %v3096 = vrot.slane %v3084, 4
    %v3097 = vsel %vm2752, %v3096, %v3078
    %v3099 = vunpack.c.l.s4 1934713408
    %v3100 = vunpack.c.0.s8 %v3099
    %v3101 = vperm.slane %v3097, %v3100
    %v3102 = vrot.slane %v3095, 4
    %v3103 = vsel %vm2752, %v3102, %v3089
    %v3105 = vunpack.c.l.s4 1934713408
    %v3106 = vunpack.c.0.s8 %v3105
    %v3107 = vperm.slane %v3103, %v3106
    %v3108 = vrot.slane %v3107, 4
    %v3109 = vsel %vm2752, %v3108, %v3101
    %v3110 = vrot.slane %v3101, 4
    %v3111 = vsel %vm2752, %v3107, %v3110
    %v3112 = vpack.c.bf16 %v2995, %v2995
    %v3113 = vpack.c.bf16 %v3033, %v3033
    %v3114 = vpack.c.bf16 %v3071, %v3071
    %v3115 = vpack.c.bf16 %v3109, %v3109
    %v3116 = vpack.c.bf16 %v2997, %v2997
    %v3117 = vpack.c.bf16 %v3035, %v3035
    %v3118 = vpack.c.bf16 %v3073, %v3073
    %v3119 = vpack.c.bf16 %v3111, %v3111
    %3124 = vrot.lane.b32.xlu0 %v2724, 64
    %v3125 = vpop.permute.xlu0 %3124
    %3126 = vrot.lane.b32.xlu0 %v2727, 64
    %v3127 = vpop.permute.xlu0 %3126
    %3128 = vrot.lane.b32.xlu0 %v2730, 64
    %v3129 = vpop.permute.xlu0 %3128
    %3130 = vrot.lane.b32.xlu0 %v2733, 64
    %v3131 = vpop.permute.xlu0 %3130
    %v3136 = vrot.slane %v2724, 4
    %v3137 = vsel %vm2752, 0.0, %v3136
    %v3139 = vunpack.c.l.s4 1983009808
    %v3140 = vunpack.c.0.s8 %v3139
    %v3141 = vperm.slane %v2724, %v3140
    %v3143 = vunpack.c.l.s4 1983009808
    %v3144 = vunpack.c.0.s8 %v3143
    %v3145 = vperm.slane %v3137, %v3144
    %v3146 = vrot.slane %v3125, 4
    %v3147 = vsel %vm2752, 0.0, %v3146
    %v3149 = vunpack.c.l.s4 1983009808
    %v3150 = vunpack.c.0.s8 %v3149
    %v3151 = vperm.slane %v3125, %v3150
    %v3153 = vunpack.c.l.s4 1983009808
    %v3154 = vunpack.c.0.s8 %v3153
    %v3155 = vperm.slane %v3147, %v3154
    %v3156 = vrot.slane %v3151, 4
    %v3157 = vsel %vm2752, %v3156, %v3141
    %v3158 = vrot.slane %v3141, 4
    %v3159 = vsel %vm2752, %v3151, %v3158
    %v3161 = vunpack.c.l.s4 1934713408
    %v3162 = vunpack.c.0.s8 %v3161
    %v3163 = vperm.slane %v3157, %v3162
    %v3165 = vunpack.c.l.s4 1934713408
    %v3166 = vunpack.c.0.s8 %v3165
    %v3167 = vperm.slane %v3159, %v3166
    %v3168 = vrot.slane %v3155, 4
    %v3169 = vsel %vm2752, %v3168, %v3145
    %v3170 = vrot.slane %v3145, 4
    %v3171 = vsel %vm2752, %v3155, %v3170
    %v3173 = vunpack.c.l.s4 1934713408
    %v3174 = vunpack.c.0.s8 %v3173
    %v3175 = vperm.slane %v3169, %v3174
    %v3177 = vunpack.c.l.s4 1934713408
    %v3178 = vunpack.c.0.s8 %v3177
    %v3179 = vperm.slane %v3171, %v3178
    %v3180 = vrot.slane %v3163, 4
    %v3181 = vsel %vm2752, 0.0, %v3180
    %v3182 = vrot.slane %v3167, 4
    %v3183 = vsel %vm2752, 0.0, %v3182
    %v3184 = vrot.slane %v3175, 4
    %v3185 = vsel %vm2752, 0.0, %v3184
    %v3186 = vrot.slane %v3179, 4
    %v3187 = vsel %vm2752, 0.0, %v3186
    %v3188 = vrot.slane %v2727, 4
    %v3189 = vsel %vm2752, 0.0, %v3188
    %v3191 = vunpack.c.l.s4 1983009808
    %v3192 = vunpack.c.0.s8 %v3191
    %v3193 = vperm.slane %v2727, %v3192
    %v3195 = vunpack.c.l.s4 1983009808
    %v3196 = vunpack.c.0.s8 %v3195
    %v3197 = vperm.slane %v3189, %v3196
    %v3198 = vrot.slane %v3127, 4
    %v3199 = vsel %vm2752, 0.0, %v3198
    %v3201 = vunpack.c.l.s4 1983009808
    %v3202 = vunpack.c.0.s8 %v3201
    %v3203 = vperm.slane %v3127, %v3202
    %v3205 = vunpack.c.l.s4 1983009808
    %v3206 = vunpack.c.0.s8 %v3205
    %v3207 = vperm.slane %v3199, %v3206
    %v3208 = vrot.slane %v3203, 4
    %v3209 = vsel %vm2752, %v3208, %v3193
    %v3210 = vrot.slane %v3193, 4
    %v3211 = vsel %vm2752, %v3203, %v3210
    %v3213 = vunpack.c.l.s4 1934713408
    %v3214 = vunpack.c.0.s8 %v3213
    %v3215 = vperm.slane %v3209, %v3214
    %v3217 = vunpack.c.l.s4 1934713408
    %v3218 = vunpack.c.0.s8 %v3217
    %v3219 = vperm.slane %v3211, %v3218
    %v3220 = vrot.slane %v3207, 4
    %v3221 = vsel %vm2752, %v3220, %v3197
    %v3222 = vrot.slane %v3197, 4
    %v3223 = vsel %vm2752, %v3207, %v3222
    %v3225 = vunpack.c.l.s4 1934713408
    %v3226 = vunpack.c.0.s8 %v3225
    %v3227 = vperm.slane %v3221, %v3226
    %v3229 = vunpack.c.l.s4 1934713408
    %v3230 = vunpack.c.0.s8 %v3229
    %v3231 = vperm.slane %v3223, %v3230
    %v3232 = vrot.slane %v3215, 4
    %v3233 = vsel %vm2752, 0.0, %v3232
    %v3234 = vrot.slane %v3219, 4
    %v3235 = vsel %vm2752, 0.0, %v3234
    %v3236 = vrot.slane %v3227, 4
    %v3237 = vsel %vm2752, 0.0, %v3236
    %v3238 = vrot.slane %v3231, 4
    %v3239 = vsel %vm2752, 0.0, %v3238
    %v3240 = vrot.slane %v2730, 4
    %v3241 = vsel %vm2752, 0.0, %v3240
    %v3243 = vunpack.c.l.s4 1983009808
    %v3244 = vunpack.c.0.s8 %v3243
    %v3245 = vperm.slane %v2730, %v3244
    %v3247 = vunpack.c.l.s4 1983009808
    %v3248 = vunpack.c.0.s8 %v3247
    %v3249 = vperm.slane %v3241, %v3248
    %v3250 = vrot.slane %v3129, 4
    %v3251 = vsel %vm2752, 0.0, %v3250
    %v3253 = vunpack.c.l.s4 1983009808
    %v3254 = vunpack.c.0.s8 %v3253
    %v3255 = vperm.slane %v3129, %v3254
    %v3257 = vunpack.c.l.s4 1983009808
    %v3258 = vunpack.c.0.s8 %v3257
    %v3259 = vperm.slane %v3251, %v3258
    %v3260 = vrot.slane %v3255, 4
    %v3261 = vsel %vm2752, %v3260, %v3245
    %v3262 = vrot.slane %v3245, 4
    %v3263 = vsel %vm2752, %v3255, %v3262
    %v3265 = vunpack.c.l.s4 1934713408
    %v3266 = vunpack.c.0.s8 %v3265
    %v3267 = vperm.slane %v3261, %v3266
    %v3269 = vunpack.c.l.s4 1934713408
    %v3270 = vunpack.c.0.s8 %v3269
    %v3271 = vperm.slane %v3263, %v3270
    %v3272 = vrot.slane %v3259, 4
    %v3273 = vsel %vm2752, %v3272, %v3249
    %v3274 = vrot.slane %v3249, 4
    %v3275 = vsel %vm2752, %v3259, %v3274
    %v3277 = vunpack.c.l.s4 1934713408
    %v3278 = vunpack.c.0.s8 %v3277
    %v3279 = vperm.slane %v3273, %v3278
    %v3281 = vunpack.c.l.s4 1934713408
    %v3282 = vunpack.c.0.s8 %v3281
    %v3283 = vperm.slane %v3275, %v3282
    %v3284 = vrot.slane %v3267, 4
    %v3285 = vsel %vm2752, 0.0, %v3284
    %v3286 = vrot.slane %v3271, 4
    %v3287 = vsel %vm2752, 0.0, %v3286
    %v3288 = vrot.slane %v3279, 4
    %v3289 = vsel %vm2752, 0.0, %v3288
    %v3290 = vrot.slane %v3283, 4
    %v3291 = vsel %vm2752, 0.0, %v3290
    %v3292 = vrot.slane %v2733, 4
    %v3293 = vsel %vm2752, 0.0, %v3292
    %v3295 = vunpack.c.l.s4 1983009808
    %v3296 = vunpack.c.0.s8 %v3295
    %v3297 = vperm.slane %v2733, %v3296
    %v3299 = vunpack.c.l.s4 1983009808
    %v3300 = vunpack.c.0.s8 %v3299
    %v3301 = vperm.slane %v3293, %v3300
    %v3302 = vrot.slane %v3131, 4
    %v3303 = vsel %vm2752, 0.0, %v3302
    %v3305 = vunpack.c.l.s4 1983009808
    %v3306 = vunpack.c.0.s8 %v3305
    %v3307 = vperm.slane %v3131, %v3306
    %v3309 = vunpack.c.l.s4 1983009808
    %v3310 = vunpack.c.0.s8 %v3309
    %v3311 = vperm.slane %v3303, %v3310
    %v3312 = vrot.slane %v3307, 4
    %v3313 = vsel %vm2752, %v3312, %v3297
    %v3314 = vrot.slane %v3297, 4
    %v3315 = vsel %vm2752, %v3307, %v3314
    %v3317 = vunpack.c.l.s4 1934713408
    %v3318 = vunpack.c.0.s8 %v3317
    %v3319 = vperm.slane %v3313, %v3318
    %v3321 = vunpack.c.l.s4 1934713408
    %v3322 = vunpack.c.0.s8 %v3321
    %v3323 = vperm.slane %v3315, %v3322
    %v3324 = vrot.slane %v3311, 4
    %v3325 = vsel %vm2752, %v3324, %v3301
    %v3326 = vrot.slane %v3301, 4
    %v3327 = vsel %vm2752, %v3311, %v3326
    %v3329 = vunpack.c.l.s4 1934713408
    %v3330 = vunpack.c.0.s8 %v3329
    %v3331 = vperm.slane %v3325, %v3330
    %v3333 = vunpack.c.l.s4 1934713408
    %v3334 = vunpack.c.0.s8 %v3333
    %v3335 = vperm.slane %v3327, %v3334
    %v3336 = vrot.slane %v3319, 4
    %v3337 = vsel %vm2752, 0.0, %v3336
    %v3338 = vrot.slane %v3323, 4
    %v3339 = vsel %vm2752, 0.0, %v3338
    %v3340 = vrot.slane %v3331, 4
    %v3341 = vsel %vm2752, 0.0, %v3340
    %v3342 = vrot.slane %v3335, 4
    %v3343 = vsel %vm2752, 0.0, %v3342
    %v3344 = vsel %vm2752, %v3182, %v3163
    %v3346 = vunpack.c.l.s4 1983009808
    %v3347 = vunpack.c.0.s8 %v3346
    %v3348 = vperm.slane %v3344, %v3347
    %v3349 = vrot.slane %v3183, 4
    %v3350 = vsel %vm2752, %v3349, %v3181
    %v3352 = vunpack.c.l.s4 1983009808
    %v3353 = vunpack.c.0.s8 %v3352
    %v3354 = vperm.slane %v3350, %v3353
    %v3355 = vsel %vm2752, %v3186, %v3175
    %v3357 = vunpack.c.l.s4 1983009808
    %v3358 = vunpack.c.0.s8 %v3357
    %v3359 = vperm.slane %v3355, %v3358
    %v3360 = vrot.slane %v3187, 4
    %v3361 = vsel %vm2752, %v3360, %v3185
    %v3363 = vunpack.c.l.s4 1983009808
    %v3364 = vunpack.c.0.s8 %v3363
    %v3365 = vperm.slane %v3361, %v3364
    %v3366 = vrot.slane %v3354, 4
    %v3367 = vsel %vm2752, %v3366, %v3348
    %v3369 = vunpack.c.l.s4 1934713408
    %v3370 = vunpack.c.0.s8 %v3369
    %v3371 = vperm.slane %v3367, %v3370
    %v3372 = vrot.slane %v3365, 4
    %v3373 = vsel %vm2752, %v3372, %v3359
    %v3375 = vunpack.c.l.s4 1934713408
    %v3376 = vunpack.c.0.s8 %v3375
    %v3377 = vperm.slane %v3373, %v3376
    %v3378 = vrot.slane %v3377, 4
    %v3379 = vsel %vm2752, %v3378, %v3371
    %v3380 = vrot.slane %v3371, 4
    %v3381 = vsel %vm2752, %v3377, %v3380
    %v3382 = vsel %vm2752, %v3234, %v3215
    %v3384 = vunpack.c.l.s4 1983009808
    %v3385 = vunpack.c.0.s8 %v3384
    %v3386 = vperm.slane %v3382, %v3385
    %v3387 = vrot.slane %v3235, 4
    %v3388 = vsel %vm2752, %v3387, %v3233
    %v3390 = vunpack.c.l.s4 1983009808
    %v3391 = vunpack.c.0.s8 %v3390
    %v3392 = vperm.slane %v3388, %v3391
    %v3393 = vsel %vm2752, %v3238, %v3227
    %v3395 = vunpack.c.l.s4 1983009808
    %v3396 = vunpack.c.0.s8 %v3395
    %v3397 = vperm.slane %v3393, %v3396
    %v3398 = vrot.slane %v3239, 4
    %v3399 = vsel %vm2752, %v3398, %v3237
    %v3401 = vunpack.c.l.s4 1983009808
    %v3402 = vunpack.c.0.s8 %v3401
    %v3403 = vperm.slane %v3399, %v3402
    %v3404 = vrot.slane %v3392, 4
    %v3405 = vsel %vm2752, %v3404, %v3386
    %v3407 = vunpack.c.l.s4 1934713408
    %v3408 = vunpack.c.0.s8 %v3407
    %v3409 = vperm.slane %v3405, %v3408
    %v3410 = vrot.slane %v3403, 4
    %v3411 = vsel %vm2752, %v3410, %v3397
    %v3413 = vunpack.c.l.s4 1934713408
    %v3414 = vunpack.c.0.s8 %v3413
    %v3415 = vperm.slane %v3411, %v3414
    %v3416 = vrot.slane %v3415, 4
    %v3417 = vsel %vm2752, %v3416, %v3409
    %v3418 = vrot.slane %v3409, 4
    %v3419 = vsel %vm2752, %v3415, %v3418
    %v3420 = vsel %vm2752, %v3286, %v3267
    %v3422 = vunpack.c.l.s4 1983009808
    %v3423 = vunpack.c.0.s8 %v3422
    %v3424 = vperm.slane %v3420, %v3423
    %v3425 = vrot.slane %v3287, 4
    %v3426 = vsel %vm2752, %v3425, %v3285
    %v3428 = vunpack.c.l.s4 1983009808
    %v3429 = vunpack.c.0.s8 %v3428
    %v3430 = vperm.slane %v3426, %v3429
    %v3431 = vsel %vm2752, %v3290, %v3279
    %v3433 = vunpack.c.l.s4 1983009808
    %v3434 = vunpack.c.0.s8 %v3433
    %v3435 = vperm.slane %v3431, %v3434
    %v3436 = vrot.slane %v3291, 4
    %v3437 = vsel %vm2752, %v3436, %v3289
    %v3439 = vunpack.c.l.s4 1983009808
    %v3440 = vunpack.c.0.s8 %v3439
    %v3441 = vperm.slane %v3437, %v3440
    %v3442 = vrot.slane %v3430, 4
    %v3443 = vsel %vm2752, %v3442, %v3424
    %v3445 = vunpack.c.l.s4 1934713408
    %v3446 = vunpack.c.0.s8 %v3445
    %v3447 = vperm.slane %v3443, %v3446
    %v3448 = vrot.slane %v3441, 4
    %v3449 = vsel %vm2752, %v3448, %v3435
    %v3451 = vunpack.c.l.s4 1934713408
    %v3452 = vunpack.c.0.s8 %v3451
    %v3453 = vperm.slane %v3449, %v3452
    %v3454 = vrot.slane %v3453, 4
    %v3455 = vsel %vm2752, %v3454, %v3447
    %v3456 = vrot.slane %v3447, 4
    %v3457 = vsel %vm2752, %v3453, %v3456
    %v3458 = vsel %vm2752, %v3338, %v3319
    %v3460 = vunpack.c.l.s4 1983009808
    %v3461 = vunpack.c.0.s8 %v3460
    %v3462 = vperm.slane %v3458, %v3461
    %v3463 = vrot.slane %v3339, 4
    %v3464 = vsel %vm2752, %v3463, %v3337
    %v3466 = vunpack.c.l.s4 1983009808
    %v3467 = vunpack.c.0.s8 %v3466
    %v3468 = vperm.slane %v3464, %v3467
    %v3469 = vsel %vm2752, %v3342, %v3331
    %v3471 = vunpack.c.l.s4 1983009808
    %v3472 = vunpack.c.0.s8 %v3471
    %v3473 = vperm.slane %v3469, %v3472
    %v3474 = vrot.slane %v3343, 4
    %v3475 = vsel %vm2752, %v3474, %v3341
    %v3477 = vunpack.c.l.s4 1983009808
    %v3478 = vunpack.c.0.s8 %v3477
    %v3479 = vperm.slane %v3475, %v3478
    %v3480 = vrot.slane %v3468, 4
    %v3481 = vsel %vm2752, %v3480, %v3462
    %v3483 = vunpack.c.l.s4 1934713408
    %v3484 = vunpack.c.0.s8 %v3483
    %v3485 = vperm.slane %v3481, %v3484
    %v3486 = vrot.slane %v3479, 4
    %v3487 = vsel %vm2752, %v3486, %v3473
    %v3489 = vunpack.c.l.s4 1934713408
    %v3490 = vunpack.c.0.s8 %v3489
    %v3491 = vperm.slane %v3487, %v3490
    %v3492 = vrot.slane %v3491, 4
    %v3493 = vsel %vm2752, %v3492, %v3485
    %v3494 = vrot.slane %v3485, 4
    %v3495 = vsel %vm2752, %v3491, %v3494
    %v3496 = vpack.c.bf16 %v3379, %v3379
    %v3497 = vpack.c.bf16 %v3417, %v3417
    %v3498 = vpack.c.bf16 %v3455, %v3455
    %v3499 = vpack.c.bf16 %v3493, %v3493
    %v3500 = vpack.c.bf16 %v3381, %v3381
    %v3501 = vpack.c.bf16 %v3419, %v3419
    %v3502 = vpack.c.bf16 %v3457, %v3457
    %v3503 = vpack.c.bf16 %v3495, %v3495
    %3508 = vrot.lane.b32.xlu0 %v2725, 64
    %v3509 = vpop.permute.xlu0 %3508
    %3510 = vrot.lane.b32.xlu0 %v2728, 64
    %v3511 = vpop.permute.xlu0 %3510
    %3512 = vrot.lane.b32.xlu0 %v2731, 64
    %v3513 = vpop.permute.xlu0 %3512
    %3514 = vrot.lane.b32.xlu0 %v2734, 64
    %v3515 = vpop.permute.xlu0 %3514
    %v3520 = vrot.slane %v2725, 4
    %v3521 = vsel %vm2752, 0.0, %v3520
    %v3523 = vunpack.c.l.s4 1983009808
    %v3524 = vunpack.c.0.s8 %v3523
    %v3525 = vperm.slane %v2725, %v3524
    %v3527 = vunpack.c.l.s4 1983009808
    %v3528 = vunpack.c.0.s8 %v3527
    %v3529 = vperm.slane %v3521, %v3528
    %v3530 = vrot.slane %v3509, 4
    %v3531 = vsel %vm2752, 0.0, %v3530
    %v3533 = vunpack.c.l.s4 1983009808
    %v3534 = vunpack.c.0.s8 %v3533
    %v3535 = vperm.slane %v3509, %v3534
    %v3537 = vunpack.c.l.s4 1983009808
    %v3538 = vunpack.c.0.s8 %v3537
    %v3539 = vperm.slane %v3531, %v3538
    %v3540 = vrot.slane %v3535, 4
    %v3541 = vsel %vm2752, %v3540, %v3525
    %v3542 = vrot.slane %v3525, 4
    %v3543 = vsel %vm2752, %v3535, %v3542
    %v3545 = vunpack.c.l.s4 1934713408
    %v3546 = vunpack.c.0.s8 %v3545
    %v3547 = vperm.slane %v3541, %v3546
    %v3549 = vunpack.c.l.s4 1934713408
    %v3550 = vunpack.c.0.s8 %v3549
    %v3551 = vperm.slane %v3543, %v3550
    %v3552 = vrot.slane %v3539, 4
    %v3553 = vsel %vm2752, %v3552, %v3529
    %v3554 = vrot.slane %v3529, 4
    %v3555 = vsel %vm2752, %v3539, %v3554
    %v3557 = vunpack.c.l.s4 1934713408
    %v3558 = vunpack.c.0.s8 %v3557
    %v3559 = vperm.slane %v3553, %v3558
    %v3561 = vunpack.c.l.s4 1934713408
    %v3562 = vunpack.c.0.s8 %v3561
    %v3563 = vperm.slane %v3555, %v3562
    %v3564 = vrot.slane %v3547, 4
    %v3565 = vsel %vm2752, 0.0, %v3564
    %v3566 = vrot.slane %v3551, 4
    %v3567 = vsel %vm2752, 0.0, %v3566
    %v3568 = vrot.slane %v3559, 4
    %v3569 = vsel %vm2752, 0.0, %v3568
    %v3570 = vrot.slane %v3563, 4
    %v3571 = vsel %vm2752, 0.0, %v3570
    %v3572 = vrot.slane %v2728, 4
    %v3573 = vsel %vm2752, 0.0, %v3572
    %v3575 = vunpack.c.l.s4 1983009808
    %v3576 = vunpack.c.0.s8 %v3575
    %v3577 = vperm.slane %v2728, %v3576
    %v3579 = vunpack.c.l.s4 1983009808
    %v3580 = vunpack.c.0.s8 %v3579
    %v3581 = vperm.slane %v3573, %v3580
    %v3582 = vrot.slane %v3511, 4
    %v3583 = vsel %vm2752, 0.0, %v3582
    %v3585 = vunpack.c.l.s4 1983009808
    %v3586 = vunpack.c.0.s8 %v3585
    %v3587 = vperm.slane %v3511, %v3586
    %v3589 = vunpack.c.l.s4 1983009808
    %v3590 = vunpack.c.0.s8 %v3589
    %v3591 = vperm.slane %v3583, %v3590
    %v3592 = vrot.slane %v3587, 4
    %v3593 = vsel %vm2752, %v3592, %v3577
    %v3594 = vrot.slane %v3577, 4
    %v3595 = vsel %vm2752, %v3587, %v3594
    %v3597 = vunpack.c.l.s4 1934713408
    %v3598 = vunpack.c.0.s8 %v3597
    %v3599 = vperm.slane %v3593, %v3598
    %v3601 = vunpack.c.l.s4 1934713408
    %v3602 = vunpack.c.0.s8 %v3601
    %v3603 = vperm.slane %v3595, %v3602
    %v3604 = vrot.slane %v3591, 4
    %v3605 = vsel %vm2752, %v3604, %v3581
    %v3606 = vrot.slane %v3581, 4
    %v3607 = vsel %vm2752, %v3591, %v3606
    %v3609 = vunpack.c.l.s4 1934713408
    %v3610 = vunpack.c.0.s8 %v3609
    %v3611 = vperm.slane %v3605, %v3610
    %v3613 = vunpack.c.l.s4 1934713408
    %v3614 = vunpack.c.0.s8 %v3613
    %v3615 = vperm.slane %v3607, %v3614
    %v3616 = vrot.slane %v3599, 4
    %v3617 = vsel %vm2752, 0.0, %v3616
    %v3618 = vrot.slane %v3603, 4
    %v3619 = vsel %vm2752, 0.0, %v3618
    %v3620 = vrot.slane %v3611, 4
    %v3621 = vsel %vm2752, 0.0, %v3620
    %v3622 = vrot.slane %v3615, 4
    %v3623 = vsel %vm2752, 0.0, %v3622
    %v3624 = vrot.slane %v2731, 4
    %v3625 = vsel %vm2752, 0.0, %v3624
    %v3627 = vunpack.c.l.s4 1983009808
    %v3628 = vunpack.c.0.s8 %v3627
    %v3629 = vperm.slane %v2731, %v3628
    %v3631 = vunpack.c.l.s4 1983009808
    %v3632 = vunpack.c.0.s8 %v3631
    %v3633 = vperm.slane %v3625, %v3632
    %v3634 = vrot.slane %v3513, 4
    %v3635 = vsel %vm2752, 0.0, %v3634
    %v3637 = vunpack.c.l.s4 1983009808
    %v3638 = vunpack.c.0.s8 %v3637
    %v3639 = vperm.slane %v3513, %v3638
    %v3641 = vunpack.c.l.s4 1983009808
    %v3642 = vunpack.c.0.s8 %v3641
    %v3643 = vperm.slane %v3635, %v3642
    %v3644 = vrot.slane %v3639, 4
    %v3645 = vsel %vm2752, %v3644, %v3629
    %v3646 = vrot.slane %v3629, 4
    %v3647 = vsel %vm2752, %v3639, %v3646
    %v3649 = vunpack.c.l.s4 1934713408
    %v3650 = vunpack.c.0.s8 %v3649
    %v3651 = vperm.slane %v3645, %v3650
    %v3653 = vunpack.c.l.s4 1934713408
    %v3654 = vunpack.c.0.s8 %v3653
    %v3655 = vperm.slane %v3647, %v3654
    %v3656 = vrot.slane %v3643, 4
    %v3657 = vsel %vm2752, %v3656, %v3633
    %v3658 = vrot.slane %v3633, 4
    %v3659 = vsel %vm2752, %v3643, %v3658
    %v3661 = vunpack.c.l.s4 1934713408
    %v3662 = vunpack.c.0.s8 %v3661
    %v3663 = vperm.slane %v3657, %v3662
    %v3665 = vunpack.c.l.s4 1934713408
    %v3666 = vunpack.c.0.s8 %v3665
    %v3667 = vperm.slane %v3659, %v3666
    %v3668 = vrot.slane %v3651, 4
    %v3669 = vsel %vm2752, 0.0, %v3668
    %v3670 = vrot.slane %v3655, 4
    %v3671 = vsel %vm2752, 0.0, %v3670
    %v3672 = vrot.slane %v3663, 4
    %v3673 = vsel %vm2752, 0.0, %v3672
    %v3674 = vrot.slane %v3667, 4
    %v3675 = vsel %vm2752, 0.0, %v3674
    %v3676 = vrot.slane %v2734, 4
    %v3677 = vsel %vm2752, 0.0, %v3676
    %v3679 = vunpack.c.l.s4 1983009808
    %v3680 = vunpack.c.0.s8 %v3679
    %v3681 = vperm.slane %v2734, %v3680
    %v3683 = vunpack.c.l.s4 1983009808
    %v3684 = vunpack.c.0.s8 %v3683
    %v3685 = vperm.slane %v3677, %v3684
    %v3686 = vrot.slane %v3515, 4
    %v3687 = vsel %vm2752, 0.0, %v3686
    %v3689 = vunpack.c.l.s4 1983009808
    %v3690 = vunpack.c.0.s8 %v3689
    %v3691 = vperm.slane %v3515, %v3690
    %v3693 = vunpack.c.l.s4 1983009808
    %v3694 = vunpack.c.0.s8 %v3693
    %v3695 = vperm.slane %v3687, %v3694
    %v3696 = vrot.slane %v3691, 4
    %v3697 = vsel %vm2752, %v3696, %v3681
    %v3698 = vrot.slane %v3681, 4
    %v3699 = vsel %vm2752, %v3691, %v3698
    %v3701 = vunpack.c.l.s4 1934713408
    %v3702 = vunpack.c.0.s8 %v3701
    %v3703 = vperm.slane %v3697, %v3702
    %v3705 = vunpack.c.l.s4 1934713408
    %v3706 = vunpack.c.0.s8 %v3705
    %v3707 = vperm.slane %v3699, %v3706
    %v3708 = vrot.slane %v3695, 4
    %v3709 = vsel %vm2752, %v3708, %v3685
    %v3710 = vrot.slane %v3685, 4
    %v3711 = vsel %vm2752, %v3695, %v3710
    %v3713 = vunpack.c.l.s4 1934713408
    %v3714 = vunpack.c.0.s8 %v3713
    %v3715 = vperm.slane %v3709, %v3714
    %v3717 = vunpack.c.l.s4 1934713408
    %v3718 = vunpack.c.0.s8 %v3717
    %v3719 = vperm.slane %v3711, %v3718
    %v3720 = vrot.slane %v3703, 4
    %v3721 = vsel %vm2752, 0.0, %v3720
    %v3722 = vrot.slane %v3707, 4
    %v3723 = vsel %vm2752, 0.0, %v3722
    %v3724 = vrot.slane %v3715, 4
    %v3725 = vsel %vm2752, 0.0, %v3724
    %v3726 = vrot.slane %v3719, 4
    %v3727 = vsel %vm2752, 0.0, %v3726
    %v3728 = vsel %vm2752, %v3566, %v3547
    %v3730 = vunpack.c.l.s4 1983009808
    %v3731 = vunpack.c.0.s8 %v3730
    %v3732 = vperm.slane %v3728, %v3731
    %v3733 = vrot.slane %v3567, 4
    %v3734 = vsel %vm2752, %v3733, %v3565
    %v3736 = vunpack.c.l.s4 1983009808
    %v3737 = vunpack.c.0.s8 %v3736
    %v3738 = vperm.slane %v3734, %v3737
    %v3739 = vsel %vm2752, %v3570, %v3559
    %v3741 = vunpack.c.l.s4 1983009808
    %v3742 = vunpack.c.0.s8 %v3741
    %v3743 = vperm.slane %v3739, %v3742
    %v3744 = vrot.slane %v3571, 4
    %v3745 = vsel %vm2752, %v3744, %v3569
    %v3747 = vunpack.c.l.s4 1983009808
    %v3748 = vunpack.c.0.s8 %v3747
    %v3749 = vperm.slane %v3745, %v3748
    %v3750 = vrot.slane %v3738, 4
    %v3751 = vsel %vm2752, %v3750, %v3732
    %v3753 = vunpack.c.l.s4 1934713408
    %v3754 = vunpack.c.0.s8 %v3753
    %v3755 = vperm.slane %v3751, %v3754
    %v3756 = vrot.slane %v3749, 4
    %v3757 = vsel %vm2752, %v3756, %v3743
    %v3759 = vunpack.c.l.s4 1934713408
    %v3760 = vunpack.c.0.s8 %v3759
    %v3761 = vperm.slane %v3757, %v3760
    %v3762 = vrot.slane %v3761, 4
    %v3763 = vsel %vm2752, %v3762, %v3755
    %v3764 = vrot.slane %v3755, 4
    %v3765 = vsel %vm2752, %v3761, %v3764
    %v3766 = vsel %vm2752, %v3618, %v3599
    %v3768 = vunpack.c.l.s4 1983009808
    %v3769 = vunpack.c.0.s8 %v3768
    %v3770 = vperm.slane %v3766, %v3769
    %v3771 = vrot.slane %v3619, 4
    %v3772 = vsel %vm2752, %v3771, %v3617
    %v3774 = vunpack.c.l.s4 1983009808
    %v3775 = vunpack.c.0.s8 %v3774
    %v3776 = vperm.slane %v3772, %v3775
    %v3777 = vsel %vm2752, %v3622, %v3611
    %v3779 = vunpack.c.l.s4 1983009808
    %v3780 = vunpack.c.0.s8 %v3779
    %v3781 = vperm.slane %v3777, %v3780
    %v3782 = vrot.slane %v3623, 4
    %v3783 = vsel %vm2752, %v3782, %v3621
    %v3785 = vunpack.c.l.s4 1983009808
    %v3786 = vunpack.c.0.s8 %v3785
    %v3787 = vperm.slane %v3783, %v3786
    %v3788 = vrot.slane %v3776, 4
    %v3789 = vsel %vm2752, %v3788, %v3770
    %v3791 = vunpack.c.l.s4 1934713408
    %v3792 = vunpack.c.0.s8 %v3791
    %v3793 = vperm.slane %v3789, %v3792
    %v3794 = vrot.slane %v3787, 4
    %v3795 = vsel %vm2752, %v3794, %v3781
    %v3797 = vunpack.c.l.s4 1934713408
    %v3798 = vunpack.c.0.s8 %v3797
    %v3799 = vperm.slane %v3795, %v3798
    %v3800 = vrot.slane %v3799, 4
    %v3801 = vsel %vm2752, %v3800, %v3793
    %v3802 = vrot.slane %v3793, 4
    %v3803 = vsel %vm2752, %v3799, %v3802
    %v3804 = vsel %vm2752, %v3670, %v3651
    %v3806 = vunpack.c.l.s4 1983009808
    %v3807 = vunpack.c.0.s8 %v3806
    %v3808 = vperm.slane %v3804, %v3807
    %v3809 = vrot.slane %v3671, 4
    %v3810 = vsel %vm2752, %v3809, %v3669
    %v3812 = vunpack.c.l.s4 1983009808
    %v3813 = vunpack.c.0.s8 %v3812
    %v3814 = vperm.slane %v3810, %v3813
    %v3815 = vsel %vm2752, %v3674, %v3663
    %v3817 = vunpack.c.l.s4 1983009808
    %v3818 = vunpack.c.0.s8 %v3817
    %v3819 = vperm.slane %v3815, %v3818
    %v3820 = vrot.slane %v3675, 4
    %v3821 = vsel %vm2752, %v3820, %v3673
    %v3823 = vunpack.c.l.s4 1983009808
    %v3824 = vunpack.c.0.s8 %v3823
    %v3825 = vperm.slane %v3821, %v3824
    %v3826 = vrot.slane %v3814, 4
    %v3827 = vsel %vm2752, %v3826, %v3808
    %v3829 = vunpack.c.l.s4 1934713408
    %v3830 = vunpack.c.0.s8 %v3829
    %v3831 = vperm.slane %v3827, %v3830
    %v3832 = vrot.slane %v3825, 4
    %v3833 = vsel %vm2752, %v3832, %v3819
    %v3835 = vunpack.c.l.s4 1934713408
    %v3836 = vunpack.c.0.s8 %v3835
    %v3837 = vperm.slane %v3833, %v3836
    %v3838 = vrot.slane %v3837, 4
    %v3839 = vsel %vm2752, %v3838, %v3831
    %v3840 = vrot.slane %v3831, 4
    %v3841 = vsel %vm2752, %v3837, %v3840
    %v3842 = vsel %vm2752, %v3722, %v3703
    %v3844 = vunpack.c.l.s4 1983009808
    %v3845 = vunpack.c.0.s8 %v3844
    %v3846 = vperm.slane %v3842, %v3845
    %v3847 = vrot.slane %v3723, 4
    %v3848 = vsel %vm2752, %v3847, %v3721
    %v3850 = vunpack.c.l.s4 1983009808
    %v3851 = vunpack.c.0.s8 %v3850
    %v3852 = vperm.slane %v3848, %v3851
    %v3853 = vsel %vm2752, %v3726, %v3715
    %v3855 = vunpack.c.l.s4 1983009808
    %v3856 = vunpack.c.0.s8 %v3855
    %v3857 = vperm.slane %v3853, %v3856
    %v3858 = vrot.slane %v3727, 4
    %v3859 = vsel %vm2752, %v3858, %v3725
    %v3861 = vunpack.c.l.s4 1983009808
    %v3862 = vunpack.c.0.s8 %v3861
    %v3863 = vperm.slane %v3859, %v3862
    %v3864 = vrot.slane %v3852, 4
    %v3865 = vsel %vm2752, %v3864, %v3846
    %v3867 = vunpack.c.l.s4 1934713408
    %v3868 = vunpack.c.0.s8 %v3867
    %v3869 = vperm.slane %v3865, %v3868
    %v3870 = vrot.slane %v3863, 4
    %v3871 = vsel %vm2752, %v3870, %v3857
    %v3873 = vunpack.c.l.s4 1934713408
    %v3874 = vunpack.c.0.s8 %v3873
    %v3875 = vperm.slane %v3871, %v3874
    %v3876 = vrot.slane %v3875, 4
    %v3877 = vsel %vm2752, %v3876, %v3869
    %v3878 = vrot.slane %v3869, 4
    %v3879 = vsel %vm2752, %v3875, %v3878
    %v3880 = vpack.c.bf16 %v3763, %v3763
    %v3881 = vpack.c.bf16 %v3801, %v3801
    %v3882 = vpack.c.bf16 %v3839, %v3839
    %v3883 = vpack.c.bf16 %v3877, %v3877
    %v3884 = vpack.c.bf16 %v3765, %v3765
    %v3885 = vpack.c.bf16 %v3803, %v3803
    %v3886 = vpack.c.bf16 %v3841, %v3841
    %v3887 = vpack.c.bf16 %v3879, %v3879
    %v3890 = vunpack.c.l.b16 %v3112
    %v3891 = vunpack.c.l.b16 %v3113
    %v3892 = vpack.c.b16 %v3891, %v3890
    %v3895 = vunpack.c.l.b16 %v3496
    %v3896 = vunpack.c.l.b16 %v3497
    %v3897 = vpack.c.b16 %v3896, %v3895
    %vm3898 = vcmask 523264
    %v3900 = vsel %vm3898, %v3892, 0
    %v3903 = vsel %vm3898, %v3897, 0
    %3905 = vmatpush.bf16.xpose.msra.mxu0 0
    %3906 = vmatpush.bf16.xpose.msra.mxu0 0
    %3907 = vmatpush.bf16.xpose.msra.mxu0 0
    %3908 = vmatpush.bf16.xpose.msra.mxu0 0
    %3909 = vmatpush.bf16.xpose.msra.mxu0 0
    %3910 = vmatpush.bf16.xpose.msra.mxu0 0
    %3911 = vmatpush.bf16.xpose.msra.mxu0 0
    %3912 = vmatpush.bf16.xpose.msra.mxu0 %v3903
    %3913 = vmatmul.bf16.gmra.mxu0 %v3900
    %v3914 = vpop.f32.mrf.mxu0
    %v3915 = vadd.f32 0.0, %v3914
    %v3916 = vpop.f32.mrf.mxu0
    %v3917 = vadd.f32 0.0, %v3916
    %3918 = vdwg.mxu0
    %v3921 = vunpack.c.l.b16 %v3114
    %v3922 = vunpack.c.l.b16 %v3115
    %v3923 = vpack.c.b16 %v3922, %v3921
    %v3926 = vunpack.c.l.b16 %v3498
    %v3927 = vunpack.c.l.b16 %v3499
    %v3928 = vpack.c.b16 %v3927, %v3926
    %v3930 = vsel %vm3898, %v3923, 0
    %v3933 = vsel %vm3898, %v3928, 0
    %3935 = vmatpush.bf16.xpose.msra.mxu0 0
    %3936 = vmatpush.bf16.xpose.msra.mxu0 0
    %3937 = vmatpush.bf16.xpose.msra.mxu0 0
    %3938 = vmatpush.bf16.xpose.msra.mxu0 0
    %3939 = vmatpush.bf16.xpose.msra.mxu0 0
    %3940 = vmatpush.bf16.xpose.msra.mxu0 0
    %3941 = vmatpush.bf16.xpose.msra.mxu0 0
    %3942 = vmatpush.bf16.xpose.msra.mxu0 %v3933
    %3943 = vmatmul.bf16.gmra.mxu0 %v3930
    %v3944 = vpop.f32.mrf.mxu0
    %v3945 = vadd.f32 0.0, %v3944
    %v3946 = vpop.f32.mrf.mxu0
    %v3947 = vadd.f32 0.0, %v3946
    %3948 = vdwg.mxu0
    %v3951 = vunpack.c.l.b16 %v3116
    %v3952 = vunpack.c.l.b16 %v3117
    %v3953 = vpack.c.b16 %v3952, %v3951
    %v3956 = vunpack.c.l.b16 %v3500
    %v3957 = vunpack.c.l.b16 %v3501
    %v3958 = vpack.c.b16 %v3957, %v3956
    %v3960 = vsel %vm3898, %v3953, 0
    %v3963 = vsel %vm3898, %v3958, 0
    %3965 = vmatpush.bf16.xpose.msra.mxu0 0
    %3966 = vmatpush.bf16.xpose.msra.mxu0 0
    %3967 = vmatpush.bf16.xpose.msra.mxu0 0
    %3968 = vmatpush.bf16.xpose.msra.mxu0 0
    %3969 = vmatpush.bf16.xpose.msra.mxu0 0
    %3970 = vmatpush.bf16.xpose.msra.mxu0 0
    %3971 = vmatpush.bf16.xpose.msra.mxu0 0
    %3972 = vmatpush.bf16.xpose.msra.mxu0 %v3963
    %3973 = vmatmul.bf16.gmra.mxu0 %v3960
    %v3974 = vpop.f32.mrf.mxu0
    %v3975 = vadd.f32 0.0, %v3974
    %v3976 = vpop.f32.mrf.mxu0
    %v3977 = vadd.f32 0.0, %v3976
    %3978 = vdwg.mxu0
    %v3981 = vunpack.c.l.b16 %v3118
    %v3982 = vunpack.c.l.b16 %v3119
    %v3983 = vpack.c.b16 %v3982, %v3981
    %v3986 = vunpack.c.l.b16 %v3502
    %v3987 = vunpack.c.l.b16 %v3503
    %v3988 = vpack.c.b16 %v3987, %v3986
    %v3990 = vsel %vm3898, %v3983, 0
    %v3993 = vsel %vm3898, %v3988, 0
    %3995 = vmatpush.bf16.xpose.msra.mxu0 0
    %3996 = vmatpush.bf16.xpose.msra.mxu0 0
    %3997 = vmatpush.bf16.xpose.msra.mxu0 0
    %3998 = vmatpush.bf16.xpose.msra.mxu0 0
    %3999 = vmatpush.bf16.xpose.msra.mxu0 0
    %4000 = vmatpush.bf16.xpose.msra.mxu0 0
    %4001 = vmatpush.bf16.xpose.msra.mxu0 0
    %4002 = vmatpush.bf16.xpose.msra.mxu0 %v3993
    %4003 = vmatmul.bf16.gmra.mxu0 %v3990
    %v4004 = vpop.f32.mrf.mxu0
    %v4005 = vadd.f32 0.0, %v4004
    %v4006 = vpop.f32.mrf.mxu0
    %v4007 = vadd.f32 0.0, %v4006
    %4008 = vdwg.mxu0
    %v4009 = vmul.f32 %v3915, 0.125
    %v4010 = vmul.f32 %v3917, 0.125
    %v4011 = vmul.f32 %v3945, 0.125
    %v4012 = vmul.f32 %v3947, 0.125
    %v4013 = vmul.f32 %v3975, 0.125
    %v4014 = vmul.f32 %v3977, 0.125
    %v4015 = vmul.f32 %v4005, 0.125
    %v4016 = vmul.f32 %v4007, 0.125
    %vm4017 = vcmask 130048
    %v4018 = vsel %vm4017, %v4009, -inf
    %4019 = vmax.xlane.f32.xlu0 %v4018
    %v4020 = vpop.xlane.xlu0 %4019
    %v4021 = vsel %vm4017, %v4010, -inf
    %4022 = vmax.xlane.f32.xlu0 %v4021
    %v4023 = vpop.xlane.xlu0 %4022
    %v4024 = vsel %vm4017, %v4011, -inf
    %4025 = vmax.xlane.f32.xlu0 %v4024
    %v4026 = vpop.xlane.xlu0 %4025
    %v4027 = vsel %vm4017, %v4012, -inf
    %4028 = vmax.xlane.f32.xlu0 %v4027
    %v4029 = vpop.xlane.xlu0 %4028
    %v4030 = vsel %vm4017, %v4013, -inf
    %4031 = vmax.xlane.f32.xlu0 %v4030
    %v4032 = vpop.xlane.xlu0 %4031
    %v4033 = vsel %vm4017, %v4014, -inf
    %4034 = vmax.xlane.f32.xlu0 %v4033
    %v4035 = vpop.xlane.xlu0 %4034
    %v4036 = vsel %vm4017, %v4015, -inf
    %4037 = vmax.xlane.f32.xlu0 %v4036
    %v4038 = vpop.xlane.xlu0 %4037
    %v4039 = vsel %vm4017, %v4016, -inf
    %4040 = vmax.xlane.f32.xlu0 %v4039
    %v4041 = vpop.xlane.xlu0 %4040
    %v4042 = vsub.f32 %v4009, %v4020
    %v4043 = vsub.f32 %v4010, %v4023
    %v4044 = vsub.f32 %v4011, %v4026
    %v4045 = vsub.f32 %v4012, %v4029
    %v4046 = vsub.f32 %v4013, %v4032
    %v4047 = vsub.f32 %v4014, %v4035
    %v4048 = vsub.f32 %v4015, %v4038
    %v4049 = vsub.f32 %v4016, %v4041
    %v4050 = vmul.f32 %v4042, 1.442695
    %v4051 = vpow.pop %v4050
    %v4052 = vmul.f32 %v4043, 1.442695
    %v4053 = vpow.pop %v4052
    %v4054 = vmul.f32 %v4044, 1.442695
    %v4055 = vpow.pop %v4054
    %v4056 = vmul.f32 %v4045, 1.442695
    %v4057 = vpow.pop %v4056
    %v4058 = vmul.f32 %v4046, 1.442695
    %v4059 = vpow.pop %v4058
    %v4060 = vmul.f32 %v4047, 1.442695
    %v4061 = vpow.pop %v4060
    %v4062 = vmul.f32 %v4048, 1.442695
    %v4063 = vpow.pop %v4062
    %v4064 = vmul.f32 %v4049, 1.442695
    %v4065 = vpow.pop %v4064
    %v4066 = vsel %vm4017, %v4051, 0.0
    %4067 = vadd.xlane.f32.xlu0 %v4066
    %v4068 = vpop.xlane.xlu0 %4067
    %v4069 = vsel %vm4017, %v4053, 0.0
    %4070 = vadd.xlane.f32.xlu0 %v4069
    %v4071 = vpop.xlane.xlu0 %4070
    %v4072 = vsel %vm4017, %v4055, 0.0
    %4073 = vadd.xlane.f32.xlu0 %v4072
    %v4074 = vpop.xlane.xlu0 %4073
    %v4075 = vsel %vm4017, %v4057, 0.0
    %4076 = vadd.xlane.f32.xlu0 %v4075
    %v4077 = vpop.xlane.xlu0 %4076
    %v4078 = vsel %vm4017, %v4059, 0.0
    %4079 = vadd.xlane.f32.xlu0 %v4078
    %v4080 = vpop.xlane.xlu0 %4079
    %v4081 = vsel %vm4017, %v4061, 0.0
    %4082 = vadd.xlane.f32.xlu0 %v4081
    %v4083 = vpop.xlane.xlu0 %4082
    %v4084 = vsel %vm4017, %v4063, 0.0
    %4085 = vadd.xlane.f32.xlu0 %v4084
    %v4086 = vpop.xlane.xlu0 %4085
    %v4087 = vsel %vm4017, %v4065, 0.0
    %4088 = vadd.xlane.f32.xlu0 %v4087
    %v4089 = vpop.xlane.xlu0 %4088
    %v4090 = vrcp.pop %v4068
    %v4091 = vrcp.pop %v4071
    %v4092 = vrcp.pop %v4074
    %v4093 = vrcp.pop %v4077
    %v4094 = vrcp.pop %v4080
    %v4095 = vrcp.pop %v4083
    %v4096 = vrcp.pop %v4086
    %v4097 = vrcp.pop %v4089
    %v4098 = vmul.f32 %v4051, %v4090
    %v4099 = vmul.f32 %v4053, %v4091
    %v4100 = vmul.f32 %v4055, %v4092
    %v4101 = vmul.f32 %v4057, %v4093
    %v4102 = vmul.f32 %v4059, %v4094
    %v4103 = vmul.f32 %v4061, %v4095
    %v4104 = vmul.f32 %v4063, %v4096
    %v4105 = vmul.f32 %v4065, %v4097
    %v4106 = vpack.c.bf16 %v4098, %v4098
    %v4107 = vpack.c.bf16 %v4099, %v4099
    %v4108 = vpack.c.bf16 %v4100, %v4100
    %v4109 = vpack.c.bf16 %v4101, %v4101
    %v4110 = vpack.c.bf16 %v4102, %v4102
    %v4111 = vpack.c.bf16 %v4103, %v4103
    %v4112 = vpack.c.bf16 %v4104, %v4104
    %v4113 = vpack.c.bf16 %v4105, %v4105
    %v4116 = vunpack.c.l.b16 %v4106
    %v4117 = vunpack.c.l.b16 %v4107
    %v4118 = vpack.c.b16 %v4117, %v4116
    %v4121 = vunpack.c.l.b16 %v3880
    %v4122 = vunpack.c.l.b16 %v3881
    %v4123 = vpack.c.b16 %v4122, %v4121
    %v4126 = vsel %vm4017, %v4118, 0
    %4128 = vmatpush.bf16.msra.mxu0 0
    %4129 = vmatpush.bf16.msra.mxu0 0
    %4130 = vmatpush.bf16.msra.mxu0 0
    %4131 = vmatpush.bf16.msra.mxu0 0
    %4132 = vmatpush.bf16.msra.mxu0 0
    %4133 = vmatpush.bf16.msra.mxu0 0
    %4134 = vmatpush.bf16.msra.mxu0 0
    %4135 = vmatpush.bf16.msra.mxu0 %v4123
    %4136 = vmatmul.bf16.gmra.mxu0 %v4126
    %v4137 = vpop.f32.mrf.mxu0
    %v4138 = vadd.f32 0.0, %v4137
    %v4139 = vpop.f32.mrf.mxu0
    %v4140 = vadd.f32 0.0, %v4139
    %4141 = vdwg.mxu0
    %v4144 = vunpack.c.l.b16 %v4108
    %v4145 = vunpack.c.l.b16 %v4109
    %v4146 = vpack.c.b16 %v4145, %v4144
    %v4149 = vunpack.c.l.b16 %v3882
    %v4150 = vunpack.c.l.b16 %v3883
    %v4151 = vpack.c.b16 %v4150, %v4149
    %v4154 = vsel %vm4017, %v4146, 0
    %4156 = vmatpush.bf16.msra.mxu0 0
    %4157 = vmatpush.bf16.msra.mxu0 0
    %4158 = vmatpush.bf16.msra.mxu0 0
    %4159 = vmatpush.bf16.msra.mxu0 0
    %4160 = vmatpush.bf16.msra.mxu0 0
    %4161 = vmatpush.bf16.msra.mxu0 0
    %4162 = vmatpush.bf16.msra.mxu0 0
    %4163 = vmatpush.bf16.msra.mxu0 %v4151
    %4164 = vmatmul.bf16.gmra.mxu0 %v4154
    %v4165 = vpop.f32.mrf.mxu0
    %v4166 = vadd.f32 0.0, %v4165
    %v4167 = vpop.f32.mrf.mxu0
    %v4168 = vadd.f32 0.0, %v4167
    %4169 = vdwg.mxu0
    %v4172 = vunpack.c.l.b16 %v4110
    %v4173 = vunpack.c.l.b16 %v4111
    %v4174 = vpack.c.b16 %v4173, %v4172
    %v4177 = vunpack.c.l.b16 %v3884
    %v4178 = vunpack.c.l.b16 %v3885
    %v4179 = vpack.c.b16 %v4178, %v4177
    %v4182 = vsel %vm4017, %v4174, 0
    %4184 = vmatpush.bf16.msra.mxu0 0
    %4185 = vmatpush.bf16.msra.mxu0 0
    %4186 = vmatpush.bf16.msra.mxu0 0
    %4187 = vmatpush.bf16.msra.mxu0 0
    %4188 = vmatpush.bf16.msra.mxu0 0
    %4189 = vmatpush.bf16.msra.mxu0 0
    %4190 = vmatpush.bf16.msra.mxu0 0
    %4191 = vmatpush.bf16.msra.mxu0 %v4179
    %4192 = vmatmul.bf16.gmra.mxu0 %v4182
    %v4193 = vpop.f32.mrf.mxu0
    %v4194 = vadd.f32 0.0, %v4193
    %v4195 = vpop.f32.mrf.mxu0
    %v4196 = vadd.f32 0.0, %v4195
    %4197 = vdwg.mxu0
    %v4200 = vunpack.c.l.b16 %v4112
    %v4201 = vunpack.c.l.b16 %v4113
    %v4202 = vpack.c.b16 %v4201, %v4200
    %v4205 = vunpack.c.l.b16 %v3886
    %v4206 = vunpack.c.l.b16 %v3887
    %v4207 = vpack.c.b16 %v4206, %v4205
    %v4210 = vsel %vm4017, %v4202, 0
    %4212 = vmatpush.bf16.msra.mxu0 0
    %4213 = vmatpush.bf16.msra.mxu0 0
    %4214 = vmatpush.bf16.msra.mxu0 0
    %4215 = vmatpush.bf16.msra.mxu0 0
    %4216 = vmatpush.bf16.msra.mxu0 0
    %4217 = vmatpush.bf16.msra.mxu0 0
    %4218 = vmatpush.bf16.msra.mxu0 0
    %4219 = vmatpush.bf16.msra.mxu0 %v4207
    %4220 = vmatmul.bf16.gmra.mxu0 %v4210
    %v4221 = vpop.f32.mrf.mxu0
    %v4222 = vadd.f32 0.0, %v4221
    %v4223 = vpop.f32.mrf.mxu0
    %v4224 = vadd.f32 0.0, %v4223
    %4225 = vdwg.mxu0
    %v4226 = vpack.c.bf16 %v4138, %v4138
    %v4227 = vpack.c.bf16 %v4140, %v4140
    %v4228 = vpack.c.bf16 %v4166, %v4166
    %v4229 = vpack.c.bf16 %v4168, %v4168
    %v4230 = vpack.c.bf16 %v4194, %v4194
    %v4231 = vpack.c.bf16 %v4196, %v4196
    %v4232 = vpack.c.bf16 %v4222, %v4222
    %v4233 = vpack.c.bf16 %v4224, %v4224
    %v4234 = vld [vmem:[#allocation9] sm:$0xf]
    %v4235 = vld [vmem:[#allocation9 + $0x4] sm:$0xf]
    %v4236 = vld [vmem:[#allocation9 + $0x8] sm:$0xf]
    %v4237 = vld [vmem:[#allocation9 + $0xc] sm:$0xf]
    %v4238 = vld [vmem:[#allocation9 + $0x10] sm:$0xf]
    %v4239 = vld [vmem:[#allocation9 + $0x14] sm:$0xf]
    %v4240 = vld [vmem:[#allocation9 + $0x18] sm:$0xf]
    %v4241 = vld [vmem:[#allocation9 + $0x1c] sm:$0xf]
    %v4242 = vld [vmem:[#allocation9 + $0x20] sm:$0xf]
    %v4243 = vld [vmem:[#allocation9 + $0x24] sm:$0xf]
    %v4244 = vld [vmem:[#allocation9 + $0x28] sm:$0xf]
    %v4245 = vld [vmem:[#allocation9 + $0x2c] sm:$0xf]
    %v4246 = vld [vmem:[#allocation9 + $0x30] sm:$0xf]
    %v4247 = vld [vmem:[#allocation9 + $0x34] sm:$0xf]
    %v4248 = vld [vmem:[#allocation9 + $0x38] sm:$0xf]
    %v4249 = vld [vmem:[#allocation9 + $0x3c] sm:$0xf]
    %v4254 = vunpack.c.l.b16 %v4226
    %v4255 = vunpack.c.l.b16 %v4227
    %v4256 = vunpack.c.l.b16 %v4228
    %v4257 = vunpack.c.l.b16 %v4229
    %v4258 = vpack.c.b16 %v4255, %v4254
    %v4259 = vpack.c.b16 %v4257, %v4256
    %v4268 = vunpack.c.l.b16 %v4234
    %v4269 = vunpack.c.l.b16 %v4235
    %v4270 = vunpack.c.l.b16 %v4236
    %v4271 = vunpack.c.l.b16 %v4237
    %v4272 = vunpack.c.l.b16 %v4238
    %v4273 = vunpack.c.l.b16 %v4239
    %v4274 = vunpack.c.l.b16 %v4240
    %v4275 = vunpack.c.l.b16 %v4241
    %v4276 = vpack.c.b16 %v4269, %v4268
    %v4277 = vpack.c.b16 %v4271, %v4270
    %v4278 = vpack.c.b16 %v4273, %v4272
    %v4279 = vpack.c.b16 %v4275, %v4274
    %v4285 = vsel %vm3898, %v4258, 0
    %v4288 = vsel %vm3898, %v4259, 0
    %4290 = vmatpush.bf16.msra.mxu0 0
    %4291 = vmatpush.bf16.msra.mxu0 0
    %4292 = vmatpush.bf16.msra.mxu0 0
    %4293 = vmatpush.bf16.msra.mxu0 0
    %4294 = vmatpush.bf16.msra.mxu0 %v4279
    %4295 = vmatpush.bf16.msra.mxu0 %v4278
    %4296 = vmatpush.bf16.msra.mxu0 %v4277
    %4297 = vmatpush.bf16.msra.mxu0 %v4276
    %4298 = vmatmul.bf16.gmra.mxu0 %v4285
    %v4299 = vpop.f32.mrf.mxu0
    %v4300 = vadd.f32 0.0, %v4299
    %v4301 = vpop.f32.mrf.mxu0
    %v4302 = vadd.f32 0.0, %v4301
    %4303 = vmatmul.bf16.gmra.mxu0 %v4288
    %v4304 = vpop.f32.mrf.mxu0
    %v4305 = vadd.f32 0.0, %v4304
    %v4306 = vpop.f32.mrf.mxu0
    %v4307 = vadd.f32 0.0, %v4306
    %4308 = vdwg.mxu0
    %v4313 = vunpack.c.l.b16 %v4230
    %v4314 = vunpack.c.l.b16 %v4231
    %v4315 = vunpack.c.l.b16 %v4232
    %v4316 = vunpack.c.l.b16 %v4233
    %v4317 = vpack.c.b16 %v4314, %v4313
    %v4318 = vpack.c.b16 %v4316, %v4315
    %v4327 = vunpack.c.l.b16 %v4242
    %v4328 = vunpack.c.l.b16 %v4243
    %v4329 = vunpack.c.l.b16 %v4244
    %v4330 = vunpack.c.l.b16 %v4245
    %v4331 = vunpack.c.l.b16 %v4246
    %v4332 = vunpack.c.l.b16 %v4247
    %v4333 = vunpack.c.l.b16 %v4248
    %v4334 = vunpack.c.l.b16 %v4249
    %v4335 = vpack.c.b16 %v4328, %v4327
    %v4336 = vpack.c.b16 %v4330, %v4329
    %v4337 = vpack.c.b16 %v4332, %v4331
    %v4338 = vpack.c.b16 %v4334, %v4333
    %v4344 = vsel %vm3898, %v4317, 0
    %v4347 = vsel %vm3898, %v4318, 0
    %4349 = vmatpush.bf16.msra.mxu0 0
    %4350 = vmatpush.bf16.msra.mxu0 0
    %4351 = vmatpush.bf16.msra.mxu0 0
    %4352 = vmatpush.bf16.msra.mxu0 0
    %4353 = vmatpush.bf16.msra.mxu0 %v4338
    %4354 = vmatpush.bf16.msra.mxu0 %v4337
    %4355 = vmatpush.bf16.msra.mxu0 %v4336
    %4356 = vmatpush.bf16.msra.mxu0 %v4335
    %4357 = vmatmul.bf16.gmra.mxu0 %v4344
    %v4358 = vpop.f32.mrf.mxu0
    %v4359 = vadd.f32 0.0, %v4358
    %v4360 = vpop.f32.mrf.mxu0
    %v4361 = vadd.f32 0.0, %v4360
    %4362 = vmatmul.bf16.gmra.mxu0 %v4347
    %v4363 = vpop.f32.mrf.mxu0
    %v4364 = vadd.f32 0.0, %v4363
    %v4365 = vpop.f32.mrf.mxu0
    %v4366 = vadd.f32 0.0, %v4365
    %4367 = vdwg.mxu0
    %v4368 = vadd.f32 %v4300, %v4359
    %v4369 = vadd.f32 %v4302, %v4361
    %v4370 = vadd.f32 %v4305, %v4364
    %v4371 = vadd.f32 %v4307, %v4366
    %v4372 = vld [vmem:[%s4] sm:$0x1]
    %v4374 = vperm.slane %v4372, 0
    %v4376 = vadd.f32 %v4368, %v4374
    %v4377 = vadd.f32 %v4369, %v4374
    %v4378 = vadd.f32 %v4370, %v4374
    %v4379 = vadd.f32 %v4371, %v4374
    %vm4380 = vcmp.ge.f32.partialorder %v4376, 1.0
    %vm4381 = vcmp.ge.f32.partialorder %v4377, 1.0
    %vm4382 = vcmp.ge.f32.partialorder %v4378, 1.0
    %vm4383 = vcmp.ge.f32.partialorder %v4379, 1.0
    %v4384 = vsel %vm4380, 1, 0
    %v4385 = vsel %vm4381, 1, 0
    %v4386 = vsel %vm4382, 1, 0
    %v4387 = vsel %vm4383, 1, 0
    %v4388 = vcvt.s32.f32 %v4384
    %v4389 = vcvt.s32.f32 %v4385
    %v4390 = vcvt.s32.f32 %v4386
    %v4391 = vcvt.s32.f32 %v4387
    %4392 = vst [vmem:[#allocation11] sm:$0xff] %v4388
    %4393 = vst [vmem:[#allocation11 + $0x8] sm:$0xff] %v4389
    %4394 = vst [vmem:[#allocation11 + $0x10] sm:$0xff] %v4390
    %4395 = vst [vmem:[#allocation11 + $0x18] sm:$0xff] %v4391
    // Predicated region
    $region38: #{tpu_custom_call.1} parent=1 // pred_check
      _
    $region39: #{tpu_custom_call.1} parent=1 // pred_check_branch
      %4397 = sbr.rel (0) target = $region41
    $region40: #{tpu_custom_call.1} parent=1 // pred_region
      %4399 = vsyncadd [#allocation5], 0
      %s4400 = sshll.u32 [#allocation11], 4
      %s4401 = int_to_ptr.vmem [resolvable:$true] %s4400
      %s4402 = sshll.u32 %s5, 4
      %s4403 = int_to_ptr.hbm [resolvable:$true] %s4402
      %4408 = dma.vmem_to_hbm [thread:$0]  %s4401, 512, %s4403, [#allocation5], 128, 128, 8
    $region41: #{tpu_custom_call.1} parent=1 // pred_fallthru
      _
    // Predicated region
    $region42: #{tpu_custom_call.1} parent=1 // pred_check
      _
    $region43: #{tpu_custom_call.1} parent=1 // pred_check_branch
      %4410 = sbr.rel (0) target = $region45
    $region44: #{tpu_custom_call.1} parent=1 // pred_region
      %4412 = dma.done [#allocation5], 512
    $region45: #{tpu_custom_call.1} parent=1 // pred_fallthru
      _
    %4413 = vsyncpa [#allocation4], 1
    %4414 = vsyncpa [#allocation7], 1
    %4415 = vsyncpa [#allocation10], 1
    %4416 = vsyncpa [#allocation5], 1

</llo_original>
